<compile_context>
chip_gen: v7x
topology: tpu7x:2x2x1
jax: 0.10.0
libtpu: 0.0.40
codegen_flags: <defaults>
</compile_context>

<pallas_src>
import functools

import jax
import jax.numpy as jnp
from jax.experimental import pallas as pl
from jax.experimental.pallas import tpu as pltpu

SIZE_W_REP = 1152
H1 = 512
H2 = 512
OUT = 1000
OUT_PAD = 1024          # lane-dense output slab (multiple of 128)
BN_EPS = 1e-5
TILE_N = 256            # batch tile (matches 256-wide MXU on v6e/v7x)


def _round_up(x, m):
    return ((x + m - 1) // m) * m


def tag_decoder_kernel(z_ref,
                       w1_ref, t1_ref,
                       w2_ref, t2_ref,
                       w3_ref, t3_ref,
                       out_ref):
    """Fused 3-layer MLP head on one batch tile.

    z_ref : (tile_n, 1152) bf16   input representation tile
    wK    : (inK, outK)    bf16   linear weights with BN scale folded in
    tK    : (1, outK)      f32    folded BN shift = (bias - mean)*scale + beta
    out   : (tile_n, 1024) f32    sigmoid probabilities (cols >= 1000 are junk)
    """
    z = z_ref[...]

    # Layer 1: Linear(1152->512) * BNscale + shift, ReLU. Dropout(0.25)==identity.
    h = jnp.dot(z, w1_ref[...], preferred_element_type=jnp.float32)
    h = jnp.maximum(h + t1_ref[...], 0.0)

    # Layer 2: Linear(512->512) + shift, ReLU
    h = jnp.dot(h.astype(jnp.bfloat16), w2_ref[...],
                preferred_element_type=jnp.float32)
    h = jnp.maximum(h + t2_ref[...], 0.0)

    # Layer 3: Linear(512->1024 padded) + shift, Sigmoid
    h = jnp.dot(h.astype(jnp.bfloat16), w3_ref[...],
                preferred_element_type=jnp.float32)
    out_ref[...] = jax.nn.sigmoid(h + t3_ref[...])


def prepare_params(params):
    """Fold Linear + eval-mode BN into bf16 (in,out) weights and f32 shifts.

    Done once, outside the jitted forward, so no per-call transpose/fold cost.
    Layer 3 is padded to OUT_PAD columns (zero weights, zero shift -> sigmoid
    gives 0.5 in the padded columns, which are sliced off in the wrapper).
    """
    def fold(lin_w, lin_b, gamma, beta, mean, var, pad_to=None):
        scale = gamma / jnp.sqrt(var + BN_EPS)                 # (out,)
        shift = (lin_b - mean) * scale + beta                  # (out,)
        w = lin_w.T * scale[None, :]                           # (in, out), scale folded
        if pad_to is not None and w.shape[1] < pad_to:
            pad = pad_to - w.shape[1]
            w = jnp.pad(w, ((0, 0), (0, pad)))
            shift = jnp.pad(shift, (0, pad))
        return (w.astype(jnp.bfloat16),
                shift.reshape(1, -1).astype(jnp.float32))

    w1, t1 = fold(*params["layer1"])
    w2, t2 = fold(*params["layer2"])
    w3, t3 = fold(*params["layer3"], pad_to=OUT_PAD)
    return (w1, t1, w2, t2, w3, t3)


@jax.jit
def _tag_decoder_call(z, w1, t1, w2, t2, w3, t3):
    n = z.shape[0]
    tile_n = min(TILE_N, _round_up(n, 8))
    n_pad = _round_up(n, tile_n)

    zb = z.astype(jnp.bfloat16)
    if n_pad != n:
        zb = jnp.pad(zb, ((0, n_pad - n), (0, 0)))

    grid = (n_pad // tile_n,)

    # z / out are tiled over the batch; weights & shifts use constant index
    # maps so they stay VMEM-resident across grid steps.
    z_spec = pl.BlockSpec((tile_n, SIZE_W_REP), lambda i: (i, 0))
    out_spec = pl.BlockSpec((tile_n, OUT_PAD), lambda i: (i, 0))
    w1_spec = pl.BlockSpec((SIZE_W_REP, H1), lambda i: (0, 0))
    t1_spec = pl.BlockSpec((1, H1), lambda i: (0, 0))
    w2_spec = pl.BlockSpec((H1, H2), lambda i: (0, 0))
    t2_spec = pl.BlockSpec((1, H2), lambda i: (0, 0))
    w3_spec = pl.BlockSpec((H2, OUT_PAD), lambda i: (0, 0))
    t3_spec = pl.BlockSpec((1, OUT_PAD), lambda i: (0, 0))

    flops = 2 * n_pad * (SIZE_W_REP * H1 + H1 * H2 + H2 * OUT_PAD)
    weight_bytes = 2 * (SIZE_W_REP * H1 + H1 * H2 + H2 * OUT_PAD)  # bf16
    act_bytes = n_pad * (SIZE_W_REP * 2 + OUT_PAD * 4)
    shift_bytes = 4 * (H1 + H2 + OUT_PAD)
    cost = pl.CostEstimate(
        flops=flops,
        transcendentals=n_pad * OUT_PAD,
        bytes_accessed=weight_bytes + act_bytes + shift_bytes,
    )

    out = pl.pallas_call(
        tag_decoder_kernel,
        out_shape=jax.ShapeDtypeStruct((n_pad, OUT_PAD), jnp.float32),
        grid=grid,
        in_specs=[z_spec, w1_spec, t1_spec, w2_spec, t2_spec, w3_spec, t3_spec],
        out_specs=out_spec,
        compiler_params=pltpu.CompilerParams(
            dimension_semantics=("parallel",),
            vmem_limit_bytes=32 << 20,
        ),
        cost_estimate=cost,
    )(zb, w1, t1, w2, t2, w3, t3)

    return out[:n, :OUT]


def tag_decoder_forward(z, folded_params):
    return _tag_decoder_call(z, *folded_params)


def init_params(key):
    """Deterministic synthetic parameters matching the PyTorch module shapes."""
    ks = jax.random.split(key, 18)

    def linear(kw, kb, fan_in, fan_out):
        bound = 1.0 / jnp.sqrt(fan_in)
        w = jax.random.uniform(kw, (fan_out, fan_in), jnp.float32, -bound, bound)
        b = jax.random.uniform(kb, (fan_out,), jnp.float32, -bound, bound)
        return w, b

    def bn(kg, kb, km, kv, feat):
        gamma = 1.0 + 0.1 * jax.random.normal(kg, (feat,), jnp.float32)
        beta = 0.1 * jax.random.normal(kb, (feat,), jnp.float32)
        mean = 0.1 * jax.random.normal(km, (feat,), jnp.float32)
        var = 0.5 + jnp.abs(0.5 * jax.random.normal(kv, (feat,), jnp.float32))
        return gamma, beta, mean, var

    w1, b1 = linear(ks[0], ks[1], SIZE_W_REP, H1)
    g1, be1, m1, v1 = bn(ks[2], ks[3], ks[4], ks[5], H1)
    w2, b2 = linear(ks[6], ks[7], H1, H2)
    g2, be2, m2, v2 = bn(ks[8], ks[9], ks[10], ks[11], H2)
    w3, b3 = linear(ks[12], ks[13], H2, OUT)
    g3, be3, m3, v3 = bn(ks[14], ks[15], ks[16], ks[17], OUT)

    return {
        "layer1": (w1, b1, g1, be1, m1, v1),
        "layer2": (w2, b2, g2, be2, m2, v2),
        "layer3": (w3, b3, g3, be3, m3, v3),
    }


def reference_forward(z, params):
    """Pure-JAX f32 reference (eval-mode PyTorch semantics) for validation."""
    h = z
    for name in ("layer1", "layer2", "layer3"):
        w, b, g, be, m, v = params[name]
        h = h @ w.T + b
        h = (h - m) / jnp.sqrt(v + BN_EPS) * g + be
        if name != "layer3":
            h = jnp.maximum(h, 0.0)  # Dropout(0.25) is identity in eval mode
        else:
            h = jax.nn.sigmoid(h)
    return h


if __name__ == "__main__":
    key = jax.random.PRNGKey(0)
    kp, kz = jax.random.split(key)
    params = init_params(kp)
    folded = prepare_params(params)

    batch = 8
    z = jax.random.normal(kz, (batch, SIZE_W_REP), jnp.float32)

    out = tag_decoder_forward(z, folded)
    out = jax.block_until_ready(out)

    ref = reference_forward(z, params)
    assert out.shape == (batch, OUT), out.shape
    # bf16 weights introduce ~1e-3 level deviation vs. the f32 reference; the
    # sigmoid output lies in [0, 1] so an absolute tolerance is appropriate.
    max_err = float(jnp.max(jnp.abs(out - ref)))
    assert max_err < 5e-2, max_err

    print("KERNEL_OK")
</pallas_src>

<mosaic_0001>
module attributes {stable_mosaic.version = 11 : i64} {
  func.func @tag_decoder_kernel(%arg0: i32, %arg1: memref<8x1152xbf16, #tpu.memory_space<vmem>>, %arg2: memref<1152x512xbf16, #tpu.memory_space<vmem>>, %arg3: memref<1x512xf32, #tpu.memory_space<vmem>>, %arg4: memref<512x512xbf16, #tpu.memory_space<vmem>>, %arg5: memref<1x512xf32, #tpu.memory_space<vmem>>, %arg6: memref<512x1024xbf16, #tpu.memory_space<vmem>>, %arg7: memref<1x1024xf32, #tpu.memory_space<vmem>>, %arg8: memref<8x1024xf32, #tpu.memory_space<vmem>>) attributes {dimension_semantics = [#tpu.dimension_semantics<parallel>], iteration_bounds = array<i64: 1>, scalar_prefetch = 0 : i64, scratch_operands = 0 : i64, tpu.core_type = #tpu.core_type<tc>, window_params = [{transform_indices = @transform_0, window_bounds = array<i64: 8, 1152>}, {pipeline_mode = #tpu.pipeline_mode<synchronous>, transform_indices = @transform_1, window_bounds = array<i64: 1152, 512>}, {pipeline_mode = #tpu.pipeline_mode<synchronous>, transform_indices = @transform_2, window_bounds = array<i64: 1, 512>}, {pipeline_mode = #tpu.pipeline_mode<synchronous>, transform_indices = @transform_3, window_bounds = array<i64: 512, 512>}, {pipeline_mode = #tpu.pipeline_mode<synchronous>, transform_indices = @transform_4, window_bounds = array<i64: 1, 512>}, {pipeline_mode = #tpu.pipeline_mode<synchronous>, transform_indices = @transform_5, window_bounds = array<i64: 512, 1024>}, {pipeline_mode = #tpu.pipeline_mode<synchronous>, transform_indices = @transform_6, window_bounds = array<i64: 1, 1024>}, {transform_indices = @transform_7, window_bounds = array<i64: 8, 1024>}]} {
    %c0 = arith.constant 0 : index
    %c0_0 = arith.constant 0 : index
    %0 = vector.load %arg1[%c0, %c0_0] : memref<8x1152xbf16, #tpu.memory_space<vmem>>, vector<8x1152xbf16>
    %c0_1 = arith.constant 0 : index
    %c0_2 = arith.constant 0 : index
    %1 = vector.load %arg2[%c0_1, %c0_2] : memref<1152x512xbf16, #tpu.memory_space<vmem>>, vector<1152x512xbf16>
    %cst = arith.constant dense<0.000000e+00> : vector<8x512xf32>
    %2 = tpu.matmul %0, %1, %cst {dimension_numbers = #tpu.dot_dimension_numbers<[1], [0], [0], [1], [0, 0, 1, 1], [], []>} : vector<8x1152xbf16>, vector<1152x512xbf16>, vector<8x512xf32> -> vector<8x512xf32>
    %c0_3 = arith.constant 0 : index
    %c0_4 = arith.constant 0 : index
    %3 = vector.load %arg3[%c0_3, %c0_4] : memref<1x512xf32, #tpu.memory_space<vmem>>, vector<1x512xf32>
    %4 = vector.broadcast %3 : vector<1x512xf32> to vector<8x512xf32>
    %5 = arith.addf %2, %4 : vector<8x512xf32>
    %cst_5 = arith.constant 0.000000e+00 : f32
    %6 = vector.broadcast %cst_5 : f32 to vector<8x512xf32>
    %7 = arith.maximumf %5, %6 : vector<8x512xf32>
    %8 = arith.truncf %7 : vector<8x512xf32> to vector<8x512xbf16>
    %c0_6 = arith.constant 0 : index
    %c0_7 = arith.constant 0 : index
    %9 = vector.load %arg4[%c0_6, %c0_7] : memref<512x512xbf16, #tpu.memory_space<vmem>>, vector<512x512xbf16>
    %cst_8 = arith.constant dense<0.000000e+00> : vector<8x512xf32>
    %10 = tpu.matmul %8, %9, %cst_8 {dimension_numbers = #tpu.dot_dimension_numbers<[1], [0], [0], [1], [0, 0, 1, 1], [], []>} : vector<8x512xbf16>, vector<512x512xbf16>, vector<8x512xf32> -> vector<8x512xf32>
    %c0_9 = arith.constant 0 : index
    %c0_10 = arith.constant 0 : index
    %11 = vector.load %arg5[%c0_9, %c0_10] : memref<1x512xf32, #tpu.memory_space<vmem>>, vector<1x512xf32>
    %12 = vector.broadcast %11 : vector<1x512xf32> to vector<8x512xf32>
    %13 = arith.addf %10, %12 : vector<8x512xf32>
    %cst_11 = arith.constant 0.000000e+00 : f32
    %14 = vector.broadcast %cst_11 : f32 to vector<8x512xf32>
    %15 = arith.maximumf %13, %14 : vector<8x512xf32>
    %16 = arith.truncf %15 : vector<8x512xf32> to vector<8x512xbf16>
    %c0_12 = arith.constant 0 : index
    %c0_13 = arith.constant 0 : index
    %17 = vector.load %arg6[%c0_12, %c0_13] : memref<512x1024xbf16, #tpu.memory_space<vmem>>, vector<512x1024xbf16>
    %cst_14 = arith.constant dense<0.000000e+00> : vector<8x1024xf32>
    %18 = tpu.matmul %16, %17, %cst_14 {dimension_numbers = #tpu.dot_dimension_numbers<[1], [0], [0], [1], [0, 0, 1, 1], [], []>} : vector<8x512xbf16>, vector<512x1024xbf16>, vector<8x1024xf32> -> vector<8x1024xf32>
    %c0_15 = arith.constant 0 : index
    %c0_16 = arith.constant 0 : index
    %19 = vector.load %arg7[%c0_15, %c0_16] : memref<1x1024xf32, #tpu.memory_space<vmem>>, vector<1x1024xf32>
    %20 = vector.broadcast %19 : vector<1x1024xf32> to vector<8x1024xf32>
    %21 = arith.addf %18, %20 : vector<8x1024xf32>
    %22 = arith.negf %21 : vector<8x1024xf32>
    %23 = math.exp %22 : vector<8x1024xf32>
    %cst_17 = arith.constant 1.000000e+00 : f32
    %24 = vector.broadcast %cst_17 : f32 to vector<8x1024xf32>
    %25 = arith.addf %24, %23 : vector<8x1024xf32>
    %26 = arith.divf %24, %25 : vector<8x1024xf32>
    %c0_18 = arith.constant 0 : index
    %c0_19 = arith.constant 0 : index
    %27 = vector.load %arg8[%c0_18, %c0_19] : memref<8x1024xf32, #tpu.memory_space<vmem>>, vector<8x1024xf32>
    tpu.vector_store %arg8[%c0_18, %c0_19], %26 {strides = array<i32>} : memref<8x1024xf32, #tpu.memory_space<vmem>>, vector<8x1024xf32>,
    return
  }
  func.func @transform_0(%arg0: i32) -> (i32, i32) {
    %c0_i32 = arith.constant 0 : i32
    %c0_i32_0 = arith.constant 0 : i32
    return %arg0, %c0_i32 : i32, i32
  }
  func.func @transform_1(%arg0: i32) -> (i32, i32) {
    %c0_i32 = arith.constant 0 : i32
    %c0_i32_0 = arith.constant 0 : i32
    %c0_i32_1 = arith.constant 0 : i32
    return %c0_i32, %c0_i32_0 : i32, i32
  }
  func.func @transform_2(%arg0: i32) -> (i32, i32) {
    %c0_i32 = arith.constant 0 : i32
    %c0_i32_0 = arith.constant 0 : i32
    %c0_i32_1 = arith.constant 0 : i32
    return %c0_i32, %c0_i32_0 : i32, i32
  }
  func.func @transform_3(%arg0: i32) -> (i32, i32) {
    %c0_i32 = arith.constant 0 : i32
    %c0_i32_0 = arith.constant 0 : i32
    %c0_i32_1 = arith.constant 0 : i32
    return %c0_i32, %c0_i32_0 : i32, i32
  }
  func.func @transform_4(%arg0: i32) -> (i32, i32) {
    %c0_i32 = arith.constant 0 : i32
    %c0_i32_0 = arith.constant 0 : i32
    %c0_i32_1 = arith.constant 0 : i32
    return %c0_i32, %c0_i32_0 : i32, i32
  }
  func.func @transform_5(%arg0: i32) -> (i32, i32) {
    %c0_i32 = arith.constant 0 : i32
    %c0_i32_0 = arith.constant 0 : i32
    %c0_i32_1 = arith.constant 0 : i32
    return %c0_i32, %c0_i32_0 : i32, i32
  }
  func.func @transform_6(%arg0: i32) -> (i32, i32) {
    %c0_i32 = arith.constant 0 : i32
    %c0_i32_0 = arith.constant 0 : i32
    %c0_i32_1 = arith.constant 0 : i32
    return %c0_i32, %c0_i32_0 : i32, i32
  }
  func.func @transform_7(%arg0: i32) -> (i32, i32) {
    %c0_i32 = arith.constant 0 : i32
    %c0_i32_0 = arith.constant 0 : i32
    return %arg0, %c0_i32 : i32, i32
  }
}

</mosaic_0001>

<llo_original>
// kernel: _tag_decoder_call.1
$region0: #{_tag_decoder_call.1}
  #allocation0 [shape = 'u32[]', space=smem, size = 0x4, offset = 0x4, fixed_abs, tag = 'smem constant byte address 0x4 - core index']
  #allocation1 [shape = 'u32[144,128]{1,0:T(1,128)}', space=vmem, size = 0x12000, scoped, tag = 'internal scratch']
  %s0 = inlined_call_operand.vmem [shape: bf16[8,1152], index: 0, kind: input, shape index: {}]
  %s1 = inlined_call_operand.hbm [shape: bf16[1152,512], index: 1, kind: input, shape index: {}]
  %s2 = inlined_call_operand.hbm [shape: f32[1,512], index: 2, kind: input, shape index: {}]
  %s3 = inlined_call_operand.hbm [shape: bf16[512,512], index: 3, kind: input, shape index: {}]
  %s4 = inlined_call_operand.hbm [shape: f32[1,512], index: 4, kind: input, shape index: {}]
  %s5 = inlined_call_operand.hbm [shape: bf16[512,1024], index: 5, kind: input, shape index: {}]
  %s6 = inlined_call_operand.hbm [shape: f32[1,1024], index: 6, kind: input, shape index: {}]
  %s7 = inlined_call_operand.hbm [shape: f32[8,1024], index: 7, kind: output, shape index: {}]
  %s8 = sld [smem:[#allocation0]]
  $region62: #{_tag_decoder_call.1} parent=0
    _
  %s10 = ssub.s32 1, %s8
  %s11 = scalar_select 0, %s10, %s8
  $region1: #{_tag_decoder_call.1} parent=0
    #allocation2 [shape = 'u8[1179648]{0}', space=vmem, size = 0x120000, scoped, tag = 'input window, operand 1, single buffered']
    #allocation3 [shape = 's32[1]{0}', space=sflag, size = 0x4, scoped, tag = 'scoped memory for _tag_decoder_call.1']
    #allocation4 [shape = 's32[1]{0}', space=sflag, size = 0x4, scoped, tag = 'scoped memory for _tag_decoder_call.1']
    #allocation5 [shape = 'u8[2048]{0}', space=vmem, size = 0x800, scoped, tag = 'input window, operand 2, single buffered']
    #allocation6 [shape = 's32[1]{0}', space=sflag, size = 0x4, scoped, tag = 'scoped memory for _tag_decoder_call.1']
    #allocation7 [shape = 'u8[524288]{0}', space=vmem, size = 0x80000, scoped, tag = 'input window, operand 3, single buffered']
    #allocation8 [shape = 'u8[2048]{0}', space=vmem, size = 0x800, scoped, tag = 'input window, operand 4, single buffered']
    #allocation9 [shape = 's32[1]{0}', space=sflag, size = 0x4, scoped, tag = 'scoped memory for _tag_decoder_call.1']
    #allocation10 [shape = 'u8[1048576]{0}', space=vmem, size = 0x100000, scoped, tag = 'input window, operand 5, single buffered']
    #allocation11 [shape = 'u8[4096]{0}', space=vmem, size = 0x1000, scoped, tag = 'input window, operand 6, single buffered']
    #allocation12 [shape = 's32[1]{0}', space=sflag, size = 0x4, scoped, tag = 'scoped memory for _tag_decoder_call.1']
    #allocation13 [shape = 'u8[32768]{0}', space=vmem, size = 0x8000, scoped, tag = 'output window, operand 0, single buffered']
    %12 = vsyncpa [#allocation3], 0
    %13 = vsyncpa [#allocation6], 0
    %14 = vsyncpa [#allocation9], 0
    %15 = vsyncpa [#allocation12], 0
    %16 = vsyncpa [#allocation4], 0
    // Predicated region
    $region2: #{_tag_decoder_call.1} parent=1 // pred_check
      _
    $region3: #{_tag_decoder_call.1} parent=1 // pred_check_branch
      %18 = sbr.rel (0) target = $region5
    $region4: #{_tag_decoder_call.1} parent=1 // pred_region
      _
    $region5: #{_tag_decoder_call.1} parent=1 // pred_fallthru
      _
    // Predicated region
    $region6: #{_tag_decoder_call.1} parent=1 // pred_check
      _
    $region7: #{_tag_decoder_call.1} parent=1 // pred_check_branch
      %20 = sbr.rel (0) target = $region9
    $region8: #{_tag_decoder_call.1} parent=1 // pred_region
      %s22 = ssub.s32 36864, 36864
      %23 = vsyncadd [#allocation3], %s22
      %s24 = sshll.u32 [#allocation2], 4
      %s25 = int_to_ptr.vmem [resolvable:$true] %s24
      %30 = dma.hbm_to_vmem [thread:$0]  %s1, 36864, %s25, [#allocation3], 256, 256, 16
    $region9: #{_tag_decoder_call.1} parent=1 // pred_fallthru
      _
    // Predicated region
    $region10: #{_tag_decoder_call.1} parent=1 // pred_check
      _
    $region11: #{_tag_decoder_call.1} parent=1 // pred_check_branch
      %32 = sbr.rel (0) target = $region13
    $region12: #{_tag_decoder_call.1} parent=1 // pred_region
      %s34 = ssub.s32 64, 64
      %35 = vsyncadd [#allocation6], %s34
      %s37 = sshll.u32 [#allocation5], 4
      %s38 = int_to_ptr.vmem [resolvable:$true] %s37
      %40 = dma.hbm_to_vmem [thread:$0]  %s2, 64, %s38, [#allocation6]
    $region13: #{_tag_decoder_call.1} parent=1 // pred_fallthru
      _
    // Predicated region
    $region14: #{_tag_decoder_call.1} parent=1 // pred_check
      _
    $region15: #{_tag_decoder_call.1} parent=1 // pred_check_branch
      %42 = sbr.rel (0) target = $region17
    $region16: #{_tag_decoder_call.1} parent=1 // pred_region
      %s44 = ssub.s32 16384, 16384
      %45 = vsyncadd [#allocation6], %s44
      %s46 = sshll.u32 [#allocation7], 4
      %s47 = int_to_ptr.vmem [resolvable:$true] %s46
      %52 = dma.hbm_to_vmem [thread:$0]  %s3, 16384, %s47, [#allocation6], 256, 256, 16
    $region17: #{_tag_decoder_call.1} parent=1 // pred_fallthru
      _
    // Predicated region
    $region18: #{_tag_decoder_call.1} parent=1 // pred_check
      _
    $region19: #{_tag_decoder_call.1} parent=1 // pred_check_branch
      %54 = sbr.rel (0) target = $region21
    $region20: #{_tag_decoder_call.1} parent=1 // pred_region
      %s56 = ssub.s32 64, 64
      %57 = vsyncadd [#allocation9], %s56
      %s59 = sshll.u32 [#allocation8], 4
      %s60 = int_to_ptr.vmem [resolvable:$true] %s59
      %62 = dma.hbm_to_vmem [thread:$0]  %s4, 64, %s60, [#allocation9]
    $region21: #{_tag_decoder_call.1} parent=1 // pred_fallthru
      _
    // Predicated region
    $region22: #{_tag_decoder_call.1} parent=1 // pred_check
      _
    $region23: #{_tag_decoder_call.1} parent=1 // pred_check_branch
      %64 = sbr.rel (0) target = $region25
    $region24: #{_tag_decoder_call.1} parent=1 // pred_region
      %s66 = ssub.s32 32768, 32768
      %67 = vsyncadd [#allocation9], %s66
      %s68 = sshll.u32 [#allocation10], 4
      %s69 = int_to_ptr.vmem [resolvable:$true] %s68
      %74 = dma.hbm_to_vmem [thread:$0]  %s5, 32768, %s69, [#allocation9], 512, 512, 32
    $region25: #{_tag_decoder_call.1} parent=1 // pred_fallthru
      _
    // Predicated region
    $region26: #{_tag_decoder_call.1} parent=1 // pred_check
      _
    $region27: #{_tag_decoder_call.1} parent=1 // pred_check_branch
      %76 = sbr.rel (0) target = $region29
    $region28: #{_tag_decoder_call.1} parent=1 // pred_region
      %s78 = ssub.s32 128, 128
      %79 = vsyncadd [#allocation12], %s78
      %s81 = sshll.u32 [#allocation11], 4
      %s82 = int_to_ptr.vmem [resolvable:$true] %s81
      %84 = dma.hbm_to_vmem [thread:$0]  %s6, 128, %s82, [#allocation12]
    $region29: #{_tag_decoder_call.1} parent=1 // pred_fallthru
      _
    // Predicated region
    $region30: #{_tag_decoder_call.1} parent=1 // pred_check
      _
    $region31: #{_tag_decoder_call.1} parent=1 // pred_check_branch
      %86 = sbr.rel (0) target = $region33
    $region32: #{_tag_decoder_call.1} parent=1 // pred_region
      %87 = dma.done [#allocation3], 36864
    $region33: #{_tag_decoder_call.1} parent=1 // pred_fallthru
      _
    // Predicated region
    $region34: #{_tag_decoder_call.1} parent=1 // pred_check
      _
    $region35: #{_tag_decoder_call.1} parent=1 // pred_check_branch
      %89 = sbr.rel (0) target = $region37
    $region36: #{_tag_decoder_call.1} parent=1 // pred_region
      %90 = dma.done [#allocation6], 64
    $region37: #{_tag_decoder_call.1} parent=1 // pred_fallthru
      _
    // Predicated region
    $region38: #{_tag_decoder_call.1} parent=1 // pred_check
      _
    $region39: #{_tag_decoder_call.1} parent=1 // pred_check_branch
      %92 = sbr.rel (0) target = $region41
    $region40: #{_tag_decoder_call.1} parent=1 // pred_region
      %93 = dma.done [#allocation6], 16384
    $region41: #{_tag_decoder_call.1} parent=1 // pred_fallthru
      _
    // Predicated region
    $region42: #{_tag_decoder_call.1} parent=1 // pred_check
      _
    $region43: #{_tag_decoder_call.1} parent=1 // pred_check_branch
      %95 = sbr.rel (0) target = $region45
    $region44: #{_tag_decoder_call.1} parent=1 // pred_region
      %96 = dma.done [#allocation9], 64
    $region45: #{_tag_decoder_call.1} parent=1 // pred_fallthru
      _
    // Predicated region
    $region46: #{_tag_decoder_call.1} parent=1 // pred_check
      _
    $region47: #{_tag_decoder_call.1} parent=1 // pred_check_branch
      %98 = sbr.rel (0) target = $region49
    $region48: #{_tag_decoder_call.1} parent=1 // pred_region
      %99 = dma.done [#allocation9], 32768
    $region49: #{_tag_decoder_call.1} parent=1 // pred_fallthru
      _
    // Predicated region
    $region50: #{_tag_decoder_call.1} parent=1 // pred_check
      _
    $region51: #{_tag_decoder_call.1} parent=1 // pred_check_branch
      %101 = sbr.rel (0) target = $region53
    $region52: #{_tag_decoder_call.1} parent=1 // pred_region
      %102 = dma.done [#allocation12], 128
    $region53: #{_tag_decoder_call.1} parent=1 // pred_fallthru
      _
    %v104 = vld [vmem:[%s0] sm:$0xff]
    %v105 = vld [vmem:[%s0 + $0x8] sm:$0xff]
    %v106 = vld [vmem:[%s0 + $0x10] sm:$0xff]
    %v107 = vld [vmem:[%s0 + $0x18] sm:$0xff]
    %v108 = vld [vmem:[%s0 + $0x20] sm:$0xf]
    %v109 = vld [vmem:[#allocation2] sm:$0xff]
    %v110 = vld [vmem:[#allocation2 + $0x8] sm:$0xff]
    %v111 = vld [vmem:[#allocation2 + $0x10] sm:$0xff]
    %v112 = vld [vmem:[#allocation2 + $0x18] sm:$0xff]
    %v113 = vld [vmem:[#allocation2 + $0x20] sm:$0xff]
    %v114 = vld [vmem:[#allocation2 + $0x28] sm:$0xff]
    %v115 = vld [vmem:[#allocation2 + $0x30] sm:$0xff]
    %v116 = vld [vmem:[#allocation2 + $0x38] sm:$0xff]
    %v117 = vld [vmem:[#allocation2 + $0x40] sm:$0xff]
    %v118 = vld [vmem:[#allocation2 + $0x48] sm:$0xff]
    %v119 = vld [vmem:[#allocation2 + $0x50] sm:$0xff]
    %v120 = vld [vmem:[#allocation2 + $0x58] sm:$0xff]
    %v121 = vld [vmem:[#allocation2 + $0x60] sm:$0xff]
    %v122 = vld [vmem:[#allocation2 + $0x68] sm:$0xff]
    %v123 = vld [vmem:[#allocation2 + $0x70] sm:$0xff]
    %v124 = vld [vmem:[#allocation2 + $0x78] sm:$0xff]
    %v125 = vld [vmem:[#allocation2 + $0x80] sm:$0xff]
    %v126 = vld [vmem:[#allocation2 + $0x88] sm:$0xff]
    %v127 = vld [vmem:[#allocation2 + $0x90] sm:$0xff]
    %v128 = vld [vmem:[#allocation2 + $0x98] sm:$0xff]
    %v129 = vld [vmem:[#allocation2 + $0xa0] sm:$0xff]
    %v130 = vld [vmem:[#allocation2 + $0xa8] sm:$0xff]
    %v131 = vld [vmem:[#allocation2 + $0xb0] sm:$0xff]
    %v132 = vld [vmem:[#allocation2 + $0xb8] sm:$0xff]
    %v133 = vld [vmem:[#allocation2 + $0xc0] sm:$0xff]
    %v134 = vld [vmem:[#allocation2 + $0xc8] sm:$0xff]
    %v135 = vld [vmem:[#allocation2 + $0xd0] sm:$0xff]
    %v136 = vld [vmem:[#allocation2 + $0xd8] sm:$0xff]
    %v137 = vld [vmem:[#allocation2 + $0xe0] sm:$0xff]
    %v138 = vld [vmem:[#allocation2 + $0xe8] sm:$0xff]
    %v139 = vld [vmem:[#allocation2 + $0xf0] sm:$0xff]
    %v140 = vld [vmem:[#allocation2 + $0xf8] sm:$0xff]
    %v141 = vld [vmem:[#allocation2 + $0x100] sm:$0xff]
    %v142 = vld [vmem:[#allocation2 + $0x108] sm:$0xff]
    %v143 = vld [vmem:[#allocation2 + $0x110] sm:$0xff]
    %v144 = vld [vmem:[#allocation2 + $0x118] sm:$0xff]
    %v145 = vld [vmem:[#allocation2 + $0x120] sm:$0xff]
    %v146 = vld [vmem:[#allocation2 + $0x128] sm:$0xff]
    %v147 = vld [vmem:[#allocation2 + $0x130] sm:$0xff]
    %v148 = vld [vmem:[#allocation2 + $0x138] sm:$0xff]
    %v149 = vld [vmem:[#allocation2 + $0x140] sm:$0xff]
    %v150 = vld [vmem:[#allocation2 + $0x148] sm:$0xff]
    %v151 = vld [vmem:[#allocation2 + $0x150] sm:$0xff]
    %v152 = vld [vmem:[#allocation2 + $0x158] sm:$0xff]
    %v153 = vld [vmem:[#allocation2 + $0x160] sm:$0xff]
    %v154 = vld [vmem:[#allocation2 + $0x168] sm:$0xff]
    %v155 = vld [vmem:[#allocation2 + $0x170] sm:$0xff]
    %v156 = vld [vmem:[#allocation2 + $0x178] sm:$0xff]
    %v157 = vld [vmem:[#allocation2 + $0x180] sm:$0xff]
    %v158 = vld [vmem:[#allocation2 + $0x188] sm:$0xff]
    %v159 = vld [vmem:[#allocation2 + $0x190] sm:$0xff]
    %v160 = vld [vmem:[#allocation2 + $0x198] sm:$0xff]
    %v161 = vld [vmem:[#allocation2 + $0x1a0] sm:$0xff]
    %v162 = vld [vmem:[#allocation2 + $0x1a8] sm:$0xff]
    %v163 = vld [vmem:[#allocation2 + $0x1b0] sm:$0xff]
    %v164 = vld [vmem:[#allocation2 + $0x1b8] sm:$0xff]
    %v165 = vld [vmem:[#allocation2 + $0x1c0] sm:$0xff]
    %v166 = vld [vmem:[#allocation2 + $0x1c8] sm:$0xff]
    %v167 = vld [vmem:[#allocation2 + $0x1d0] sm:$0xff]
    %v168 = vld [vmem:[#allocation2 + $0x1d8] sm:$0xff]
    %v169 = vld [vmem:[#allocation2 + $0x1e0] sm:$0xff]
    %v170 = vld [vmem:[#allocation2 + $0x1e8] sm:$0xff]
    %v171 = vld [vmem:[#allocation2 + $0x1f0] sm:$0xff]
    %v172 = vld [vmem:[#allocation2 + $0x1f8] sm:$0xff]
    %v173 = vld [vmem:[#allocation2 + $0x200] sm:$0xff]
    %v174 = vld [vmem:[#allocation2 + $0x208] sm:$0xff]
    %v175 = vld [vmem:[#allocation2 + $0x210] sm:$0xff]
    %v176 = vld [vmem:[#allocation2 + $0x218] sm:$0xff]
    %v177 = vld [vmem:[#allocation2 + $0x220] sm:$0xff]
    %v178 = vld [vmem:[#allocation2 + $0x228] sm:$0xff]
    %v179 = vld [vmem:[#allocation2 + $0x230] sm:$0xff]
    %v180 = vld [vmem:[#allocation2 + $0x238] sm:$0xff]
    %v181 = vld [vmem:[#allocation2 + $0x240] sm:$0xff]
    %v182 = vld [vmem:[#allocation2 + $0x248] sm:$0xff]
    %v183 = vld [vmem:[#allocation2 + $0x250] sm:$0xff]
    %v184 = vld [vmem:[#allocation2 + $0x258] sm:$0xff]
    %v185 = vld [vmem:[#allocation2 + $0x260] sm:$0xff]
    %v186 = vld [vmem:[#allocation2 + $0x268] sm:$0xff]
    %v187 = vld [vmem:[#allocation2 + $0x270] sm:$0xff]
    %v188 = vld [vmem:[#allocation2 + $0x278] sm:$0xff]
    %v189 = vld [vmem:[#allocation2 + $0x280] sm:$0xff]
    %v190 = vld [vmem:[#allocation2 + $0x288] sm:$0xff]
    %v191 = vld [vmem:[#allocation2 + $0x290] sm:$0xff]
    %v192 = vld [vmem:[#allocation2 + $0x298] sm:$0xff]
    %v193 = vld [vmem:[#allocation2 + $0x2a0] sm:$0xff]
    %v194 = vld [vmem:[#allocation2 + $0x2a8] sm:$0xff]
    %v195 = vld [vmem:[#allocation2 + $0x2b0] sm:$0xff]
    %v196 = vld [vmem:[#allocation2 + $0x2b8] sm:$0xff]
    %v197 = vld [vmem:[#allocation2 + $0x2c0] sm:$0xff]
    %v198 = vld [vmem:[#allocation2 + $0x2c8] sm:$0xff]
    %v199 = vld [vmem:[#allocation2 + $0x2d0] sm:$0xff]
    %v200 = vld [vmem:[#allocation2 + $0x2d8] sm:$0xff]
    %v201 = vld [vmem:[#allocation2 + $0x2e0] sm:$0xff]
    %v202 = vld [vmem:[#allocation2 + $0x2e8] sm:$0xff]
    %v203 = vld [vmem:[#allocation2 + $0x2f0] sm:$0xff]
    %v204 = vld [vmem:[#allocation2 + $0x2f8] sm:$0xff]
    %v205 = vld [vmem:[#allocation2 + $0x300] sm:$0xff]
    %v206 = vld [vmem:[#allocation2 + $0x308] sm:$0xff]
    %v207 = vld [vmem:[#allocation2 + $0x310] sm:$0xff]
    %v208 = vld [vmem:[#allocation2 + $0x318] sm:$0xff]
    %v209 = vld [vmem:[#allocation2 + $0x320] sm:$0xff]
    %v210 = vld [vmem:[#allocation2 + $0x328] sm:$0xff]
    %v211 = vld [vmem:[#allocation2 + $0x330] sm:$0xff]
    %v212 = vld [vmem:[#allocation2 + $0x338] sm:$0xff]
    %v213 = vld [vmem:[#allocation2 + $0x340] sm:$0xff]
    %v214 = vld [vmem:[#allocation2 + $0x348] sm:$0xff]
    %v215 = vld [vmem:[#allocation2 + $0x350] sm:$0xff]
    %v216 = vld [vmem:[#allocation2 + $0x358] sm:$0xff]
    %v217 = vld [vmem:[#allocation2 + $0x360] sm:$0xff]
    %v218 = vld [vmem:[#allocation2 + $0x368] sm:$0xff]
    %v219 = vld [vmem:[#allocation2 + $0x370] sm:$0xff]
    %v220 = vld [vmem:[#allocation2 + $0x378] sm:$0xff]
    %v221 = vld [vmem:[#allocation2 + $0x380] sm:$0xff]
    %v222 = vld [vmem:[#allocation2 + $0x388] sm:$0xff]
    %v223 = vld [vmem:[#allocation2 + $0x390] sm:$0xff]
    %v224 = vld [vmem:[#allocation2 + $0x398] sm:$0xff]
    %v225 = vld [vmem:[#allocation2 + $0x3a0] sm:$0xff]
    %v226 = vld [vmem:[#allocation2 + $0x3a8] sm:$0xff]
    %v227 = vld [vmem:[#allocation2 + $0x3b0] sm:$0xff]
    %v228 = vld [vmem:[#allocation2 + $0x3b8] sm:$0xff]
    %v229 = vld [vmem:[#allocation2 + $0x3c0] sm:$0xff]
    %v230 = vld [vmem:[#allocation2 + $0x3c8] sm:$0xff]
    %v231 = vld [vmem:[#allocation2 + $0x3d0] sm:$0xff]
    %v232 = vld [vmem:[#allocation2 + $0x3d8] sm:$0xff]
    %v233 = vld [vmem:[#allocation2 + $0x3e0] sm:$0xff]
    %v234 = vld [vmem:[#allocation2 + $0x3e8] sm:$0xff]
    %v235 = vld [vmem:[#allocation2 + $0x3f0] sm:$0xff]
    %v236 = vld [vmem:[#allocation2 + $0x3f8] sm:$0xff]
    %v237 = vld [vmem:[#allocation2 + $0x400] sm:$0xff]
    %v238 = vld [vmem:[#allocation2 + $0x408] sm:$0xff]
    %v239 = vld [vmem:[#allocation2 + $0x410] sm:$0xff]
    %v240 = vld [vmem:[#allocation2 + $0x418] sm:$0xff]
    %v241 = vld [vmem:[#allocation2 + $0x420] sm:$0xff]
    %v242 = vld [vmem:[#allocation2 + $0x428] sm:$0xff]
    %v243 = vld [vmem:[#allocation2 + $0x430] sm:$0xff]
    %v244 = vld [vmem:[#allocation2 + $0x438] sm:$0xff]
    %v245 = vld [vmem:[#allocation2 + $0x440] sm:$0xff]
    %v246 = vld [vmem:[#allocation2 + $0x448] sm:$0xff]
    %v247 = vld [vmem:[#allocation2 + $0x450] sm:$0xff]
    %v248 = vld [vmem:[#allocation2 + $0x458] sm:$0xff]
    %v249 = vld [vmem:[#allocation2 + $0x460] sm:$0xff]
    %v250 = vld [vmem:[#allocation2 + $0x468] sm:$0xff]
    %v251 = vld [vmem:[#allocation2 + $0x470] sm:$0xff]
    %v252 = vld [vmem:[#allocation2 + $0x478] sm:$0xff]
    %v253 = vld [vmem:[#allocation2 + $0x480] sm:$0xff]
    %v254 = vld [vmem:[#allocation2 + $0x488] sm:$0xff]
    %v255 = vld [vmem:[#allocation2 + $0x490] sm:$0xff]
    %v256 = vld [vmem:[#allocation2 + $0x498] sm:$0xff]
    %v257 = vld [vmem:[#allocation2 + $0x4a0] sm:$0xff]
    %v258 = vld [vmem:[#allocation2 + $0x4a8] sm:$0xff]
    %v259 = vld [vmem:[#allocation2 + $0x4b0] sm:$0xff]
    %v260 = vld [vmem:[#allocation2 + $0x4b8] sm:$0xff]
    %v261 = vld [vmem:[#allocation2 + $0x4c0] sm:$0xff]
    %v262 = vld [vmem:[#allocation2 + $0x4c8] sm:$0xff]
    %v263 = vld [vmem:[#allocation2 + $0x4d0] sm:$0xff]
    %v264 = vld [vmem:[#allocation2 + $0x4d8] sm:$0xff]
    %v265 = vld [vmem:[#allocation2 + $0x4e0] sm:$0xff]
    %v266 = vld [vmem:[#allocation2 + $0x4e8] sm:$0xff]
    %v267 = vld [vmem:[#allocation2 + $0x4f0] sm:$0xff]
    %v268 = vld [vmem:[#allocation2 + $0x4f8] sm:$0xff]
    %v269 = vld [vmem:[#allocation2 + $0x500] sm:$0xff]
    %v270 = vld [vmem:[#allocation2 + $0x508] sm:$0xff]
    %v271 = vld [vmem:[#allocation2 + $0x510] sm:$0xff]
    %v272 = vld [vmem:[#allocation2 + $0x518] sm:$0xff]
    %v273 = vld [vmem:[#allocation2 + $0x520] sm:$0xff]
    %v274 = vld [vmem:[#allocation2 + $0x528] sm:$0xff]
    %v275 = vld [vmem:[#allocation2 + $0x530] sm:$0xff]
    %v276 = vld [vmem:[#allocation2 + $0x538] sm:$0xff]
    %v277 = vld [vmem:[#allocation2 + $0x540] sm:$0xff]
    %v278 = vld [vmem:[#allocation2 + $0x548] sm:$0xff]
    %v279 = vld [vmem:[#allocation2 + $0x550] sm:$0xff]
    %v280 = vld [vmem:[#allocation2 + $0x558] sm:$0xff]
    %v281 = vld [vmem:[#allocation2 + $0x560] sm:$0xff]
    %v282 = vld [vmem:[#allocation2 + $0x568] sm:$0xff]
    %v283 = vld [vmem:[#allocation2 + $0x570] sm:$0xff]
    %v284 = vld [vmem:[#allocation2 + $0x578] sm:$0xff]
    %v285 = vld [vmem:[#allocation2 + $0x580] sm:$0xff]
    %v286 = vld [vmem:[#allocation2 + $0x588] sm:$0xff]
    %v287 = vld [vmem:[#allocation2 + $0x590] sm:$0xff]
    %v288 = vld [vmem:[#allocation2 + $0x598] sm:$0xff]
    %v289 = vld [vmem:[#allocation2 + $0x5a0] sm:$0xff]
    %v290 = vld [vmem:[#allocation2 + $0x5a8] sm:$0xff]
    %v291 = vld [vmem:[#allocation2 + $0x5b0] sm:$0xff]
    %v292 = vld [vmem:[#allocation2 + $0x5b8] sm:$0xff]
    %v293 = vld [vmem:[#allocation2 + $0x5c0] sm:$0xff]
    %v294 = vld [vmem:[#allocation2 + $0x5c8] sm:$0xff]
    %v295 = vld [vmem:[#allocation2 + $0x5d0] sm:$0xff]
    %v296 = vld [vmem:[#allocation2 + $0x5d8] sm:$0xff]
    %v297 = vld [vmem:[#allocation2 + $0x5e0] sm:$0xff]
    %v298 = vld [vmem:[#allocation2 + $0x5e8] sm:$0xff]
    %v299 = vld [vmem:[#allocation2 + $0x5f0] sm:$0xff]
    %v300 = vld [vmem:[#allocation2 + $0x5f8] sm:$0xff]
    %v301 = vld [vmem:[#allocation2 + $0x600] sm:$0xff]
    %v302 = vld [vmem:[#allocation2 + $0x608] sm:$0xff]
    %v303 = vld [vmem:[#allocation2 + $0x610] sm:$0xff]
    %v304 = vld [vmem:[#allocation2 + $0x618] sm:$0xff]
    %v305 = vld [vmem:[#allocation2 + $0x620] sm:$0xff]
    %v306 = vld [vmem:[#allocation2 + $0x628] sm:$0xff]
    %v307 = vld [vmem:[#allocation2 + $0x630] sm:$0xff]
    %v308 = vld [vmem:[#allocation2 + $0x638] sm:$0xff]
    %v309 = vld [vmem:[#allocation2 + $0x640] sm:$0xff]
    %v310 = vld [vmem:[#allocation2 + $0x648] sm:$0xff]
    %v311 = vld [vmem:[#allocation2 + $0x650] sm:$0xff]
    %v312 = vld [vmem:[#allocation2 + $0x658] sm:$0xff]
    %v313 = vld [vmem:[#allocation2 + $0x660] sm:$0xff]
    %v314 = vld [vmem:[#allocation2 + $0x668] sm:$0xff]
    %v315 = vld [vmem:[#allocation2 + $0x670] sm:$0xff]
    %v316 = vld [vmem:[#allocation2 + $0x678] sm:$0xff]
    %v317 = vld [vmem:[#allocation2 + $0x680] sm:$0xff]
    %v318 = vld [vmem:[#allocation2 + $0x688] sm:$0xff]
    %v319 = vld [vmem:[#allocation2 + $0x690] sm:$0xff]
    %v320 = vld [vmem:[#allocation2 + $0x698] sm:$0xff]
    %v321 = vld [vmem:[#allocation2 + $0x6a0] sm:$0xff]
    %v322 = vld [vmem:[#allocation2 + $0x6a8] sm:$0xff]
    %v323 = vld [vmem:[#allocation2 + $0x6b0] sm:$0xff]
    %v324 = vld [vmem:[#allocation2 + $0x6b8] sm:$0xff]
    %v325 = vld [vmem:[#allocation2 + $0x6c0] sm:$0xff]
    %v326 = vld [vmem:[#allocation2 + $0x6c8] sm:$0xff]
    %v327 = vld [vmem:[#allocation2 + $0x6d0] sm:$0xff]
    %v328 = vld [vmem:[#allocation2 + $0x6d8] sm:$0xff]
    %v329 = vld [vmem:[#allocation2 + $0x6e0] sm:$0xff]
    %v330 = vld [vmem:[#allocation2 + $0x6e8] sm:$0xff]
    %v331 = vld [vmem:[#allocation2 + $0x6f0] sm:$0xff]
    %v332 = vld [vmem:[#allocation2 + $0x6f8] sm:$0xff]
    %v333 = vld [vmem:[#allocation2 + $0x700] sm:$0xff]
    %v334 = vld [vmem:[#allocation2 + $0x708] sm:$0xff]
    %v335 = vld [vmem:[#allocation2 + $0x710] sm:$0xff]
    %v336 = vld [vmem:[#allocation2 + $0x718] sm:$0xff]
    %v337 = vld [vmem:[#allocation2 + $0x720] sm:$0xff]
    %v338 = vld [vmem:[#allocation2 + $0x728] sm:$0xff]
    %v339 = vld [vmem:[#allocation2 + $0x730] sm:$0xff]
    %v340 = vld [vmem:[#allocation2 + $0x738] sm:$0xff]
    %v341 = vld [vmem:[#allocation2 + $0x740] sm:$0xff]
    %v342 = vld [vmem:[#allocation2 + $0x748] sm:$0xff]
    %v343 = vld [vmem:[#allocation2 + $0x750] sm:$0xff]
    %v344 = vld [vmem:[#allocation2 + $0x758] sm:$0xff]
    %v345 = vld [vmem:[#allocation2 + $0x760] sm:$0xff]
    %v346 = vld [vmem:[#allocation2 + $0x768] sm:$0xff]
    %v347 = vld [vmem:[#allocation2 + $0x770] sm:$0xff]
    %v348 = vld [vmem:[#allocation2 + $0x778] sm:$0xff]
    %v349 = vld [vmem:[#allocation2 + $0x780] sm:$0xff]
    %v350 = vld [vmem:[#allocation2 + $0x788] sm:$0xff]
    %v351 = vld [vmem:[#allocation2 + $0x790] sm:$0xff]
    %v352 = vld [vmem:[#allocation2 + $0x798] sm:$0xff]
    %v353 = vld [vmem:[#allocation2 + $0x7a0] sm:$0xff]
    %v354 = vld [vmem:[#allocation2 + $0x7a8] sm:$0xff]
    %v355 = vld [vmem:[#allocation2 + $0x7b0] sm:$0xff]
    %v356 = vld [vmem:[#allocation2 + $0x7b8] sm:$0xff]
    %v357 = vld [vmem:[#allocation2 + $0x7c0] sm:$0xff]
    %v358 = vld [vmem:[#allocation2 + $0x7c8] sm:$0xff]
    %v359 = vld [vmem:[#allocation2 + $0x7d0] sm:$0xff]
    %v360 = vld [vmem:[#allocation2 + $0x7d8] sm:$0xff]
    %v361 = vld [vmem:[#allocation2 + $0x7e0] sm:$0xff]
    %v362 = vld [vmem:[#allocation2 + $0x7e8] sm:$0xff]
    %v363 = vld [vmem:[#allocation2 + $0x7f0] sm:$0xff]
    %v364 = vld [vmem:[#allocation2 + $0x7f8] sm:$0xff]
    %v365 = vld [vmem:[#allocation2 + $0x800] sm:$0xff]
    %v366 = vld [vmem:[#allocation2 + $0x808] sm:$0xff]
    %v367 = vld [vmem:[#allocation2 + $0x810] sm:$0xff]
    %v368 = vld [vmem:[#allocation2 + $0x818] sm:$0xff]
    %v369 = vld [vmem:[#allocation2 + $0x820] sm:$0xff]
    %v370 = vld [vmem:[#allocation2 + $0x828] sm:$0xff]
    %v371 = vld [vmem:[#allocation2 + $0x830] sm:$0xff]
    %v372 = vld [vmem:[#allocation2 + $0x838] sm:$0xff]
    %v373 = vld [vmem:[#allocation2 + $0x840] sm:$0xff]
    %v374 = vld [vmem:[#allocation2 + $0x848] sm:$0xff]
    %v375 = vld [vmem:[#allocation2 + $0x850] sm:$0xff]
    %v376 = vld [vmem:[#allocation2 + $0x858] sm:$0xff]
    %v377 = vld [vmem:[#allocation2 + $0x860] sm:$0xff]
    %v378 = vld [vmem:[#allocation2 + $0x868] sm:$0xff]
    %v379 = vld [vmem:[#allocation2 + $0x870] sm:$0xff]
    %v380 = vld [vmem:[#allocation2 + $0x878] sm:$0xff]
    %v381 = vld [vmem:[#allocation2 + $0x880] sm:$0xff]
    %v382 = vld [vmem:[#allocation2 + $0x888] sm:$0xff]
    %v383 = vld [vmem:[#allocation2 + $0x890] sm:$0xff]
    %v384 = vld [vmem:[#allocation2 + $0x898] sm:$0xff]
    %v385 = vld [vmem:[#allocation2 + $0x8a0] sm:$0xff]
    %v386 = vld [vmem:[#allocation2 + $0x8a8] sm:$0xff]
    %v387 = vld [vmem:[#allocation2 + $0x8b0] sm:$0xff]
    %v388 = vld [vmem:[#allocation2 + $0x8b8] sm:$0xff]
    %v389 = vld [vmem:[#allocation2 + $0x8c0] sm:$0xff]
    %v390 = vld [vmem:[#allocation2 + $0x8c8] sm:$0xff]
    %v391 = vld [vmem:[#allocation2 + $0x8d0] sm:$0xff]
    %v392 = vld [vmem:[#allocation2 + $0x8d8] sm:$0xff]
    %v393 = vld [vmem:[#allocation2 + $0x8e0] sm:$0xff]
    %v394 = vld [vmem:[#allocation2 + $0x8e8] sm:$0xff]
    %v395 = vld [vmem:[#allocation2 + $0x8f0] sm:$0xff]
    %v396 = vld [vmem:[#allocation2 + $0x8f8] sm:$0xff]
    %v397 = vld [vmem:[#allocation5] sm:$0xf]
    %v399 = vlaneseq
    %v400 = vshrl.u32 %v399, 7
    %v401 = vsub.s32 0, %v400
    %v402 = vrot.slane %v397, %v401
    %v403 = vlaneseq
    %v404 = vshrl.u32 %v403, 7
    %v405 = vsub.s32 1, %v404
    %v406 = vrot.slane %v397, %v405
    %v407 = vlaneseq
    %v408 = vshrl.u32 %v407, 7
    %v409 = vsub.s32 2, %v408
    %v410 = vrot.slane %v397, %v409
    %v411 = vlaneseq
    %v412 = vshrl.u32 %v411, 7
    %v413 = vsub.s32 3, %v412
    %v414 = vrot.slane %v397, %v413
    %v424 = vunpack.c.l.b16 %v104
    %v425 = vunpack.c.h.b16 %v104
    %v426 = vunpack.c.l.b16 %v105
    %v427 = vunpack.c.h.b16 %v105
    %v428 = vunpack.c.l.b16 %v106
    %v429 = vunpack.c.h.b16 %v106
    %v430 = vunpack.c.l.b16 %v107
    %v431 = vunpack.c.h.b16 %v107
    %v432 = vunpack.c.l.b16 %v108
    %v433 = vpack.c.b16 %v424, %v424
    %v434 = vpack.c.b16 %v425, %v425
    %v435 = vpack.c.b16 %v426, %v426
    %v436 = vpack.c.b16 %v427, %v427
    %v437 = vpack.c.b16 %v428, %v428
    %v438 = vpack.c.b16 %v429, %v429
    %v439 = vpack.c.b16 %v430, %v430
    %v440 = vpack.c.b16 %v431, %v431
    %v441 = vpack.c.b16 %v432, %v432
    %v739 = vunpack.c.l.b16 %v109
    %v740 = vunpack.c.h.b16 %v109
    %v741 = vunpack.c.l.b16 %v110
    %v742 = vunpack.c.h.b16 %v110
    %v743 = vunpack.c.l.b16 %v111
    %v744 = vunpack.c.h.b16 %v111
    %v745 = vunpack.c.l.b16 %v112
    %v746 = vunpack.c.h.b16 %v112
    %v747 = vunpack.c.l.b16 %v113
    %v748 = vunpack.c.h.b16 %v113
    %v749 = vunpack.c.l.b16 %v114
    %v750 = vunpack.c.h.b16 %v114
    %v751 = vunpack.c.l.b16 %v115
    %v752 = vunpack.c.h.b16 %v115
    %v753 = vunpack.c.l.b16 %v116
    %v754 = vunpack.c.h.b16 %v116
    %v755 = vunpack.c.l.b16 %v117
    %v756 = vunpack.c.h.b16 %v117
    %v757 = vunpack.c.l.b16 %v118
    %v758 = vunpack.c.h.b16 %v118
    %v759 = vunpack.c.l.b16 %v119
    %v760 = vunpack.c.h.b16 %v119
    %v761 = vunpack.c.l.b16 %v120
    %v762 = vunpack.c.h.b16 %v120
    %v763 = vunpack.c.l.b16 %v121
    %v764 = vunpack.c.h.b16 %v121
    %v765 = vunpack.c.l.b16 %v122
    %v766 = vunpack.c.h.b16 %v122
    %v767 = vunpack.c.l.b16 %v123
    %v768 = vunpack.c.h.b16 %v123
    %v769 = vunpack.c.l.b16 %v124
    %v770 = vunpack.c.h.b16 %v124
    %v771 = vunpack.c.l.b16 %v125
    %v772 = vunpack.c.h.b16 %v125
    %v773 = vunpack.c.l.b16 %v126
    %v774 = vunpack.c.h.b16 %v126
    %v775 = vunpack.c.l.b16 %v127
    %v776 = vunpack.c.h.b16 %v127
    %v777 = vunpack.c.l.b16 %v128
    %v778 = vunpack.c.h.b16 %v128
    %v779 = vunpack.c.l.b16 %v129
    %v780 = vunpack.c.h.b16 %v129
    %v781 = vunpack.c.l.b16 %v130
    %v782 = vunpack.c.h.b16 %v130
    %v783 = vunpack.c.l.b16 %v131
    %v784 = vunpack.c.h.b16 %v131
    %v785 = vunpack.c.l.b16 %v132
    %v786 = vunpack.c.h.b16 %v132
    %v787 = vunpack.c.l.b16 %v133
    %v788 = vunpack.c.h.b16 %v133
    %v789 = vunpack.c.l.b16 %v134
    %v790 = vunpack.c.h.b16 %v134
    %v791 = vunpack.c.l.b16 %v135
    %v792 = vunpack.c.h.b16 %v135
    %v793 = vunpack.c.l.b16 %v136
    %v794 = vunpack.c.h.b16 %v136
    %v795 = vunpack.c.l.b16 %v137
    %v796 = vunpack.c.h.b16 %v137
    %v797 = vunpack.c.l.b16 %v138
    %v798 = vunpack.c.h.b16 %v138
    %v799 = vunpack.c.l.b16 %v139
    %v800 = vunpack.c.h.b16 %v139
    %v801 = vunpack.c.l.b16 %v140
    %v802 = vunpack.c.h.b16 %v140
    %v803 = vunpack.c.l.b16 %v141
    %v804 = vunpack.c.h.b16 %v141
    %v805 = vunpack.c.l.b16 %v142
    %v806 = vunpack.c.h.b16 %v142
    %v807 = vunpack.c.l.b16 %v143
    %v808 = vunpack.c.h.b16 %v143
    %v809 = vunpack.c.l.b16 %v144
    %v810 = vunpack.c.h.b16 %v144
    %v811 = vunpack.c.l.b16 %v145
    %v812 = vunpack.c.h.b16 %v145
    %v813 = vunpack.c.l.b16 %v146
    %v814 = vunpack.c.h.b16 %v146
    %v815 = vunpack.c.l.b16 %v147
    %v816 = vunpack.c.h.b16 %v147
    %v817 = vunpack.c.l.b16 %v148
    %v818 = vunpack.c.h.b16 %v148
    %v819 = vunpack.c.l.b16 %v149
    %v820 = vunpack.c.h.b16 %v149
    %v821 = vunpack.c.l.b16 %v150
    %v822 = vunpack.c.h.b16 %v150
    %v823 = vunpack.c.l.b16 %v151
    %v824 = vunpack.c.h.b16 %v151
    %v825 = vunpack.c.l.b16 %v152
    %v826 = vunpack.c.h.b16 %v152
    %v827 = vunpack.c.l.b16 %v153
    %v828 = vunpack.c.h.b16 %v153
    %v829 = vunpack.c.l.b16 %v154
    %v830 = vunpack.c.h.b16 %v154
    %v831 = vunpack.c.l.b16 %v155
    %v832 = vunpack.c.h.b16 %v155
    %v833 = vunpack.c.l.b16 %v156
    %v834 = vunpack.c.h.b16 %v156
    %v835 = vunpack.c.l.b16 %v157
    %v836 = vunpack.c.h.b16 %v157
    %v837 = vunpack.c.l.b16 %v158
    %v838 = vunpack.c.h.b16 %v158
    %v839 = vunpack.c.l.b16 %v159
    %v840 = vunpack.c.h.b16 %v159
    %v841 = vunpack.c.l.b16 %v160
    %v842 = vunpack.c.h.b16 %v160
    %v843 = vunpack.c.l.b16 %v161
    %v844 = vunpack.c.h.b16 %v161
    %v845 = vunpack.c.l.b16 %v162
    %v846 = vunpack.c.h.b16 %v162
    %v847 = vunpack.c.l.b16 %v163
    %v848 = vunpack.c.h.b16 %v163
    %v849 = vunpack.c.l.b16 %v164
    %v850 = vunpack.c.h.b16 %v164
    %v851 = vunpack.c.l.b16 %v165
    %v852 = vunpack.c.h.b16 %v165
    %v853 = vunpack.c.l.b16 %v166
    %v854 = vunpack.c.h.b16 %v166
    %v855 = vunpack.c.l.b16 %v167
    %v856 = vunpack.c.h.b16 %v167
    %v857 = vunpack.c.l.b16 %v168
    %v858 = vunpack.c.h.b16 %v168
    %v859 = vunpack.c.l.b16 %v169
    %v860 = vunpack.c.h.b16 %v169
    %v861 = vunpack.c.l.b16 %v170
    %v862 = vunpack.c.h.b16 %v170
    %v863 = vunpack.c.l.b16 %v171
    %v864 = vunpack.c.h.b16 %v171
    %v865 = vunpack.c.l.b16 %v172
    %v866 = vunpack.c.h.b16 %v172
    %v867 = vunpack.c.l.b16 %v173
    %v868 = vunpack.c.h.b16 %v173
    %v869 = vunpack.c.l.b16 %v174
    %v870 = vunpack.c.h.b16 %v174
    %v871 = vunpack.c.l.b16 %v175
    %v872 = vunpack.c.h.b16 %v175
    %v873 = vunpack.c.l.b16 %v176
    %v874 = vunpack.c.h.b16 %v176
    %v875 = vunpack.c.l.b16 %v177
    %v876 = vunpack.c.h.b16 %v177
    %v877 = vunpack.c.l.b16 %v178
    %v878 = vunpack.c.h.b16 %v178
    %v879 = vunpack.c.l.b16 %v179
    %v880 = vunpack.c.h.b16 %v179
    %v881 = vunpack.c.l.b16 %v180
    %v882 = vunpack.c.h.b16 %v180
    %v883 = vunpack.c.l.b16 %v181
    %v884 = vunpack.c.h.b16 %v181
    %v885 = vunpack.c.l.b16 %v182
    %v886 = vunpack.c.h.b16 %v182
    %v887 = vunpack.c.l.b16 %v183
    %v888 = vunpack.c.h.b16 %v183
    %v889 = vunpack.c.l.b16 %v184
    %v890 = vunpack.c.h.b16 %v184
    %v891 = vunpack.c.l.b16 %v185
    %v892 = vunpack.c.h.b16 %v185
    %v893 = vunpack.c.l.b16 %v186
    %v894 = vunpack.c.h.b16 %v186
    %v895 = vunpack.c.l.b16 %v187
    %v896 = vunpack.c.h.b16 %v187
    %v897 = vunpack.c.l.b16 %v188
    %v898 = vunpack.c.h.b16 %v188
    %v899 = vunpack.c.l.b16 %v189
    %v900 = vunpack.c.h.b16 %v189
    %v901 = vunpack.c.l.b16 %v190
    %v902 = vunpack.c.h.b16 %v190
    %v903 = vunpack.c.l.b16 %v191
    %v904 = vunpack.c.h.b16 %v191
    %v905 = vunpack.c.l.b16 %v192
    %v906 = vunpack.c.h.b16 %v192
    %v907 = vunpack.c.l.b16 %v193
    %v908 = vunpack.c.h.b16 %v193
    %v909 = vunpack.c.l.b16 %v194
    %v910 = vunpack.c.h.b16 %v194
    %v911 = vunpack.c.l.b16 %v195
    %v912 = vunpack.c.h.b16 %v195
    %v913 = vunpack.c.l.b16 %v196
    %v914 = vunpack.c.h.b16 %v196
    %v915 = vunpack.c.l.b16 %v197
    %v916 = vunpack.c.h.b16 %v197
    %v917 = vunpack.c.l.b16 %v198
    %v918 = vunpack.c.h.b16 %v198
    %v919 = vunpack.c.l.b16 %v199
    %v920 = vunpack.c.h.b16 %v199
    %v921 = vunpack.c.l.b16 %v200
    %v922 = vunpack.c.h.b16 %v200
    %v923 = vunpack.c.l.b16 %v201
    %v924 = vunpack.c.h.b16 %v201
    %v925 = vunpack.c.l.b16 %v202
    %v926 = vunpack.c.h.b16 %v202
    %v927 = vunpack.c.l.b16 %v203
    %v928 = vunpack.c.h.b16 %v203
    %v929 = vunpack.c.l.b16 %v204
    %v930 = vunpack.c.h.b16 %v204
    %v931 = vunpack.c.l.b16 %v205
    %v932 = vunpack.c.h.b16 %v205
    %v933 = vunpack.c.l.b16 %v206
    %v934 = vunpack.c.h.b16 %v206
    %v935 = vunpack.c.l.b16 %v207
    %v936 = vunpack.c.h.b16 %v207
    %v937 = vunpack.c.l.b16 %v208
    %v938 = vunpack.c.h.b16 %v208
    %v939 = vunpack.c.l.b16 %v209
    %v940 = vunpack.c.h.b16 %v209
    %v941 = vunpack.c.l.b16 %v210
    %v942 = vunpack.c.h.b16 %v210
    %v943 = vunpack.c.l.b16 %v211
    %v944 = vunpack.c.h.b16 %v211
    %v945 = vunpack.c.l.b16 %v212
    %v946 = vunpack.c.h.b16 %v212
    %v947 = vunpack.c.l.b16 %v213
    %v948 = vunpack.c.h.b16 %v213
    %v949 = vunpack.c.l.b16 %v214
    %v950 = vunpack.c.h.b16 %v214
    %v951 = vunpack.c.l.b16 %v215
    %v952 = vunpack.c.h.b16 %v215
    %v953 = vunpack.c.l.b16 %v216
    %v954 = vunpack.c.h.b16 %v216
    %v955 = vunpack.c.l.b16 %v217
    %v956 = vunpack.c.h.b16 %v217
    %v957 = vunpack.c.l.b16 %v218
    %v958 = vunpack.c.h.b16 %v218
    %v959 = vunpack.c.l.b16 %v219
    %v960 = vunpack.c.h.b16 %v219
    %v961 = vunpack.c.l.b16 %v220
    %v962 = vunpack.c.h.b16 %v220
    %v963 = vunpack.c.l.b16 %v221
    %v964 = vunpack.c.h.b16 %v221
    %v965 = vunpack.c.l.b16 %v222
    %v966 = vunpack.c.h.b16 %v222
    %v967 = vunpack.c.l.b16 %v223
    %v968 = vunpack.c.h.b16 %v223
    %v969 = vunpack.c.l.b16 %v224
    %v970 = vunpack.c.h.b16 %v224
    %v971 = vunpack.c.l.b16 %v225
    %v972 = vunpack.c.h.b16 %v225
    %v973 = vunpack.c.l.b16 %v226
    %v974 = vunpack.c.h.b16 %v226
    %v975 = vunpack.c.l.b16 %v227
    %v976 = vunpack.c.h.b16 %v227
    %v977 = vunpack.c.l.b16 %v228
    %v978 = vunpack.c.h.b16 %v228
    %v979 = vunpack.c.l.b16 %v229
    %v980 = vunpack.c.h.b16 %v229
    %v981 = vunpack.c.l.b16 %v230
    %v982 = vunpack.c.h.b16 %v230
    %v983 = vunpack.c.l.b16 %v231
    %v984 = vunpack.c.h.b16 %v231
    %v985 = vunpack.c.l.b16 %v232
    %v986 = vunpack.c.h.b16 %v232
    %v987 = vunpack.c.l.b16 %v233
    %v988 = vunpack.c.h.b16 %v233
    %v989 = vunpack.c.l.b16 %v234
    %v990 = vunpack.c.h.b16 %v234
    %v991 = vunpack.c.l.b16 %v235
    %v992 = vunpack.c.h.b16 %v235
    %v993 = vunpack.c.l.b16 %v236
    %v994 = vunpack.c.h.b16 %v236
    %v995 = vunpack.c.l.b16 %v237
    %v996 = vunpack.c.h.b16 %v237
    %v997 = vunpack.c.l.b16 %v238
    %v998 = vunpack.c.h.b16 %v238
    %v999 = vunpack.c.l.b16 %v239
    %v1000 = vunpack.c.h.b16 %v239
    %v1001 = vunpack.c.l.b16 %v240
    %v1002 = vunpack.c.h.b16 %v240
    %v1003 = vunpack.c.l.b16 %v241
    %v1004 = vunpack.c.h.b16 %v241
    %v1005 = vunpack.c.l.b16 %v242
    %v1006 = vunpack.c.h.b16 %v242
    %v1007 = vunpack.c.l.b16 %v243
    %v1008 = vunpack.c.h.b16 %v243
    %v1009 = vunpack.c.l.b16 %v244
    %v1010 = vunpack.c.h.b16 %v244
    %v1011 = vunpack.c.l.b16 %v245
    %v1012 = vunpack.c.h.b16 %v245
    %v1013 = vunpack.c.l.b16 %v246
    %v1014 = vunpack.c.h.b16 %v246
    %v1015 = vunpack.c.l.b16 %v247
    %v1016 = vunpack.c.h.b16 %v247
    %v1017 = vunpack.c.l.b16 %v248
    %v1018 = vunpack.c.h.b16 %v248
    %v1019 = vunpack.c.l.b16 %v249
    %v1020 = vunpack.c.h.b16 %v249
    %v1021 = vunpack.c.l.b16 %v250
    %v1022 = vunpack.c.h.b16 %v250
    %v1023 = vunpack.c.l.b16 %v251
    %v1024 = vunpack.c.h.b16 %v251
    %v1025 = vunpack.c.l.b16 %v252
    %v1026 = vunpack.c.h.b16 %v252
    %v1027 = vunpack.c.l.b16 %v253
    %v1028 = vunpack.c.h.b16 %v253
    %v1029 = vunpack.c.l.b16 %v254
    %v1030 = vunpack.c.h.b16 %v254
    %v1031 = vunpack.c.l.b16 %v255
    %v1032 = vunpack.c.h.b16 %v255
    %v1033 = vunpack.c.l.b16 %v256
    %v1034 = vunpack.c.h.b16 %v256
    %v1035 = vunpack.c.l.b16 %v257
    %v1036 = vunpack.c.h.b16 %v257
    %v1037 = vunpack.c.l.b16 %v258
    %v1038 = vunpack.c.h.b16 %v258
    %v1039 = vunpack.c.l.b16 %v259
    %v1040 = vunpack.c.h.b16 %v259
    %v1041 = vunpack.c.l.b16 %v260
    %v1042 = vunpack.c.h.b16 %v260
    %v1043 = vunpack.c.l.b16 %v261
    %v1044 = vunpack.c.h.b16 %v261
    %v1045 = vunpack.c.l.b16 %v262
    %v1046 = vunpack.c.h.b16 %v262
    %v1047 = vunpack.c.l.b16 %v263
    %v1048 = vunpack.c.h.b16 %v263
    %v1049 = vunpack.c.l.b16 %v264
    %v1050 = vunpack.c.h.b16 %v264
    %v1051 = vunpack.c.l.b16 %v265
    %v1052 = vunpack.c.h.b16 %v265
    %v1053 = vunpack.c.l.b16 %v266
    %v1054 = vunpack.c.h.b16 %v266
    %v1055 = vunpack.c.l.b16 %v267
    %v1056 = vunpack.c.h.b16 %v267
    %v1057 = vunpack.c.l.b16 %v268
    %v1058 = vunpack.c.h.b16 %v268
    %v1059 = vunpack.c.l.b16 %v269
    %v1060 = vunpack.c.h.b16 %v269
    %v1061 = vunpack.c.l.b16 %v270
    %v1062 = vunpack.c.h.b16 %v270
    %v1063 = vunpack.c.l.b16 %v271
    %v1064 = vunpack.c.h.b16 %v271
    %v1065 = vunpack.c.l.b16 %v272
    %v1066 = vunpack.c.h.b16 %v272
    %v1067 = vunpack.c.l.b16 %v273
    %v1068 = vunpack.c.h.b16 %v273
    %v1069 = vunpack.c.l.b16 %v274
    %v1070 = vunpack.c.h.b16 %v274
    %v1071 = vunpack.c.l.b16 %v275
    %v1072 = vunpack.c.h.b16 %v275
    %v1073 = vunpack.c.l.b16 %v276
    %v1074 = vunpack.c.h.b16 %v276
    %v1075 = vunpack.c.l.b16 %v277
    %v1076 = vunpack.c.h.b16 %v277
    %v1077 = vunpack.c.l.b16 %v278
    %v1078 = vunpack.c.h.b16 %v278
    %v1079 = vunpack.c.l.b16 %v279
    %v1080 = vunpack.c.h.b16 %v279
    %v1081 = vunpack.c.l.b16 %v280
    %v1082 = vunpack.c.h.b16 %v280
    %v1083 = vunpack.c.l.b16 %v281
    %v1084 = vunpack.c.h.b16 %v281
    %v1085 = vunpack.c.l.b16 %v282
    %v1086 = vunpack.c.h.b16 %v282
    %v1087 = vunpack.c.l.b16 %v283
    %v1088 = vunpack.c.h.b16 %v283
    %v1089 = vunpack.c.l.b16 %v284
    %v1090 = vunpack.c.h.b16 %v284
    %v1091 = vunpack.c.l.b16 %v285
    %v1092 = vunpack.c.h.b16 %v285
    %v1093 = vunpack.c.l.b16 %v286
    %v1094 = vunpack.c.h.b16 %v286
    %v1095 = vunpack.c.l.b16 %v287
    %v1096 = vunpack.c.h.b16 %v287
    %v1097 = vunpack.c.l.b16 %v288
    %v1098 = vunpack.c.h.b16 %v288
    %v1099 = vunpack.c.l.b16 %v289
    %v1100 = vunpack.c.h.b16 %v289
    %v1101 = vunpack.c.l.b16 %v290
    %v1102 = vunpack.c.h.b16 %v290
    %v1103 = vunpack.c.l.b16 %v291
    %v1104 = vunpack.c.h.b16 %v291
    %v1105 = vunpack.c.l.b16 %v292
    %v1106 = vunpack.c.h.b16 %v292
    %v1107 = vunpack.c.l.b16 %v293
    %v1108 = vunpack.c.h.b16 %v293
    %v1109 = vunpack.c.l.b16 %v294
    %v1110 = vunpack.c.h.b16 %v294
    %v1111 = vunpack.c.l.b16 %v295
    %v1112 = vunpack.c.h.b16 %v295
    %v1113 = vunpack.c.l.b16 %v296
    %v1114 = vunpack.c.h.b16 %v296
    %v1115 = vunpack.c.l.b16 %v297
    %v1116 = vunpack.c.h.b16 %v297
    %v1117 = vunpack.c.l.b16 %v298
    %v1118 = vunpack.c.h.b16 %v298
    %v1119 = vunpack.c.l.b16 %v299
    %v1120 = vunpack.c.h.b16 %v299
    %v1121 = vunpack.c.l.b16 %v300
    %v1122 = vunpack.c.h.b16 %v300
    %v1123 = vunpack.c.l.b16 %v301
    %v1124 = vunpack.c.h.b16 %v301
    %v1125 = vunpack.c.l.b16 %v302
    %v1126 = vunpack.c.h.b16 %v302
    %v1127 = vunpack.c.l.b16 %v303
    %v1128 = vunpack.c.h.b16 %v303
    %v1129 = vunpack.c.l.b16 %v304
    %v1130 = vunpack.c.h.b16 %v304
    %v1131 = vunpack.c.l.b16 %v305
    %v1132 = vunpack.c.h.b16 %v305
    %v1133 = vunpack.c.l.b16 %v306
    %v1134 = vunpack.c.h.b16 %v306
    %v1135 = vunpack.c.l.b16 %v307
    %v1136 = vunpack.c.h.b16 %v307
    %v1137 = vunpack.c.l.b16 %v308
    %v1138 = vunpack.c.h.b16 %v308
    %v1139 = vunpack.c.l.b16 %v309
    %v1140 = vunpack.c.h.b16 %v309
    %v1141 = vunpack.c.l.b16 %v310
    %v1142 = vunpack.c.h.b16 %v310
    %v1143 = vunpack.c.l.b16 %v311
    %v1144 = vunpack.c.h.b16 %v311
    %v1145 = vunpack.c.l.b16 %v312
    %v1146 = vunpack.c.h.b16 %v312
    %v1147 = vunpack.c.l.b16 %v313
    %v1148 = vunpack.c.h.b16 %v313
    %v1149 = vunpack.c.l.b16 %v314
    %v1150 = vunpack.c.h.b16 %v314
    %v1151 = vunpack.c.l.b16 %v315
    %v1152 = vunpack.c.h.b16 %v315
    %v1153 = vunpack.c.l.b16 %v316
    %v1154 = vunpack.c.h.b16 %v316
    %v1155 = vunpack.c.l.b16 %v317
    %v1156 = vunpack.c.h.b16 %v317
    %v1157 = vunpack.c.l.b16 %v318
    %v1158 = vunpack.c.h.b16 %v318
    %v1159 = vunpack.c.l.b16 %v319
    %v1160 = vunpack.c.h.b16 %v319
    %v1161 = vunpack.c.l.b16 %v320
    %v1162 = vunpack.c.h.b16 %v320
    %v1163 = vunpack.c.l.b16 %v321
    %v1164 = vunpack.c.h.b16 %v321
    %v1165 = vunpack.c.l.b16 %v322
    %v1166 = vunpack.c.h.b16 %v322
    %v1167 = vunpack.c.l.b16 %v323
    %v1168 = vunpack.c.h.b16 %v323
    %v1169 = vunpack.c.l.b16 %v324
    %v1170 = vunpack.c.h.b16 %v324
    %v1171 = vunpack.c.l.b16 %v325
    %v1172 = vunpack.c.h.b16 %v325
    %v1173 = vunpack.c.l.b16 %v326
    %v1174 = vunpack.c.h.b16 %v326
    %v1175 = vunpack.c.l.b16 %v327
    %v1176 = vunpack.c.h.b16 %v327
    %v1177 = vunpack.c.l.b16 %v328
    %v1178 = vunpack.c.h.b16 %v328
    %v1179 = vunpack.c.l.b16 %v329
    %v1180 = vunpack.c.h.b16 %v329
    %v1181 = vunpack.c.l.b16 %v330
    %v1182 = vunpack.c.h.b16 %v330
    %v1183 = vunpack.c.l.b16 %v331
    %v1184 = vunpack.c.h.b16 %v331
    %v1185 = vunpack.c.l.b16 %v332
    %v1186 = vunpack.c.h.b16 %v332
    %v1187 = vunpack.c.l.b16 %v333
    %v1188 = vunpack.c.h.b16 %v333
    %v1189 = vunpack.c.l.b16 %v334
    %v1190 = vunpack.c.h.b16 %v334
    %v1191 = vunpack.c.l.b16 %v335
    %v1192 = vunpack.c.h.b16 %v335
    %v1193 = vunpack.c.l.b16 %v336
    %v1194 = vunpack.c.h.b16 %v336
    %v1195 = vunpack.c.l.b16 %v337
    %v1196 = vunpack.c.h.b16 %v337
    %v1197 = vunpack.c.l.b16 %v338
    %v1198 = vunpack.c.h.b16 %v338
    %v1199 = vunpack.c.l.b16 %v339
    %v1200 = vunpack.c.h.b16 %v339
    %v1201 = vunpack.c.l.b16 %v340
    %v1202 = vunpack.c.h.b16 %v340
    %v1203 = vunpack.c.l.b16 %v341
    %v1204 = vunpack.c.h.b16 %v341
    %v1205 = vunpack.c.l.b16 %v342
    %v1206 = vunpack.c.h.b16 %v342
    %v1207 = vunpack.c.l.b16 %v343
    %v1208 = vunpack.c.h.b16 %v343
    %v1209 = vunpack.c.l.b16 %v344
    %v1210 = vunpack.c.h.b16 %v344
    %v1211 = vunpack.c.l.b16 %v345
    %v1212 = vunpack.c.h.b16 %v345
    %v1213 = vunpack.c.l.b16 %v346
    %v1214 = vunpack.c.h.b16 %v346
    %v1215 = vunpack.c.l.b16 %v347
    %v1216 = vunpack.c.h.b16 %v347
    %v1217 = vunpack.c.l.b16 %v348
    %v1218 = vunpack.c.h.b16 %v348
    %v1219 = vunpack.c.l.b16 %v349
    %v1220 = vunpack.c.h.b16 %v349
    %v1221 = vunpack.c.l.b16 %v350
    %v1222 = vunpack.c.h.b16 %v350
    %v1223 = vunpack.c.l.b16 %v351
    %v1224 = vunpack.c.h.b16 %v351
    %v1225 = vunpack.c.l.b16 %v352
    %v1226 = vunpack.c.h.b16 %v352
    %v1227 = vunpack.c.l.b16 %v353
    %v1228 = vunpack.c.h.b16 %v353
    %v1229 = vunpack.c.l.b16 %v354
    %v1230 = vunpack.c.h.b16 %v354
    %v1231 = vunpack.c.l.b16 %v355
    %v1232 = vunpack.c.h.b16 %v355
    %v1233 = vunpack.c.l.b16 %v356
    %v1234 = vunpack.c.h.b16 %v356
    %v1235 = vunpack.c.l.b16 %v357
    %v1236 = vunpack.c.h.b16 %v357
    %v1237 = vunpack.c.l.b16 %v358
    %v1238 = vunpack.c.h.b16 %v358
    %v1239 = vunpack.c.l.b16 %v359
    %v1240 = vunpack.c.h.b16 %v359
    %v1241 = vunpack.c.l.b16 %v360
    %v1242 = vunpack.c.h.b16 %v360
    %v1243 = vunpack.c.l.b16 %v361
    %v1244 = vunpack.c.h.b16 %v361
    %v1245 = vunpack.c.l.b16 %v362
    %v1246 = vunpack.c.h.b16 %v362
    %v1247 = vunpack.c.l.b16 %v363
    %v1248 = vunpack.c.h.b16 %v363
    %v1249 = vunpack.c.l.b16 %v364
    %v1250 = vunpack.c.h.b16 %v364
    %v1251 = vunpack.c.l.b16 %v365
    %v1252 = vunpack.c.h.b16 %v365
    %v1253 = vunpack.c.l.b16 %v366
    %v1254 = vunpack.c.h.b16 %v366
    %v1255 = vunpack.c.l.b16 %v367
    %v1256 = vunpack.c.h.b16 %v367
    %v1257 = vunpack.c.l.b16 %v368
    %v1258 = vunpack.c.h.b16 %v368
    %v1259 = vunpack.c.l.b16 %v369
    %v1260 = vunpack.c.h.b16 %v369
    %v1261 = vunpack.c.l.b16 %v370
    %v1262 = vunpack.c.h.b16 %v370
    %v1263 = vunpack.c.l.b16 %v371
    %v1264 = vunpack.c.h.b16 %v371
    %v1265 = vunpack.c.l.b16 %v372
    %v1266 = vunpack.c.h.b16 %v372
    %v1267 = vunpack.c.l.b16 %v373
    %v1268 = vunpack.c.h.b16 %v373
    %v1269 = vunpack.c.l.b16 %v374
    %v1270 = vunpack.c.h.b16 %v374
    %v1271 = vunpack.c.l.b16 %v375
    %v1272 = vunpack.c.h.b16 %v375
    %v1273 = vunpack.c.l.b16 %v376
    %v1274 = vunpack.c.h.b16 %v376
    %v1275 = vunpack.c.l.b16 %v377
    %v1276 = vunpack.c.h.b16 %v377
    %v1277 = vunpack.c.l.b16 %v378
    %v1278 = vunpack.c.h.b16 %v378
    %v1279 = vunpack.c.l.b16 %v379
    %v1280 = vunpack.c.h.b16 %v379
    %v1281 = vunpack.c.l.b16 %v380
    %v1282 = vunpack.c.h.b16 %v380
    %v1283 = vunpack.c.l.b16 %v381
    %v1284 = vunpack.c.h.b16 %v381
    %v1285 = vunpack.c.l.b16 %v382
    %v1286 = vunpack.c.h.b16 %v382
    %v1287 = vunpack.c.l.b16 %v383
    %v1288 = vunpack.c.h.b16 %v383
    %v1289 = vunpack.c.l.b16 %v384
    %v1290 = vunpack.c.h.b16 %v384
    %v1291 = vunpack.c.l.b16 %v385
    %v1292 = vunpack.c.h.b16 %v385
    %v1293 = vunpack.c.l.b16 %v386
    %v1294 = vunpack.c.h.b16 %v386
    %v1295 = vunpack.c.l.b16 %v387
    %v1296 = vunpack.c.h.b16 %v387
    %v1297 = vunpack.c.l.b16 %v388
    %v1298 = vunpack.c.h.b16 %v388
    %v1299 = vunpack.c.l.b16 %v389
    %v1300 = vunpack.c.h.b16 %v389
    %v1301 = vunpack.c.l.b16 %v390
    %v1302 = vunpack.c.h.b16 %v390
    %v1303 = vunpack.c.l.b16 %v391
    %v1304 = vunpack.c.h.b16 %v391
    %v1305 = vunpack.c.l.b16 %v392
    %v1306 = vunpack.c.h.b16 %v392
    %v1307 = vunpack.c.l.b16 %v393
    %v1308 = vunpack.c.h.b16 %v393
    %v1309 = vunpack.c.l.b16 %v394
    %v1310 = vunpack.c.h.b16 %v394
    %v1311 = vunpack.c.l.b16 %v395
    %v1312 = vunpack.c.h.b16 %v395
    %v1313 = vunpack.c.l.b16 %v396
    %v1314 = vunpack.c.h.b16 %v396
    %v1315 = vpack.c.b16 %v743, %v739
    %v1316 = vpack.c.b16 %v744, %v740
    %v1317 = vpack.c.b16 %v745, %v741
    %v1318 = vpack.c.b16 %v746, %v742
    %v1319 = vpack.c.b16 %v751, %v747
    %v1320 = vpack.c.b16 %v752, %v748
    %v1321 = vpack.c.b16 %v753, %v749
    %v1322 = vpack.c.b16 %v754, %v750
    %v1323 = vpack.c.b16 %v759, %v755
    %v1324 = vpack.c.b16 %v760, %v756
    %v1325 = vpack.c.b16 %v761, %v757
    %v1326 = vpack.c.b16 %v762, %v758
    %v1327 = vpack.c.b16 %v767, %v763
    %v1328 = vpack.c.b16 %v768, %v764
    %v1329 = vpack.c.b16 %v769, %v765
    %v1330 = vpack.c.b16 %v770, %v766
    %v1331 = vpack.c.b16 %v775, %v771
    %v1332 = vpack.c.b16 %v776, %v772
    %v1333 = vpack.c.b16 %v777, %v773
    %v1334 = vpack.c.b16 %v778, %v774
    %v1335 = vpack.c.b16 %v783, %v779
    %v1336 = vpack.c.b16 %v784, %v780
    %v1337 = vpack.c.b16 %v785, %v781
    %v1338 = vpack.c.b16 %v786, %v782
    %v1339 = vpack.c.b16 %v791, %v787
    %v1340 = vpack.c.b16 %v792, %v788
    %v1341 = vpack.c.b16 %v793, %v789
    %v1342 = vpack.c.b16 %v794, %v790
    %v1343 = vpack.c.b16 %v799, %v795
    %v1344 = vpack.c.b16 %v800, %v796
    %v1345 = vpack.c.b16 %v801, %v797
    %v1346 = vpack.c.b16 %v802, %v798
    %v1347 = vpack.c.b16 %v807, %v803
    %v1348 = vpack.c.b16 %v808, %v804
    %v1349 = vpack.c.b16 %v809, %v805
    %v1350 = vpack.c.b16 %v810, %v806
    %v1351 = vpack.c.b16 %v815, %v811
    %v1352 = vpack.c.b16 %v816, %v812
    %v1353 = vpack.c.b16 %v817, %v813
    %v1354 = vpack.c.b16 %v818, %v814
    %v1355 = vpack.c.b16 %v823, %v819
    %v1356 = vpack.c.b16 %v824, %v820
    %v1357 = vpack.c.b16 %v825, %v821
    %v1358 = vpack.c.b16 %v826, %v822
    %v1359 = vpack.c.b16 %v831, %v827
    %v1360 = vpack.c.b16 %v832, %v828
    %v1361 = vpack.c.b16 %v833, %v829
    %v1362 = vpack.c.b16 %v834, %v830
    %v1363 = vpack.c.b16 %v839, %v835
    %v1364 = vpack.c.b16 %v840, %v836
    %v1365 = vpack.c.b16 %v841, %v837
    %v1366 = vpack.c.b16 %v842, %v838
    %v1367 = vpack.c.b16 %v847, %v843
    %v1368 = vpack.c.b16 %v848, %v844
    %v1369 = vpack.c.b16 %v849, %v845
    %v1370 = vpack.c.b16 %v850, %v846
    %v1371 = vpack.c.b16 %v855, %v851
    %v1372 = vpack.c.b16 %v856, %v852
    %v1373 = vpack.c.b16 %v857, %v853
    %v1374 = vpack.c.b16 %v858, %v854
    %v1375 = vpack.c.b16 %v863, %v859
    %v1376 = vpack.c.b16 %v864, %v860
    %v1377 = vpack.c.b16 %v865, %v861
    %v1378 = vpack.c.b16 %v866, %v862
    %v1379 = vpack.c.b16 %v871, %v867
    %v1380 = vpack.c.b16 %v872, %v868
    %v1381 = vpack.c.b16 %v873, %v869
    %v1382 = vpack.c.b16 %v874, %v870
    %v1383 = vpack.c.b16 %v879, %v875
    %v1384 = vpack.c.b16 %v880, %v876
    %v1385 = vpack.c.b16 %v881, %v877
    %v1386 = vpack.c.b16 %v882, %v878
    %v1387 = vpack.c.b16 %v887, %v883
    %v1388 = vpack.c.b16 %v888, %v884
    %v1389 = vpack.c.b16 %v889, %v885
    %v1390 = vpack.c.b16 %v890, %v886
    %v1391 = vpack.c.b16 %v895, %v891
    %v1392 = vpack.c.b16 %v896, %v892
    %v1393 = vpack.c.b16 %v897, %v893
    %v1394 = vpack.c.b16 %v898, %v894
    %v1395 = vpack.c.b16 %v903, %v899
    %v1396 = vpack.c.b16 %v904, %v900
    %v1397 = vpack.c.b16 %v905, %v901
    %v1398 = vpack.c.b16 %v906, %v902
    %v1399 = vpack.c.b16 %v911, %v907
    %v1400 = vpack.c.b16 %v912, %v908
    %v1401 = vpack.c.b16 %v913, %v909
    %v1402 = vpack.c.b16 %v914, %v910
    %v1403 = vpack.c.b16 %v919, %v915
    %v1404 = vpack.c.b16 %v920, %v916
    %v1405 = vpack.c.b16 %v921, %v917
    %v1406 = vpack.c.b16 %v922, %v918
    %v1407 = vpack.c.b16 %v927, %v923
    %v1408 = vpack.c.b16 %v928, %v924
    %v1409 = vpack.c.b16 %v929, %v925
    %v1410 = vpack.c.b16 %v930, %v926
    %v1411 = vpack.c.b16 %v935, %v931
    %v1412 = vpack.c.b16 %v936, %v932
    %v1413 = vpack.c.b16 %v937, %v933
    %v1414 = vpack.c.b16 %v938, %v934
    %v1415 = vpack.c.b16 %v943, %v939
    %v1416 = vpack.c.b16 %v944, %v940
    %v1417 = vpack.c.b16 %v945, %v941
    %v1418 = vpack.c.b16 %v946, %v942
    %v1419 = vpack.c.b16 %v951, %v947
    %v1420 = vpack.c.b16 %v952, %v948
    %v1421 = vpack.c.b16 %v953, %v949
    %v1422 = vpack.c.b16 %v954, %v950
    %v1423 = vpack.c.b16 %v959, %v955
    %v1424 = vpack.c.b16 %v960, %v956
    %v1425 = vpack.c.b16 %v961, %v957
    %v1426 = vpack.c.b16 %v962, %v958
    %v1427 = vpack.c.b16 %v967, %v963
    %v1428 = vpack.c.b16 %v968, %v964
    %v1429 = vpack.c.b16 %v969, %v965
    %v1430 = vpack.c.b16 %v970, %v966
    %v1431 = vpack.c.b16 %v975, %v971
    %v1432 = vpack.c.b16 %v976, %v972
    %v1433 = vpack.c.b16 %v977, %v973
    %v1434 = vpack.c.b16 %v978, %v974
    %v1435 = vpack.c.b16 %v983, %v979
    %v1436 = vpack.c.b16 %v984, %v980
    %v1437 = vpack.c.b16 %v985, %v981
    %v1438 = vpack.c.b16 %v986, %v982
    %v1439 = vpack.c.b16 %v991, %v987
    %v1440 = vpack.c.b16 %v992, %v988
    %v1441 = vpack.c.b16 %v993, %v989
    %v1442 = vpack.c.b16 %v994, %v990
    %v1443 = vpack.c.b16 %v999, %v995
    %v1444 = vpack.c.b16 %v1000, %v996
    %v1445 = vpack.c.b16 %v1001, %v997
    %v1446 = vpack.c.b16 %v1002, %v998
    %v1447 = vpack.c.b16 %v1007, %v1003
    %v1448 = vpack.c.b16 %v1008, %v1004
    %v1449 = vpack.c.b16 %v1009, %v1005
    %v1450 = vpack.c.b16 %v1010, %v1006
    %v1451 = vpack.c.b16 %v1015, %v1011
    %v1452 = vpack.c.b16 %v1016, %v1012
    %v1453 = vpack.c.b16 %v1017, %v1013
    %v1454 = vpack.c.b16 %v1018, %v1014
    %v1455 = vpack.c.b16 %v1023, %v1019
    %v1456 = vpack.c.b16 %v1024, %v1020
    %v1457 = vpack.c.b16 %v1025, %v1021
    %v1458 = vpack.c.b16 %v1026, %v1022
    %v1459 = vpack.c.b16 %v1031, %v1027
    %v1460 = vpack.c.b16 %v1032, %v1028
    %v1461 = vpack.c.b16 %v1033, %v1029
    %v1462 = vpack.c.b16 %v1034, %v1030
    %v1463 = vpack.c.b16 %v1039, %v1035
    %v1464 = vpack.c.b16 %v1040, %v1036
    %v1465 = vpack.c.b16 %v1041, %v1037
    %v1466 = vpack.c.b16 %v1042, %v1038
    %v1467 = vpack.c.b16 %v1047, %v1043
    %v1468 = vpack.c.b16 %v1048, %v1044
    %v1469 = vpack.c.b16 %v1049, %v1045
    %v1470 = vpack.c.b16 %v1050, %v1046
    %v1471 = vpack.c.b16 %v1055, %v1051
    %v1472 = vpack.c.b16 %v1056, %v1052
    %v1473 = vpack.c.b16 %v1057, %v1053
    %v1474 = vpack.c.b16 %v1058, %v1054
    %v1475 = vpack.c.b16 %v1063, %v1059
    %v1476 = vpack.c.b16 %v1064, %v1060
    %v1477 = vpack.c.b16 %v1065, %v1061
    %v1478 = vpack.c.b16 %v1066, %v1062
    %v1479 = vpack.c.b16 %v1071, %v1067
    %v1480 = vpack.c.b16 %v1072, %v1068
    %v1481 = vpack.c.b16 %v1073, %v1069
    %v1482 = vpack.c.b16 %v1074, %v1070
    %v1483 = vpack.c.b16 %v1079, %v1075
    %v1484 = vpack.c.b16 %v1080, %v1076
    %v1485 = vpack.c.b16 %v1081, %v1077
    %v1486 = vpack.c.b16 %v1082, %v1078
    %v1487 = vpack.c.b16 %v1087, %v1083
    %v1488 = vpack.c.b16 %v1088, %v1084
    %v1489 = vpack.c.b16 %v1089, %v1085
    %v1490 = vpack.c.b16 %v1090, %v1086
    %v1491 = vpack.c.b16 %v1095, %v1091
    %v1492 = vpack.c.b16 %v1096, %v1092
    %v1493 = vpack.c.b16 %v1097, %v1093
    %v1494 = vpack.c.b16 %v1098, %v1094
    %v1495 = vpack.c.b16 %v1103, %v1099
    %v1496 = vpack.c.b16 %v1104, %v1100
    %v1497 = vpack.c.b16 %v1105, %v1101
    %v1498 = vpack.c.b16 %v1106, %v1102
    %v1499 = vpack.c.b16 %v1111, %v1107
    %v1500 = vpack.c.b16 %v1112, %v1108
    %v1501 = vpack.c.b16 %v1113, %v1109
    %v1502 = vpack.c.b16 %v1114, %v1110
    %v1503 = vpack.c.b16 %v1119, %v1115
    %v1504 = vpack.c.b16 %v1120, %v1116
    %v1505 = vpack.c.b16 %v1121, %v1117
    %v1506 = vpack.c.b16 %v1122, %v1118
    %v1507 = vpack.c.b16 %v1127, %v1123
    %v1508 = vpack.c.b16 %v1128, %v1124
    %v1509 = vpack.c.b16 %v1129, %v1125
    %v1510 = vpack.c.b16 %v1130, %v1126
    %v1511 = vpack.c.b16 %v1135, %v1131
    %v1512 = vpack.c.b16 %v1136, %v1132
    %v1513 = vpack.c.b16 %v1137, %v1133
    %v1514 = vpack.c.b16 %v1138, %v1134
    %v1515 = vpack.c.b16 %v1143, %v1139
    %v1516 = vpack.c.b16 %v1144, %v1140
    %v1517 = vpack.c.b16 %v1145, %v1141
    %v1518 = vpack.c.b16 %v1146, %v1142
    %v1519 = vpack.c.b16 %v1151, %v1147
    %v1520 = vpack.c.b16 %v1152, %v1148
    %v1521 = vpack.c.b16 %v1153, %v1149
    %v1522 = vpack.c.b16 %v1154, %v1150
    %v1523 = vpack.c.b16 %v1159, %v1155
    %v1524 = vpack.c.b16 %v1160, %v1156
    %v1525 = vpack.c.b16 %v1161, %v1157
    %v1526 = vpack.c.b16 %v1162, %v1158
    %v1527 = vpack.c.b16 %v1167, %v1163
    %v1528 = vpack.c.b16 %v1168, %v1164
    %v1529 = vpack.c.b16 %v1169, %v1165
    %v1530 = vpack.c.b16 %v1170, %v1166
    %v1531 = vpack.c.b16 %v1175, %v1171
    %v1532 = vpack.c.b16 %v1176, %v1172
    %v1533 = vpack.c.b16 %v1177, %v1173
    %v1534 = vpack.c.b16 %v1178, %v1174
    %v1535 = vpack.c.b16 %v1183, %v1179
    %v1536 = vpack.c.b16 %v1184, %v1180
    %v1537 = vpack.c.b16 %v1185, %v1181
    %v1538 = vpack.c.b16 %v1186, %v1182
    %v1539 = vpack.c.b16 %v1191, %v1187
    %v1540 = vpack.c.b16 %v1192, %v1188
    %v1541 = vpack.c.b16 %v1193, %v1189
    %v1542 = vpack.c.b16 %v1194, %v1190
    %v1543 = vpack.c.b16 %v1199, %v1195
    %v1544 = vpack.c.b16 %v1200, %v1196
    %v1545 = vpack.c.b16 %v1201, %v1197
    %v1546 = vpack.c.b16 %v1202, %v1198
    %v1547 = vpack.c.b16 %v1207, %v1203
    %v1548 = vpack.c.b16 %v1208, %v1204
    %v1549 = vpack.c.b16 %v1209, %v1205
    %v1550 = vpack.c.b16 %v1210, %v1206
    %v1551 = vpack.c.b16 %v1215, %v1211
    %v1552 = vpack.c.b16 %v1216, %v1212
    %v1553 = vpack.c.b16 %v1217, %v1213
    %v1554 = vpack.c.b16 %v1218, %v1214
    %v1555 = vpack.c.b16 %v1223, %v1219
    %v1556 = vpack.c.b16 %v1224, %v1220
    %v1557 = vpack.c.b16 %v1225, %v1221
    %v1558 = vpack.c.b16 %v1226, %v1222
    %v1559 = vpack.c.b16 %v1231, %v1227
    %v1560 = vpack.c.b16 %v1232, %v1228
    %v1561 = vpack.c.b16 %v1233, %v1229
    %v1562 = vpack.c.b16 %v1234, %v1230
    %v1563 = vpack.c.b16 %v1239, %v1235
    %v1564 = vpack.c.b16 %v1240, %v1236
    %v1565 = vpack.c.b16 %v1241, %v1237
    %v1566 = vpack.c.b16 %v1242, %v1238
    %v1567 = vpack.c.b16 %v1247, %v1243
    %v1568 = vpack.c.b16 %v1248, %v1244
    %v1569 = vpack.c.b16 %v1249, %v1245
    %v1570 = vpack.c.b16 %v1250, %v1246
    %v1571 = vpack.c.b16 %v1255, %v1251
    %v1572 = vpack.c.b16 %v1256, %v1252
    %v1573 = vpack.c.b16 %v1257, %v1253
    %v1574 = vpack.c.b16 %v1258, %v1254
    %v1575 = vpack.c.b16 %v1263, %v1259
    %v1576 = vpack.c.b16 %v1264, %v1260
    %v1577 = vpack.c.b16 %v1265, %v1261
    %v1578 = vpack.c.b16 %v1266, %v1262
    %v1579 = vpack.c.b16 %v1271, %v1267
    %v1580 = vpack.c.b16 %v1272, %v1268
    %v1581 = vpack.c.b16 %v1273, %v1269
    %v1582 = vpack.c.b16 %v1274, %v1270
    %v1583 = vpack.c.b16 %v1279, %v1275
    %v1584 = vpack.c.b16 %v1280, %v1276
    %v1585 = vpack.c.b16 %v1281, %v1277
    %v1586 = vpack.c.b16 %v1282, %v1278
    %v1587 = vpack.c.b16 %v1287, %v1283
    %v1588 = vpack.c.b16 %v1288, %v1284
    %v1589 = vpack.c.b16 %v1289, %v1285
    %v1590 = vpack.c.b16 %v1290, %v1286
    %v1591 = vpack.c.b16 %v1295, %v1291
    %v1592 = vpack.c.b16 %v1296, %v1292
    %v1593 = vpack.c.b16 %v1297, %v1293
    %v1594 = vpack.c.b16 %v1298, %v1294
    %v1595 = vpack.c.b16 %v1303, %v1299
    %v1596 = vpack.c.b16 %v1304, %v1300
    %v1597 = vpack.c.b16 %v1305, %v1301
    %v1598 = vpack.c.b16 %v1306, %v1302
    %v1599 = vpack.c.b16 %v1311, %v1307
    %v1600 = vpack.c.b16 %v1312, %v1308
    %v1601 = vpack.c.b16 %v1313, %v1309
    %v1602 = vpack.c.b16 %v1314, %v1310
    %1891 = vmatprep.subr.bf16.mxu0 %v1316
    %1892 = vmatpush1.bf16.msra.mxu0 %v1315
    %1893 = vmatprep.subr.bf16.mxu0 %v1320
    %1894 = vmatpush1.bf16.msra.mxu0 %v1319
    %1895 = vmatprep.subr.bf16.mxu0 %v1324
    %1896 = vmatpush1.bf16.msra.mxu0 %v1323
    %1897 = vmatprep.subr.bf16.mxu0 %v1328
    %1898 = vmatpush1.bf16.msra.mxu0 %v1327
    %1899 = vmatprep.subr.bf16.mxu0 %v1332
    %1900 = vmatpush1.bf16.msra.mxu0 %v1331
    %1901 = vmatprep.subr.bf16.mxu0 %v1336
    %1902 = vmatpush1.bf16.msra.mxu0 %v1335
    %1903 = vmatprep.subr.bf16.mxu0 %v1340
    %1904 = vmatpush1.bf16.msra.mxu0 %v1339
    %1905 = vmatprep.subr.bf16.mxu0 %v1344
    %1906 = vmatpush1.bf16.msra.mxu0 %v1343
    %1907 = vmatprep.subr.bf16.mxu0 %v1348
    %1908 = vmatpush1.bf16.msra.mxu0 %v1347
    %1909 = vmatprep.subr.bf16.mxu0 %v1352
    %1910 = vmatpush1.bf16.msra.mxu0 %v1351
    %1911 = vmatprep.subr.bf16.mxu0 %v1356
    %1912 = vmatpush1.bf16.msra.mxu0 %v1355
    %1913 = vmatprep.subr.bf16.mxu0 %v1360
    %1914 = vmatpush1.bf16.msra.mxu0 %v1359
    %1915 = vmatprep.subr.bf16.mxu0 %v1364
    %1916 = vmatpush1.bf16.msra.mxu0 %v1363
    %1917 = vmatprep.subr.bf16.mxu0 %v1368
    %1918 = vmatpush1.bf16.msra.mxu0 %v1367
    %1919 = vmatprep.subr.bf16.mxu0 %v1372
    %1920 = vmatpush1.bf16.msra.mxu0 %v1371
    %1921 = vmatprep.subr.bf16.mxu0 %v1376
    %1922 = vmatpush1.bf16.msra.mxu0 %v1375
    %1923 = vmatprep.mubr.bf16.mxu0 %v434
    %1924 = vmatmul.mubr.bf16.gmra.mrb[0].mxu0 %v433
    %v1925 = vpop.f32.mrb[0].mxu0
    %v1926 = vadd.f32 %v402, %v1925
    %v1927 = vpop.f32.mrb[0].mxu0
    %v1928 = vadd.f32 %v406, %v1927
    %v1929 = vpop.f32.mrb[0].mxu0
    %v1930 = vpop.f32.mrb[0].mxu0
    %1931 = vdwg.mxu0
    %1932 = vmatprep.subr.bf16.mxu0 %v1380
    %1933 = vmatpush1.bf16.msra.mxu0 %v1379
    %1934 = vmatprep.subr.bf16.mxu0 %v1384
    %1935 = vmatpush1.bf16.msra.mxu0 %v1383
    %1936 = vmatprep.subr.bf16.mxu0 %v1388
    %1937 = vmatpush1.bf16.msra.mxu0 %v1387
    %1938 = vmatprep.subr.bf16.mxu0 %v1392
    %1939 = vmatpush1.bf16.msra.mxu0 %v1391
    %1940 = vmatprep.subr.bf16.mxu0 %v1396
    %1941 = vmatpush1.bf16.msra.mxu0 %v1395
    %1942 = vmatprep.subr.bf16.mxu0 %v1400
    %1943 = vmatpush1.bf16.msra.mxu0 %v1399
    %1944 = vmatprep.subr.bf16.mxu0 %v1404
    %1945 = vmatpush1.bf16.msra.mxu0 %v1403
    %1946 = vmatprep.subr.bf16.mxu0 %v1408
    %1947 = vmatpush1.bf16.msra.mxu0 %v1407
    %1948 = vmatprep.subr.bf16.mxu0 %v1412
    %1949 = vmatpush1.bf16.msra.mxu0 %v1411
    %1950 = vmatprep.subr.bf16.mxu0 %v1416
    %1951 = vmatpush1.bf16.msra.mxu0 %v1415
    %1952 = vmatprep.subr.bf16.mxu0 %v1420
    %1953 = vmatpush1.bf16.msra.mxu0 %v1419
    %1954 = vmatprep.subr.bf16.mxu0 %v1424
    %1955 = vmatpush1.bf16.msra.mxu0 %v1423
    %1956 = vmatprep.subr.bf16.mxu0 %v1428
    %1957 = vmatpush1.bf16.msra.mxu0 %v1427
    %1958 = vmatprep.subr.bf16.mxu0 %v1432
    %1959 = vmatpush1.bf16.msra.mxu0 %v1431
    %1960 = vmatprep.subr.bf16.mxu0 %v1436
    %1961 = vmatpush1.bf16.msra.mxu0 %v1435
    %1962 = vmatprep.subr.bf16.mxu0 %v1440
    %1963 = vmatpush1.bf16.msra.mxu0 %v1439
    %1964 = vmatprep.mubr.bf16.mxu0 %v436
    %1965 = vmatmul.mubr.bf16.gmra.mrb[0].mxu0 %v435
    %v1966 = vpop.f32.mrb[0].mxu0
    %v1967 = vadd.f32 %v1926, %v1966
    %v1968 = vpop.f32.mrb[0].mxu0
    %v1969 = vadd.f32 %v1928, %v1968
    %v1970 = vpop.f32.mrb[0].mxu0
    %v1971 = vpop.f32.mrb[0].mxu0
    %1972 = vdwg.mxu0
    %1973 = vmatprep.subr.bf16.mxu0 %v1444
    %1974 = vmatpush1.bf16.msra.mxu0 %v1443
    %1975 = vmatprep.subr.bf16.mxu0 %v1448
    %1976 = vmatpush1.bf16.msra.mxu0 %v1447
    %1977 = vmatprep.subr.bf16.mxu0 %v1452
    %1978 = vmatpush1.bf16.msra.mxu0 %v1451
    %1979 = vmatprep.subr.bf16.mxu0 %v1456
    %1980 = vmatpush1.bf16.msra.mxu0 %v1455
    %1981 = vmatprep.subr.bf16.mxu0 %v1460
    %1982 = vmatpush1.bf16.msra.mxu0 %v1459
    %1983 = vmatprep.subr.bf16.mxu0 %v1464
    %1984 = vmatpush1.bf16.msra.mxu0 %v1463
    %1985 = vmatprep.subr.bf16.mxu0 %v1468
    %1986 = vmatpush1.bf16.msra.mxu0 %v1467
    %1987 = vmatprep.subr.bf16.mxu0 %v1472
    %1988 = vmatpush1.bf16.msra.mxu0 %v1471
    %1989 = vmatprep.subr.bf16.mxu0 %v1476
    %1990 = vmatpush1.bf16.msra.mxu0 %v1475
    %1991 = vmatprep.subr.bf16.mxu0 %v1480
    %1992 = vmatpush1.bf16.msra.mxu0 %v1479
    %1993 = vmatprep.subr.bf16.mxu0 %v1484
    %1994 = vmatpush1.bf16.msra.mxu0 %v1483
    %1995 = vmatprep.subr.bf16.mxu0 %v1488
    %1996 = vmatpush1.bf16.msra.mxu0 %v1487
    %1997 = vmatprep.subr.bf16.mxu0 %v1492
    %1998 = vmatpush1.bf16.msra.mxu0 %v1491
    %1999 = vmatprep.subr.bf16.mxu0 %v1496
    %2000 = vmatpush1.bf16.msra.mxu0 %v1495
    %2001 = vmatprep.subr.bf16.mxu0 %v1500
    %2002 = vmatpush1.bf16.msra.mxu0 %v1499
    %2003 = vmatprep.subr.bf16.mxu0 %v1504
    %2004 = vmatpush1.bf16.msra.mxu0 %v1503
    %2005 = vmatprep.mubr.bf16.mxu0 %v438
    %2006 = vmatmul.mubr.bf16.gmra.mrb[0].mxu0 %v437
    %v2007 = vpop.f32.mrb[0].mxu0
    %v2008 = vadd.f32 %v1967, %v2007
    %v2009 = vpop.f32.mrb[0].mxu0
    %v2010 = vadd.f32 %v1969, %v2009
    %v2011 = vpop.f32.mrb[0].mxu0
    %v2012 = vpop.f32.mrb[0].mxu0
    %2013 = vdwg.mxu0
    %2014 = vmatprep.subr.bf16.mxu0 %v1508
    %2015 = vmatpush1.bf16.msra.mxu0 %v1507
    %2016 = vmatprep.subr.bf16.mxu0 %v1512
    %2017 = vmatpush1.bf16.msra.mxu0 %v1511
    %2018 = vmatprep.subr.bf16.mxu0 %v1516
    %2019 = vmatpush1.bf16.msra.mxu0 %v1515
    %2020 = vmatprep.subr.bf16.mxu0 %v1520
    %2021 = vmatpush1.bf16.msra.mxu0 %v1519
    %2022 = vmatprep.subr.bf16.mxu0 %v1524
    %2023 = vmatpush1.bf16.msra.mxu0 %v1523
    %2024 = vmatprep.subr.bf16.mxu0 %v1528
    %2025 = vmatpush1.bf16.msra.mxu0 %v1527
    %2026 = vmatprep.subr.bf16.mxu0 %v1532
    %2027 = vmatpush1.bf16.msra.mxu0 %v1531
    %2028 = vmatprep.subr.bf16.mxu0 %v1536
    %2029 = vmatpush1.bf16.msra.mxu0 %v1535
    %2030 = vmatprep.subr.bf16.mxu0 %v1540
    %2031 = vmatpush1.bf16.msra.mxu0 %v1539
    %2032 = vmatprep.subr.bf16.mxu0 %v1544
    %2033 = vmatpush1.bf16.msra.mxu0 %v1543
    %2034 = vmatprep.subr.bf16.mxu0 %v1548
    %2035 = vmatpush1.bf16.msra.mxu0 %v1547
    %2036 = vmatprep.subr.bf16.mxu0 %v1552
    %2037 = vmatpush1.bf16.msra.mxu0 %v1551
    %2038 = vmatprep.subr.bf16.mxu0 %v1556
    %2039 = vmatpush1.bf16.msra.mxu0 %v1555
    %2040 = vmatprep.subr.bf16.mxu0 %v1560
    %2041 = vmatpush1.bf16.msra.mxu0 %v1559
    %2042 = vmatprep.subr.bf16.mxu0 %v1564
    %2043 = vmatpush1.bf16.msra.mxu0 %v1563
    %2044 = vmatprep.subr.bf16.mxu0 %v1568
    %2045 = vmatpush1.bf16.msra.mxu0 %v1567
    %2046 = vmatprep.mubr.bf16.mxu0 %v440
    %2047 = vmatmul.mubr.bf16.gmra.mrb[0].mxu0 %v439
    %v2048 = vpop.f32.mrb[0].mxu0
    %v2049 = vadd.f32 %v2008, %v2048
    %v2050 = vpop.f32.mrb[0].mxu0
    %v2051 = vadd.f32 %v2010, %v2050
    %v2052 = vpop.f32.mrb[0].mxu0
    %v2053 = vpop.f32.mrb[0].mxu0
    %2054 = vdwg.mxu0
    %2055 = vmatprep.subr.bf16.mxu0 %v1572
    %2056 = vmatpush1.bf16.msra.mxu0 %v1571
    %2057 = vmatprep.subr.bf16.mxu0 %v1576
    %2058 = vmatpush1.bf16.msra.mxu0 %v1575
    %2059 = vmatprep.subr.bf16.mxu0 %v1580
    %2060 = vmatpush1.bf16.msra.mxu0 %v1579
    %2061 = vmatprep.subr.bf16.mxu0 %v1584
    %2062 = vmatpush1.bf16.msra.mxu0 %v1583
    %2063 = vmatprep.subr.bf16.mxu0 %v1588
    %2064 = vmatpush1.bf16.msra.mxu0 %v1587
    %2065 = vmatprep.subr.bf16.mxu0 %v1592
    %2066 = vmatpush1.bf16.msra.mxu0 %v1591
    %2067 = vmatprep.subr.bf16.mxu0 %v1596
    %2068 = vmatpush1.bf16.msra.mxu0 %v1595
    %2069 = vmatprep.subr.bf16.mxu0 %v1600
    %2070 = vmatpush1.bf16.msra.mxu0 %v1599
    %2071 = vmatprep.subr.bf16.mxu0 0
    %2072 = vmatpush1.bf16.msra.mxu0 0
    %2073 = vmatprep.subr.bf16.mxu0 0
    %2074 = vmatpush1.bf16.msra.mxu0 0
    %2075 = vmatprep.subr.bf16.mxu0 0
    %2076 = vmatpush1.bf16.msra.mxu0 0
    %2077 = vmatprep.subr.bf16.mxu0 0
    %2078 = vmatpush1.bf16.msra.mxu0 0
    %2079 = vmatprep.subr.bf16.mxu0 0
    %2080 = vmatpush1.bf16.msra.mxu0 0
    %2081 = vmatprep.subr.bf16.mxu0 0
    %2082 = vmatpush1.bf16.msra.mxu0 0
    %2083 = vmatprep.subr.bf16.mxu0 0
    %2084 = vmatpush1.bf16.msra.mxu0 0
    %2085 = vmatprep.subr.bf16.mxu0 0
    %2086 = vmatpush1.bf16.msra.mxu0 0
    %2087 = vmatprep.mubr.bf16.mxu0 0
    %2088 = vmatmul.mubr.bf16.gmra.mrb[0].mxu0 %v441
    %v2089 = vpop.f32.mrb[0].mxu0
    %v2090 = vadd.f32 %v2049, %v2089
    %v2091 = vpop.f32.mrb[0].mxu0
    %v2092 = vadd.f32 %v2051, %v2091
    %v2093 = vpop.f32.mrb[0].mxu0
    %v2094 = vpop.f32.mrb[0].mxu0
    %2095 = vdwg.mxu0
    %2096 = vmatprep.subr.bf16.mxu0 %v1318
    %2097 = vmatpush1.bf16.msra.mxu0 %v1317
    %2098 = vmatprep.subr.bf16.mxu0 %v1322
    %2099 = vmatpush1.bf16.msra.mxu0 %v1321
    %2100 = vmatprep.subr.bf16.mxu0 %v1326
    %2101 = vmatpush1.bf16.msra.mxu0 %v1325
    %2102 = vmatprep.subr.bf16.mxu0 %v1330
    %2103 = vmatpush1.bf16.msra.mxu0 %v1329
    %2104 = vmatprep.subr.bf16.mxu0 %v1334
    %2105 = vmatpush1.bf16.msra.mxu0 %v1333
    %2106 = vmatprep.subr.bf16.mxu0 %v1338
    %2107 = vmatpush1.bf16.msra.mxu0 %v1337
    %2108 = vmatprep.subr.bf16.mxu0 %v1342
    %2109 = vmatpush1.bf16.msra.mxu0 %v1341
    %2110 = vmatprep.subr.bf16.mxu0 %v1346
    %2111 = vmatpush1.bf16.msra.mxu0 %v1345
    %2112 = vmatprep.subr.bf16.mxu0 %v1350
    %2113 = vmatpush1.bf16.msra.mxu0 %v1349
    %2114 = vmatprep.subr.bf16.mxu0 %v1354
    %2115 = vmatpush1.bf16.msra.mxu0 %v1353
    %2116 = vmatprep.subr.bf16.mxu0 %v1358
    %2117 = vmatpush1.bf16.msra.mxu0 %v1357
    %2118 = vmatprep.subr.bf16.mxu0 %v1362
    %2119 = vmatpush1.bf16.msra.mxu0 %v1361
    %2120 = vmatprep.subr.bf16.mxu0 %v1366
    %2121 = vmatpush1.bf16.msra.mxu0 %v1365
    %2122 = vmatprep.subr.bf16.mxu0 %v1370
    %2123 = vmatpush1.bf16.msra.mxu0 %v1369
    %2124 = vmatprep.subr.bf16.mxu0 %v1374
    %2125 = vmatpush1.bf16.msra.mxu0 %v1373
    %2126 = vmatprep.subr.bf16.mxu0 %v1378
    %2127 = vmatpush1.bf16.msra.mxu0 %v1377
    %2128 = vmatprep.mubr.bf16.mxu0 %v434
    %2129 = vmatmul.mubr.bf16.gmra.mrb[0].mxu0 %v433
    %v2130 = vpop.f32.mrb[0].mxu0
    %v2131 = vadd.f32 %v410, %v2130
    %v2132 = vpop.f32.mrb[0].mxu0
    %v2133 = vadd.f32 %v414, %v2132
    %v2134 = vpop.f32.mrb[0].mxu0
    %v2135 = vpop.f32.mrb[0].mxu0
    %2136 = vdwg.mxu0
    %2137 = vmatprep.subr.bf16.mxu0 %v1382
    %2138 = vmatpush1.bf16.msra.mxu0 %v1381
    %2139 = vmatprep.subr.bf16.mxu0 %v1386
    %2140 = vmatpush1.bf16.msra.mxu0 %v1385
    %2141 = vmatprep.subr.bf16.mxu0 %v1390
    %2142 = vmatpush1.bf16.msra.mxu0 %v1389
    %2143 = vmatprep.subr.bf16.mxu0 %v1394
    %2144 = vmatpush1.bf16.msra.mxu0 %v1393
    %2145 = vmatprep.subr.bf16.mxu0 %v1398
    %2146 = vmatpush1.bf16.msra.mxu0 %v1397
    %2147 = vmatprep.subr.bf16.mxu0 %v1402
    %2148 = vmatpush1.bf16.msra.mxu0 %v1401
    %2149 = vmatprep.subr.bf16.mxu0 %v1406
    %2150 = vmatpush1.bf16.msra.mxu0 %v1405
    %2151 = vmatprep.subr.bf16.mxu0 %v1410
    %2152 = vmatpush1.bf16.msra.mxu0 %v1409
    %2153 = vmatprep.subr.bf16.mxu0 %v1414
    %2154 = vmatpush1.bf16.msra.mxu0 %v1413
    %2155 = vmatprep.subr.bf16.mxu0 %v1418
    %2156 = vmatpush1.bf16.msra.mxu0 %v1417
    %2157 = vmatprep.subr.bf16.mxu0 %v1422
    %2158 = vmatpush1.bf16.msra.mxu0 %v1421
    %2159 = vmatprep.subr.bf16.mxu0 %v1426
    %2160 = vmatpush1.bf16.msra.mxu0 %v1425
    %2161 = vmatprep.subr.bf16.mxu0 %v1430
    %2162 = vmatpush1.bf16.msra.mxu0 %v1429
    %2163 = vmatprep.subr.bf16.mxu0 %v1434
    %2164 = vmatpush1.bf16.msra.mxu0 %v1433
    %2165 = vmatprep.subr.bf16.mxu0 %v1438
    %2166 = vmatpush1.bf16.msra.mxu0 %v1437
    %2167 = vmatprep.subr.bf16.mxu0 %v1442
    %2168 = vmatpush1.bf16.msra.mxu0 %v1441
    %2169 = vmatprep.mubr.bf16.mxu0 %v436
    %2170 = vmatmul.mubr.bf16.gmra.mrb[0].mxu0 %v435
    %v2171 = vpop.f32.mrb[0].mxu0
    %v2172 = vadd.f32 %v2131, %v2171
    %v2173 = vpop.f32.mrb[0].mxu0
    %v2174 = vadd.f32 %v2133, %v2173
    %v2175 = vpop.f32.mrb[0].mxu0
    %v2176 = vpop.f32.mrb[0].mxu0
    %2177 = vdwg.mxu0
    %2178 = vmatprep.subr.bf16.mxu0 %v1446
    %2179 = vmatpush1.bf16.msra.mxu0 %v1445
    %2180 = vmatprep.subr.bf16.mxu0 %v1450
    %2181 = vmatpush1.bf16.msra.mxu0 %v1449
    %2182 = vmatprep.subr.bf16.mxu0 %v1454
    %2183 = vmatpush1.bf16.msra.mxu0 %v1453
    %2184 = vmatprep.subr.bf16.mxu0 %v1458
    %2185 = vmatpush1.bf16.msra.mxu0 %v1457
    %2186 = vmatprep.subr.bf16.mxu0 %v1462
    %2187 = vmatpush1.bf16.msra.mxu0 %v1461
    %2188 = vmatprep.subr.bf16.mxu0 %v1466
    %2189 = vmatpush1.bf16.msra.mxu0 %v1465
    %2190 = vmatprep.subr.bf16.mxu0 %v1470
    %2191 = vmatpush1.bf16.msra.mxu0 %v1469
    %2192 = vmatprep.subr.bf16.mxu0 %v1474
    %2193 = vmatpush1.bf16.msra.mxu0 %v1473
    %2194 = vmatprep.subr.bf16.mxu0 %v1478
    %2195 = vmatpush1.bf16.msra.mxu0 %v1477
    %2196 = vmatprep.subr.bf16.mxu0 %v1482
    %2197 = vmatpush1.bf16.msra.mxu0 %v1481
    %2198 = vmatprep.subr.bf16.mxu0 %v1486
    %2199 = vmatpush1.bf16.msra.mxu0 %v1485
    %2200 = vmatprep.subr.bf16.mxu0 %v1490
    %2201 = vmatpush1.bf16.msra.mxu0 %v1489
    %2202 = vmatprep.subr.bf16.mxu0 %v1494
    %2203 = vmatpush1.bf16.msra.mxu0 %v1493
    %2204 = vmatprep.subr.bf16.mxu0 %v1498
    %2205 = vmatpush1.bf16.msra.mxu0 %v1497
    %2206 = vmatprep.subr.bf16.mxu0 %v1502
    %2207 = vmatpush1.bf16.msra.mxu0 %v1501
    %2208 = vmatprep.subr.bf16.mxu0 %v1506
    %2209 = vmatpush1.bf16.msra.mxu0 %v1505
    %2210 = vmatprep.mubr.bf16.mxu0 %v438
    %2211 = vmatmul.mubr.bf16.gmra.mrb[0].mxu0 %v437
    %v2212 = vpop.f32.mrb[0].mxu0
    %v2213 = vadd.f32 %v2172, %v2212
    %v2214 = vpop.f32.mrb[0].mxu0
    %v2215 = vadd.f32 %v2174, %v2214
    %v2216 = vpop.f32.mrb[0].mxu0
    %v2217 = vpop.f32.mrb[0].mxu0
    %2218 = vdwg.mxu0
    %2219 = vmatprep.subr.bf16.mxu0 %v1510
    %2220 = vmatpush1.bf16.msra.mxu0 %v1509
    %2221 = vmatprep.subr.bf16.mxu0 %v1514
    %2222 = vmatpush1.bf16.msra.mxu0 %v1513
    %2223 = vmatprep.subr.bf16.mxu0 %v1518
    %2224 = vmatpush1.bf16.msra.mxu0 %v1517
    %2225 = vmatprep.subr.bf16.mxu0 %v1522
    %2226 = vmatpush1.bf16.msra.mxu0 %v1521
    %2227 = vmatprep.subr.bf16.mxu0 %v1526
    %2228 = vmatpush1.bf16.msra.mxu0 %v1525
    %2229 = vmatprep.subr.bf16.mxu0 %v1530
    %2230 = vmatpush1.bf16.msra.mxu0 %v1529
    %2231 = vmatprep.subr.bf16.mxu0 %v1534
    %2232 = vmatpush1.bf16.msra.mxu0 %v1533
    %2233 = vmatprep.subr.bf16.mxu0 %v1538
    %2234 = vmatpush1.bf16.msra.mxu0 %v1537
    %2235 = vmatprep.subr.bf16.mxu0 %v1542
    %2236 = vmatpush1.bf16.msra.mxu0 %v1541
    %2237 = vmatprep.subr.bf16.mxu0 %v1546
    %2238 = vmatpush1.bf16.msra.mxu0 %v1545
    %2239 = vmatprep.subr.bf16.mxu0 %v1550
    %2240 = vmatpush1.bf16.msra.mxu0 %v1549
    %2241 = vmatprep.subr.bf16.mxu0 %v1554
    %2242 = vmatpush1.bf16.msra.mxu0 %v1553
    %2243 = vmatprep.subr.bf16.mxu0 %v1558
    %2244 = vmatpush1.bf16.msra.mxu0 %v1557
    %2245 = vmatprep.subr.bf16.mxu0 %v1562
    %2246 = vmatpush1.bf16.msra.mxu0 %v1561
    %2247 = vmatprep.subr.bf16.mxu0 %v1566
    %2248 = vmatpush1.bf16.msra.mxu0 %v1565
    %2249 = vmatprep.subr.bf16.mxu0 %v1570
    %2250 = vmatpush1.bf16.msra.mxu0 %v1569
    %2251 = vmatprep.mubr.bf16.mxu0 %v440
    %2252 = vmatmul.mubr.bf16.gmra.mrb[0].mxu0 %v439
    %v2253 = vpop.f32.mrb[0].mxu0
    %v2254 = vadd.f32 %v2213, %v2253
    %v2255 = vpop.f32.mrb[0].mxu0
    %v2256 = vadd.f32 %v2215, %v2255
    %v2257 = vpop.f32.mrb[0].mxu0
    %v2258 = vpop.f32.mrb[0].mxu0
    %2259 = vdwg.mxu0
    %2260 = vmatprep.subr.bf16.mxu0 %v1574
    %2261 = vmatpush1.bf16.msra.mxu0 %v1573
    %2262 = vmatprep.subr.bf16.mxu0 %v1578
    %2263 = vmatpush1.bf16.msra.mxu0 %v1577
    %2264 = vmatprep.subr.bf16.mxu0 %v1582
    %2265 = vmatpush1.bf16.msra.mxu0 %v1581
    %2266 = vmatprep.subr.bf16.mxu0 %v1586
    %2267 = vmatpush1.bf16.msra.mxu0 %v1585
    %2268 = vmatprep.subr.bf16.mxu0 %v1590
    %2269 = vmatpush1.bf16.msra.mxu0 %v1589
    %2270 = vmatprep.subr.bf16.mxu0 %v1594
    %2271 = vmatpush1.bf16.msra.mxu0 %v1593
    %2272 = vmatprep.subr.bf16.mxu0 %v1598
    %2273 = vmatpush1.bf16.msra.mxu0 %v1597
    %2274 = vmatprep.subr.bf16.mxu0 %v1602
    %2275 = vmatpush1.bf16.msra.mxu0 %v1601
    %2276 = vmatprep.subr.bf16.mxu0 0
    %2277 = vmatpush1.bf16.msra.mxu0 0
    %2278 = vmatprep.subr.bf16.mxu0 0
    %2279 = vmatpush1.bf16.msra.mxu0 0
    %2280 = vmatprep.subr.bf16.mxu0 0
    %2281 = vmatpush1.bf16.msra.mxu0 0
    %2282 = vmatprep.subr.bf16.mxu0 0
    %2283 = vmatpush1.bf16.msra.mxu0 0
    %2284 = vmatprep.subr.bf16.mxu0 0
    %2285 = vmatpush1.bf16.msra.mxu0 0
    %2286 = vmatprep.subr.bf16.mxu0 0
    %2287 = vmatpush1.bf16.msra.mxu0 0
    %2288 = vmatprep.subr.bf16.mxu0 0
    %2289 = vmatpush1.bf16.msra.mxu0 0
    %2290 = vmatprep.subr.bf16.mxu0 0
    %2291 = vmatpush1.bf16.msra.mxu0 0
    %2292 = vmatprep.mubr.bf16.mxu0 0
    %2293 = vmatmul.mubr.bf16.gmra.mrb[0].mxu0 %v441
    %v2294 = vpop.f32.mrb[0].mxu0
    %v2295 = vadd.f32 %v2254, %v2294
    %v2296 = vpop.f32.mrb[0].mxu0
    %v2297 = vadd.f32 %v2256, %v2296
    %v2298 = vpop.f32.mrb[0].mxu0
    %v2299 = vpop.f32.mrb[0].mxu0
    %2300 = vdwg.mxu0
    %v2301 = vmax.f32 %v2090, 0.0
    %v2302 = vmax.f32 %v2092, 0.0
    %v2303 = vmax.f32 %v2295, 0.0
    %v2304 = vmax.f32 %v2297, 0.0
    %v2305 = vpack.c.bf16 %v2301, %v2301
    %v2306 = vpack.c.bf16 %v2302, %v2302
    %v2307 = vpack.c.bf16 %v2303, %v2303
    %v2308 = vpack.c.bf16 %v2304, %v2304
    %v2309 = vld [vmem:[#allocation7] sm:$0xff]
    %v2310 = vld [vmem:[#allocation7 + $0x8] sm:$0xff]
    %v2311 = vld [vmem:[#allocation7 + $0x10] sm:$0xff]
    %v2312 = vld [vmem:[#allocation7 + $0x18] sm:$0xff]
    %v2313 = vld [vmem:[#allocation7 + $0x20] sm:$0xff]
    %v2314 = vld [vmem:[#allocation7 + $0x28] sm:$0xff]
    %v2315 = vld [vmem:[#allocation7 + $0x30] sm:$0xff]
    %v2316 = vld [vmem:[#allocation7 + $0x38] sm:$0xff]
    %v2317 = vld [vmem:[#allocation7 + $0x40] sm:$0xff]
    %v2318 = vld [vmem:[#allocation7 + $0x48] sm:$0xff]
    %v2319 = vld [vmem:[#allocation7 + $0x50] sm:$0xff]
    %v2320 = vld [vmem:[#allocation7 + $0x58] sm:$0xff]
    %v2321 = vld [vmem:[#allocation7 + $0x60] sm:$0xff]
    %v2322 = vld [vmem:[#allocation7 + $0x68] sm:$0xff]
    %v2323 = vld [vmem:[#allocation7 + $0x70] sm:$0xff]
    %v2324 = vld [vmem:[#allocation7 + $0x78] sm:$0xff]
    %v2325 = vld [vmem:[#allocation7 + $0x80] sm:$0xff]
    %v2326 = vld [vmem:[#allocation7 + $0x88] sm:$0xff]
    %v2327 = vld [vmem:[#allocation7 + $0x90] sm:$0xff]
    %v2328 = vld [vmem:[#allocation7 + $0x98] sm:$0xff]
    %v2329 = vld [vmem:[#allocation7 + $0xa0] sm:$0xff]
    %v2330 = vld [vmem:[#allocation7 + $0xa8] sm:$0xff]
    %v2331 = vld [vmem:[#allocation7 + $0xb0] sm:$0xff]
    %v2332 = vld [vmem:[#allocation7 + $0xb8] sm:$0xff]
    %v2333 = vld [vmem:[#allocation7 + $0xc0] sm:$0xff]
    %v2334 = vld [vmem:[#allocation7 + $0xc8] sm:$0xff]
    %v2335 = vld [vmem:[#allocation7 + $0xd0] sm:$0xff]
    %v2336 = vld [vmem:[#allocation7 + $0xd8] sm:$0xff]
    %v2337 = vld [vmem:[#allocation7 + $0xe0] sm:$0xff]
    %v2338 = vld [vmem:[#allocation7 + $0xe8] sm:$0xff]
    %v2339 = vld [vmem:[#allocation7 + $0xf0] sm:$0xff]
    %v2340 = vld [vmem:[#allocation7 + $0xf8] sm:$0xff]
    %v2341 = vld [vmem:[#allocation7 + $0x100] sm:$0xff]
    %v2342 = vld [vmem:[#allocation7 + $0x108] sm:$0xff]
    %v2343 = vld [vmem:[#allocation7 + $0x110] sm:$0xff]
    %v2344 = vld [vmem:[#allocation7 + $0x118] sm:$0xff]
    %v2345 = vld [vmem:[#allocation7 + $0x120] sm:$0xff]
    %v2346 = vld [vmem:[#allocation7 + $0x128] sm:$0xff]
    %v2347 = vld [vmem:[#allocation7 + $0x130] sm:$0xff]
    %v2348 = vld [vmem:[#allocation7 + $0x138] sm:$0xff]
    %v2349 = vld [vmem:[#allocation7 + $0x140] sm:$0xff]
    %v2350 = vld [vmem:[#allocation7 + $0x148] sm:$0xff]
    %v2351 = vld [vmem:[#allocation7 + $0x150] sm:$0xff]
    %v2352 = vld [vmem:[#allocation7 + $0x158] sm:$0xff]
    %v2353 = vld [vmem:[#allocation7 + $0x160] sm:$0xff]
    %v2354 = vld [vmem:[#allocation7 + $0x168] sm:$0xff]
    %v2355 = vld [vmem:[#allocation7 + $0x170] sm:$0xff]
    %v2356 = vld [vmem:[#allocation7 + $0x178] sm:$0xff]
    %v2357 = vld [vmem:[#allocation7 + $0x180] sm:$0xff]
    %v2358 = vld [vmem:[#allocation7 + $0x188] sm:$0xff]
    %v2359 = vld [vmem:[#allocation7 + $0x190] sm:$0xff]
    %v2360 = vld [vmem:[#allocation7 + $0x198] sm:$0xff]
    %v2361 = vld [vmem:[#allocation7 + $0x1a0] sm:$0xff]
    %v2362 = vld [vmem:[#allocation7 + $0x1a8] sm:$0xff]
    %v2363 = vld [vmem:[#allocation7 + $0x1b0] sm:$0xff]
    %v2364 = vld [vmem:[#allocation7 + $0x1b8] sm:$0xff]
    %v2365 = vld [vmem:[#allocation7 + $0x1c0] sm:$0xff]
    %v2366 = vld [vmem:[#allocation7 + $0x1c8] sm:$0xff]
    %v2367 = vld [vmem:[#allocation7 + $0x1d0] sm:$0xff]
    %v2368 = vld [vmem:[#allocation7 + $0x1d8] sm:$0xff]
    %v2369 = vld [vmem:[#allocation7 + $0x1e0] sm:$0xff]
    %v2370 = vld [vmem:[#allocation7 + $0x1e8] sm:$0xff]
    %v2371 = vld [vmem:[#allocation7 + $0x1f0] sm:$0xff]
    %v2372 = vld [vmem:[#allocation7 + $0x1f8] sm:$0xff]
    %v2373 = vld [vmem:[#allocation7 + $0x200] sm:$0xff]
    %v2374 = vld [vmem:[#allocation7 + $0x208] sm:$0xff]
    %v2375 = vld [vmem:[#allocation7 + $0x210] sm:$0xff]
    %v2376 = vld [vmem:[#allocation7 + $0x218] sm:$0xff]
    %v2377 = vld [vmem:[#allocation7 + $0x220] sm:$0xff]
    %v2378 = vld [vmem:[#allocation7 + $0x228] sm:$0xff]
    %v2379 = vld [vmem:[#allocation7 + $0x230] sm:$0xff]
    %v2380 = vld [vmem:[#allocation7 + $0x238] sm:$0xff]
    %v2381 = vld [vmem:[#allocation7 + $0x240] sm:$0xff]
    %v2382 = vld [vmem:[#allocation7 + $0x248] sm:$0xff]
    %v2383 = vld [vmem:[#allocation7 + $0x250] sm:$0xff]
    %v2384 = vld [vmem:[#allocation7 + $0x258] sm:$0xff]
    %v2385 = vld [vmem:[#allocation7 + $0x260] sm:$0xff]
    %v2386 = vld [vmem:[#allocation7 + $0x268] sm:$0xff]
    %v2387 = vld [vmem:[#allocation7 + $0x270] sm:$0xff]
    %v2388 = vld [vmem:[#allocation7 + $0x278] sm:$0xff]
    %v2389 = vld [vmem:[#allocation7 + $0x280] sm:$0xff]
    %v2390 = vld [vmem:[#allocation7 + $0x288] sm:$0xff]
    %v2391 = vld [vmem:[#allocation7 + $0x290] sm:$0xff]
    %v2392 = vld [vmem:[#allocation7 + $0x298] sm:$0xff]
    %v2393 = vld [vmem:[#allocation7 + $0x2a0] sm:$0xff]
    %v2394 = vld [vmem:[#allocation7 + $0x2a8] sm:$0xff]
    %v2395 = vld [vmem:[#allocation7 + $0x2b0] sm:$0xff]
    %v2396 = vld [vmem:[#allocation7 + $0x2b8] sm:$0xff]
    %v2397 = vld [vmem:[#allocation7 + $0x2c0] sm:$0xff]
    %v2398 = vld [vmem:[#allocation7 + $0x2c8] sm:$0xff]
    %v2399 = vld [vmem:[#allocation7 + $0x2d0] sm:$0xff]
    %v2400 = vld [vmem:[#allocation7 + $0x2d8] sm:$0xff]
    %v2401 = vld [vmem:[#allocation7 + $0x2e0] sm:$0xff]
    %v2402 = vld [vmem:[#allocation7 + $0x2e8] sm:$0xff]
    %v2403 = vld [vmem:[#allocation7 + $0x2f0] sm:$0xff]
    %v2404 = vld [vmem:[#allocation7 + $0x2f8] sm:$0xff]
    %v2405 = vld [vmem:[#allocation7 + $0x300] sm:$0xff]
    %v2406 = vld [vmem:[#allocation7 + $0x308] sm:$0xff]
    %v2407 = vld [vmem:[#allocation7 + $0x310] sm:$0xff]
    %v2408 = vld [vmem:[#allocation7 + $0x318] sm:$0xff]
    %v2409 = vld [vmem:[#allocation7 + $0x320] sm:$0xff]
    %v2410 = vld [vmem:[#allocation7 + $0x328] sm:$0xff]
    %v2411 = vld [vmem:[#allocation7 + $0x330] sm:$0xff]
    %v2412 = vld [vmem:[#allocation7 + $0x338] sm:$0xff]
    %v2413 = vld [vmem:[#allocation7 + $0x340] sm:$0xff]
    %v2414 = vld [vmem:[#allocation7 + $0x348] sm:$0xff]
    %v2415 = vld [vmem:[#allocation7 + $0x350] sm:$0xff]
    %v2416 = vld [vmem:[#allocation7 + $0x358] sm:$0xff]
    %v2417 = vld [vmem:[#allocation7 + $0x360] sm:$0xff]
    %v2418 = vld [vmem:[#allocation7 + $0x368] sm:$0xff]
    %v2419 = vld [vmem:[#allocation7 + $0x370] sm:$0xff]
    %v2420 = vld [vmem:[#allocation7 + $0x378] sm:$0xff]
    %v2421 = vld [vmem:[#allocation7 + $0x380] sm:$0xff]
    %v2422 = vld [vmem:[#allocation7 + $0x388] sm:$0xff]
    %v2423 = vld [vmem:[#allocation7 + $0x390] sm:$0xff]
    %v2424 = vld [vmem:[#allocation7 + $0x398] sm:$0xff]
    %v2425 = vld [vmem:[#allocation7 + $0x3a0] sm:$0xff]
    %v2426 = vld [vmem:[#allocation7 + $0x3a8] sm:$0xff]
    %v2427 = vld [vmem:[#allocation7 + $0x3b0] sm:$0xff]
    %v2428 = vld [vmem:[#allocation7 + $0x3b8] sm:$0xff]
    %v2429 = vld [vmem:[#allocation7 + $0x3c0] sm:$0xff]
    %v2430 = vld [vmem:[#allocation7 + $0x3c8] sm:$0xff]
    %v2431 = vld [vmem:[#allocation7 + $0x3d0] sm:$0xff]
    %v2432 = vld [vmem:[#allocation7 + $0x3d8] sm:$0xff]
    %v2433 = vld [vmem:[#allocation7 + $0x3e0] sm:$0xff]
    %v2434 = vld [vmem:[#allocation7 + $0x3e8] sm:$0xff]
    %v2435 = vld [vmem:[#allocation7 + $0x3f0] sm:$0xff]
    %v2436 = vld [vmem:[#allocation7 + $0x3f8] sm:$0xff]
    %v2437 = vld [vmem:[#allocation8] sm:$0xf]
    %v2439 = vlaneseq
    %v2440 = vshrl.u32 %v2439, 7
    %v2441 = vsub.s32 0, %v2440
    %v2442 = vrot.slane %v2437, %v2441
    %v2443 = vlaneseq
    %v2444 = vshrl.u32 %v2443, 7
    %v2445 = vsub.s32 1, %v2444
    %v2446 = vrot.slane %v2437, %v2445
    %v2447 = vlaneseq
    %v2448 = vshrl.u32 %v2447, 7
    %v2449 = vsub.s32 2, %v2448
    %v2450 = vrot.slane %v2437, %v2449
    %v2451 = vlaneseq
    %v2452 = vshrl.u32 %v2451, 7
    %v2453 = vsub.s32 3, %v2452
    %v2454 = vrot.slane %v2437, %v2453
    %v2587 = vunpack.c.l.b16 %v2309
    %v2588 = vunpack.c.h.b16 %v2309
    %v2589 = vunpack.c.l.b16 %v2310
    %v2590 = vunpack.c.h.b16 %v2310
    %v2591 = vunpack.c.l.b16 %v2311
    %v2592 = vunpack.c.h.b16 %v2311
    %v2593 = vunpack.c.l.b16 %v2312
    %v2594 = vunpack.c.h.b16 %v2312
    %v2595 = vunpack.c.l.b16 %v2313
    %v2596 = vunpack.c.h.b16 %v2313
    %v2597 = vunpack.c.l.b16 %v2314
    %v2598 = vunpack.c.h.b16 %v2314
    %v2599 = vunpack.c.l.b16 %v2315
    %v2600 = vunpack.c.h.b16 %v2315
    %v2601 = vunpack.c.l.b16 %v2316
    %v2602 = vunpack.c.h.b16 %v2316
    %v2603 = vunpack.c.l.b16 %v2317
    %v2604 = vunpack.c.h.b16 %v2317
    %v2605 = vunpack.c.l.b16 %v2318
    %v2606 = vunpack.c.h.b16 %v2318
    %v2607 = vunpack.c.l.b16 %v2319
    %v2608 = vunpack.c.h.b16 %v2319
    %v2609 = vunpack.c.l.b16 %v2320
    %v2610 = vunpack.c.h.b16 %v2320
    %v2611 = vunpack.c.l.b16 %v2321
    %v2612 = vunpack.c.h.b16 %v2321
    %v2613 = vunpack.c.l.b16 %v2322
    %v2614 = vunpack.c.h.b16 %v2322
    %v2615 = vunpack.c.l.b16 %v2323
    %v2616 = vunpack.c.h.b16 %v2323
    %v2617 = vunpack.c.l.b16 %v2324
    %v2618 = vunpack.c.h.b16 %v2324
    %v2619 = vunpack.c.l.b16 %v2325
    %v2620 = vunpack.c.h.b16 %v2325
    %v2621 = vunpack.c.l.b16 %v2326
    %v2622 = vunpack.c.h.b16 %v2326
    %v2623 = vunpack.c.l.b16 %v2327
    %v2624 = vunpack.c.h.b16 %v2327
    %v2625 = vunpack.c.l.b16 %v2328
    %v2626 = vunpack.c.h.b16 %v2328
    %v2627 = vunpack.c.l.b16 %v2329
    %v2628 = vunpack.c.h.b16 %v2329
    %v2629 = vunpack.c.l.b16 %v2330
    %v2630 = vunpack.c.h.b16 %v2330
    %v2631 = vunpack.c.l.b16 %v2331
    %v2632 = vunpack.c.h.b16 %v2331
    %v2633 = vunpack.c.l.b16 %v2332
    %v2634 = vunpack.c.h.b16 %v2332
    %v2635 = vunpack.c.l.b16 %v2333
    %v2636 = vunpack.c.h.b16 %v2333
    %v2637 = vunpack.c.l.b16 %v2334
    %v2638 = vunpack.c.h.b16 %v2334
    %v2639 = vunpack.c.l.b16 %v2335
    %v2640 = vunpack.c.h.b16 %v2335
    %v2641 = vunpack.c.l.b16 %v2336
    %v2642 = vunpack.c.h.b16 %v2336
    %v2643 = vunpack.c.l.b16 %v2337
    %v2644 = vunpack.c.h.b16 %v2337
    %v2645 = vunpack.c.l.b16 %v2338
    %v2646 = vunpack.c.h.b16 %v2338
    %v2647 = vunpack.c.l.b16 %v2339
    %v2648 = vunpack.c.h.b16 %v2339
    %v2649 = vunpack.c.l.b16 %v2340
    %v2650 = vunpack.c.h.b16 %v2340
    %v2651 = vunpack.c.l.b16 %v2341
    %v2652 = vunpack.c.h.b16 %v2341
    %v2653 = vunpack.c.l.b16 %v2342
    %v2654 = vunpack.c.h.b16 %v2342
    %v2655 = vunpack.c.l.b16 %v2343
    %v2656 = vunpack.c.h.b16 %v2343
    %v2657 = vunpack.c.l.b16 %v2344
    %v2658 = vunpack.c.h.b16 %v2344
    %v2659 = vunpack.c.l.b16 %v2345
    %v2660 = vunpack.c.h.b16 %v2345
    %v2661 = vunpack.c.l.b16 %v2346
    %v2662 = vunpack.c.h.b16 %v2346
    %v2663 = vunpack.c.l.b16 %v2347
    %v2664 = vunpack.c.h.b16 %v2347
    %v2665 = vunpack.c.l.b16 %v2348
    %v2666 = vunpack.c.h.b16 %v2348
    %v2667 = vunpack.c.l.b16 %v2349
    %v2668 = vunpack.c.h.b16 %v2349
    %v2669 = vunpack.c.l.b16 %v2350
    %v2670 = vunpack.c.h.b16 %v2350
    %v2671 = vunpack.c.l.b16 %v2351
    %v2672 = vunpack.c.h.b16 %v2351
    %v2673 = vunpack.c.l.b16 %v2352
    %v2674 = vunpack.c.h.b16 %v2352
    %v2675 = vunpack.c.l.b16 %v2353
    %v2676 = vunpack.c.h.b16 %v2353
    %v2677 = vunpack.c.l.b16 %v2354
    %v2678 = vunpack.c.h.b16 %v2354
    %v2679 = vunpack.c.l.b16 %v2355
    %v2680 = vunpack.c.h.b16 %v2355
    %v2681 = vunpack.c.l.b16 %v2356
    %v2682 = vunpack.c.h.b16 %v2356
    %v2683 = vunpack.c.l.b16 %v2357
    %v2684 = vunpack.c.h.b16 %v2357
    %v2685 = vunpack.c.l.b16 %v2358
    %v2686 = vunpack.c.h.b16 %v2358
    %v2687 = vunpack.c.l.b16 %v2359
    %v2688 = vunpack.c.h.b16 %v2359
    %v2689 = vunpack.c.l.b16 %v2360
    %v2690 = vunpack.c.h.b16 %v2360
    %v2691 = vunpack.c.l.b16 %v2361
    %v2692 = vunpack.c.h.b16 %v2361
    %v2693 = vunpack.c.l.b16 %v2362
    %v2694 = vunpack.c.h.b16 %v2362
    %v2695 = vunpack.c.l.b16 %v2363
    %v2696 = vunpack.c.h.b16 %v2363
    %v2697 = vunpack.c.l.b16 %v2364
    %v2698 = vunpack.c.h.b16 %v2364
    %v2699 = vunpack.c.l.b16 %v2365
    %v2700 = vunpack.c.h.b16 %v2365
    %v2701 = vunpack.c.l.b16 %v2366
    %v2702 = vunpack.c.h.b16 %v2366
    %v2703 = vunpack.c.l.b16 %v2367
    %v2704 = vunpack.c.h.b16 %v2367
    %v2705 = vunpack.c.l.b16 %v2368
    %v2706 = vunpack.c.h.b16 %v2368
    %v2707 = vunpack.c.l.b16 %v2369
    %v2708 = vunpack.c.h.b16 %v2369
    %v2709 = vunpack.c.l.b16 %v2370
    %v2710 = vunpack.c.h.b16 %v2370
    %v2711 = vunpack.c.l.b16 %v2371
    %v2712 = vunpack.c.h.b16 %v2371
    %v2713 = vunpack.c.l.b16 %v2372
    %v2714 = vunpack.c.h.b16 %v2372
    %v2715 = vunpack.c.l.b16 %v2373
    %v2716 = vunpack.c.h.b16 %v2373
    %v2717 = vunpack.c.l.b16 %v2374
    %v2718 = vunpack.c.h.b16 %v2374
    %v2719 = vunpack.c.l.b16 %v2375
    %v2720 = vunpack.c.h.b16 %v2375
    %v2721 = vunpack.c.l.b16 %v2376
    %v2722 = vunpack.c.h.b16 %v2376
    %v2723 = vunpack.c.l.b16 %v2377
    %v2724 = vunpack.c.h.b16 %v2377
    %v2725 = vunpack.c.l.b16 %v2378
    %v2726 = vunpack.c.h.b16 %v2378
    %v2727 = vunpack.c.l.b16 %v2379
    %v2728 = vunpack.c.h.b16 %v2379
    %v2729 = vunpack.c.l.b16 %v2380
    %v2730 = vunpack.c.h.b16 %v2380
    %v2731 = vunpack.c.l.b16 %v2381
    %v2732 = vunpack.c.h.b16 %v2381
    %v2733 = vunpack.c.l.b16 %v2382
    %v2734 = vunpack.c.h.b16 %v2382
    %v2735 = vunpack.c.l.b16 %v2383
    %v2736 = vunpack.c.h.b16 %v2383
    %v2737 = vunpack.c.l.b16 %v2384
    %v2738 = vunpack.c.h.b16 %v2384
    %v2739 = vunpack.c.l.b16 %v2385
    %v2740 = vunpack.c.h.b16 %v2385
    %v2741 = vunpack.c.l.b16 %v2386
    %v2742 = vunpack.c.h.b16 %v2386
    %v2743 = vunpack.c.l.b16 %v2387
    %v2744 = vunpack.c.h.b16 %v2387
    %v2745 = vunpack.c.l.b16 %v2388
    %v2746 = vunpack.c.h.b16 %v2388
    %v2747 = vunpack.c.l.b16 %v2389
    %v2748 = vunpack.c.h.b16 %v2389
    %v2749 = vunpack.c.l.b16 %v2390
    %v2750 = vunpack.c.h.b16 %v2390
    %v2751 = vunpack.c.l.b16 %v2391
    %v2752 = vunpack.c.h.b16 %v2391
    %v2753 = vunpack.c.l.b16 %v2392
    %v2754 = vunpack.c.h.b16 %v2392
    %v2755 = vunpack.c.l.b16 %v2393
    %v2756 = vunpack.c.h.b16 %v2393
    %v2757 = vunpack.c.l.b16 %v2394
    %v2758 = vunpack.c.h.b16 %v2394
    %v2759 = vunpack.c.l.b16 %v2395
    %v2760 = vunpack.c.h.b16 %v2395
    %v2761 = vunpack.c.l.b16 %v2396
    %v2762 = vunpack.c.h.b16 %v2396
    %v2763 = vunpack.c.l.b16 %v2397
    %v2764 = vunpack.c.h.b16 %v2397
    %v2765 = vunpack.c.l.b16 %v2398
    %v2766 = vunpack.c.h.b16 %v2398
    %v2767 = vunpack.c.l.b16 %v2399
    %v2768 = vunpack.c.h.b16 %v2399
    %v2769 = vunpack.c.l.b16 %v2400
    %v2770 = vunpack.c.h.b16 %v2400
    %v2771 = vunpack.c.l.b16 %v2401
    %v2772 = vunpack.c.h.b16 %v2401
    %v2773 = vunpack.c.l.b16 %v2402
    %v2774 = vunpack.c.h.b16 %v2402
    %v2775 = vunpack.c.l.b16 %v2403
    %v2776 = vunpack.c.h.b16 %v2403
    %v2777 = vunpack.c.l.b16 %v2404
    %v2778 = vunpack.c.h.b16 %v2404
    %v2779 = vunpack.c.l.b16 %v2405
    %v2780 = vunpack.c.h.b16 %v2405
    %v2781 = vunpack.c.l.b16 %v2406
    %v2782 = vunpack.c.h.b16 %v2406
    %v2783 = vunpack.c.l.b16 %v2407
    %v2784 = vunpack.c.h.b16 %v2407
    %v2785 = vunpack.c.l.b16 %v2408
    %v2786 = vunpack.c.h.b16 %v2408
    %v2787 = vunpack.c.l.b16 %v2409
    %v2788 = vunpack.c.h.b16 %v2409
    %v2789 = vunpack.c.l.b16 %v2410
    %v2790 = vunpack.c.h.b16 %v2410
    %v2791 = vunpack.c.l.b16 %v2411
    %v2792 = vunpack.c.h.b16 %v2411
    %v2793 = vunpack.c.l.b16 %v2412
    %v2794 = vunpack.c.h.b16 %v2412
    %v2795 = vunpack.c.l.b16 %v2413
    %v2796 = vunpack.c.h.b16 %v2413
    %v2797 = vunpack.c.l.b16 %v2414
    %v2798 = vunpack.c.h.b16 %v2414
    %v2799 = vunpack.c.l.b16 %v2415
    %v2800 = vunpack.c.h.b16 %v2415
    %v2801 = vunpack.c.l.b16 %v2416
    %v2802 = vunpack.c.h.b16 %v2416
    %v2803 = vunpack.c.l.b16 %v2417
    %v2804 = vunpack.c.h.b16 %v2417
    %v2805 = vunpack.c.l.b16 %v2418
    %v2806 = vunpack.c.h.b16 %v2418
    %v2807 = vunpack.c.l.b16 %v2419
    %v2808 = vunpack.c.h.b16 %v2419
    %v2809 = vunpack.c.l.b16 %v2420
    %v2810 = vunpack.c.h.b16 %v2420
    %v2811 = vunpack.c.l.b16 %v2421
    %v2812 = vunpack.c.h.b16 %v2421
    %v2813 = vunpack.c.l.b16 %v2422
    %v2814 = vunpack.c.h.b16 %v2422
    %v2815 = vunpack.c.l.b16 %v2423
    %v2816 = vunpack.c.h.b16 %v2423
    %v2817 = vunpack.c.l.b16 %v2424
    %v2818 = vunpack.c.h.b16 %v2424
    %v2819 = vunpack.c.l.b16 %v2425
    %v2820 = vunpack.c.h.b16 %v2425
    %v2821 = vunpack.c.l.b16 %v2426
    %v2822 = vunpack.c.h.b16 %v2426
    %v2823 = vunpack.c.l.b16 %v2427
    %v2824 = vunpack.c.h.b16 %v2427
    %v2825 = vunpack.c.l.b16 %v2428
    %v2826 = vunpack.c.h.b16 %v2428
    %v2827 = vunpack.c.l.b16 %v2429
    %v2828 = vunpack.c.h.b16 %v2429
    %v2829 = vunpack.c.l.b16 %v2430
    %v2830 = vunpack.c.h.b16 %v2430
    %v2831 = vunpack.c.l.b16 %v2431
    %v2832 = vunpack.c.h.b16 %v2431
    %v2833 = vunpack.c.l.b16 %v2432
    %v2834 = vunpack.c.h.b16 %v2432
    %v2835 = vunpack.c.l.b16 %v2433
    %v2836 = vunpack.c.h.b16 %v2433
    %v2837 = vunpack.c.l.b16 %v2434
    %v2838 = vunpack.c.h.b16 %v2434
    %v2839 = vunpack.c.l.b16 %v2435
    %v2840 = vunpack.c.h.b16 %v2435
    %v2841 = vunpack.c.l.b16 %v2436
    %v2842 = vunpack.c.h.b16 %v2436
    %v2843 = vpack.c.b16 %v2591, %v2587
    %v2844 = vpack.c.b16 %v2592, %v2588
    %v2845 = vpack.c.b16 %v2593, %v2589
    %v2846 = vpack.c.b16 %v2594, %v2590
    %v2847 = vpack.c.b16 %v2599, %v2595
    %v2848 = vpack.c.b16 %v2600, %v2596
    %v2849 = vpack.c.b16 %v2601, %v2597
    %v2850 = vpack.c.b16 %v2602, %v2598
    %v2851 = vpack.c.b16 %v2607, %v2603
    %v2852 = vpack.c.b16 %v2608, %v2604
    %v2853 = vpack.c.b16 %v2609, %v2605
    %v2854 = vpack.c.b16 %v2610, %v2606
    %v2855 = vpack.c.b16 %v2615, %v2611
    %v2856 = vpack.c.b16 %v2616, %v2612
    %v2857 = vpack.c.b16 %v2617, %v2613
    %v2858 = vpack.c.b16 %v2618, %v2614
    %v2859 = vpack.c.b16 %v2623, %v2619
    %v2860 = vpack.c.b16 %v2624, %v2620
    %v2861 = vpack.c.b16 %v2625, %v2621
    %v2862 = vpack.c.b16 %v2626, %v2622
    %v2863 = vpack.c.b16 %v2631, %v2627
    %v2864 = vpack.c.b16 %v2632, %v2628
    %v2865 = vpack.c.b16 %v2633, %v2629
    %v2866 = vpack.c.b16 %v2634, %v2630
    %v2867 = vpack.c.b16 %v2639, %v2635
    %v2868 = vpack.c.b16 %v2640, %v2636
    %v2869 = vpack.c.b16 %v2641, %v2637
    %v2870 = vpack.c.b16 %v2642, %v2638
    %v2871 = vpack.c.b16 %v2647, %v2643
    %v2872 = vpack.c.b16 %v2648, %v2644
    %v2873 = vpack.c.b16 %v2649, %v2645
    %v2874 = vpack.c.b16 %v2650, %v2646
    %v2875 = vpack.c.b16 %v2655, %v2651
    %v2876 = vpack.c.b16 %v2656, %v2652
    %v2877 = vpack.c.b16 %v2657, %v2653
    %v2878 = vpack.c.b16 %v2658, %v2654
    %v2879 = vpack.c.b16 %v2663, %v2659
    %v2880 = vpack.c.b16 %v2664, %v2660
    %v2881 = vpack.c.b16 %v2665, %v2661
    %v2882 = vpack.c.b16 %v2666, %v2662
    %v2883 = vpack.c.b16 %v2671, %v2667
    %v2884 = vpack.c.b16 %v2672, %v2668
    %v2885 = vpack.c.b16 %v2673, %v2669
    %v2886 = vpack.c.b16 %v2674, %v2670
    %v2887 = vpack.c.b16 %v2679, %v2675
    %v2888 = vpack.c.b16 %v2680, %v2676
    %v2889 = vpack.c.b16 %v2681, %v2677
    %v2890 = vpack.c.b16 %v2682, %v2678
    %v2891 = vpack.c.b16 %v2687, %v2683
    %v2892 = vpack.c.b16 %v2688, %v2684
    %v2893 = vpack.c.b16 %v2689, %v2685
    %v2894 = vpack.c.b16 %v2690, %v2686
    %v2895 = vpack.c.b16 %v2695, %v2691
    %v2896 = vpack.c.b16 %v2696, %v2692
    %v2897 = vpack.c.b16 %v2697, %v2693
    %v2898 = vpack.c.b16 %v2698, %v2694
    %v2899 = vpack.c.b16 %v2703, %v2699
    %v2900 = vpack.c.b16 %v2704, %v2700
    %v2901 = vpack.c.b16 %v2705, %v2701
    %v2902 = vpack.c.b16 %v2706, %v2702
    %v2903 = vpack.c.b16 %v2711, %v2707
    %v2904 = vpack.c.b16 %v2712, %v2708
    %v2905 = vpack.c.b16 %v2713, %v2709
    %v2906 = vpack.c.b16 %v2714, %v2710
    %v2907 = vpack.c.b16 %v2719, %v2715
    %v2908 = vpack.c.b16 %v2720, %v2716
    %v2909 = vpack.c.b16 %v2721, %v2717
    %v2910 = vpack.c.b16 %v2722, %v2718
    %v2911 = vpack.c.b16 %v2727, %v2723
    %v2912 = vpack.c.b16 %v2728, %v2724
    %v2913 = vpack.c.b16 %v2729, %v2725
    %v2914 = vpack.c.b16 %v2730, %v2726
    %v2915 = vpack.c.b16 %v2735, %v2731
    %v2916 = vpack.c.b16 %v2736, %v2732
    %v2917 = vpack.c.b16 %v2737, %v2733
    %v2918 = vpack.c.b16 %v2738, %v2734
    %v2919 = vpack.c.b16 %v2743, %v2739
    %v2920 = vpack.c.b16 %v2744, %v2740
    %v2921 = vpack.c.b16 %v2745, %v2741
    %v2922 = vpack.c.b16 %v2746, %v2742
    %v2923 = vpack.c.b16 %v2751, %v2747
    %v2924 = vpack.c.b16 %v2752, %v2748
    %v2925 = vpack.c.b16 %v2753, %v2749
    %v2926 = vpack.c.b16 %v2754, %v2750
    %v2927 = vpack.c.b16 %v2759, %v2755
    %v2928 = vpack.c.b16 %v2760, %v2756
    %v2929 = vpack.c.b16 %v2761, %v2757
    %v2930 = vpack.c.b16 %v2762, %v2758
    %v2931 = vpack.c.b16 %v2767, %v2763
    %v2932 = vpack.c.b16 %v2768, %v2764
    %v2933 = vpack.c.b16 %v2769, %v2765
    %v2934 = vpack.c.b16 %v2770, %v2766
    %v2935 = vpack.c.b16 %v2775, %v2771
    %v2936 = vpack.c.b16 %v2776, %v2772
    %v2937 = vpack.c.b16 %v2777, %v2773
    %v2938 = vpack.c.b16 %v2778, %v2774
    %v2939 = vpack.c.b16 %v2783, %v2779
    %v2940 = vpack.c.b16 %v2784, %v2780
    %v2941 = vpack.c.b16 %v2785, %v2781
    %v2942 = vpack.c.b16 %v2786, %v2782
    %v2943 = vpack.c.b16 %v2791, %v2787
    %v2944 = vpack.c.b16 %v2792, %v2788
    %v2945 = vpack.c.b16 %v2793, %v2789
    %v2946 = vpack.c.b16 %v2794, %v2790
    %v2947 = vpack.c.b16 %v2799, %v2795
    %v2948 = vpack.c.b16 %v2800, %v2796
    %v2949 = vpack.c.b16 %v2801, %v2797
    %v2950 = vpack.c.b16 %v2802, %v2798
    %v2951 = vpack.c.b16 %v2807, %v2803
    %v2952 = vpack.c.b16 %v2808, %v2804
    %v2953 = vpack.c.b16 %v2809, %v2805
    %v2954 = vpack.c.b16 %v2810, %v2806
    %v2955 = vpack.c.b16 %v2815, %v2811
    %v2956 = vpack.c.b16 %v2816, %v2812
    %v2957 = vpack.c.b16 %v2817, %v2813
    %v2958 = vpack.c.b16 %v2818, %v2814
    %v2959 = vpack.c.b16 %v2823, %v2819
    %v2960 = vpack.c.b16 %v2824, %v2820
    %v2961 = vpack.c.b16 %v2825, %v2821
    %v2962 = vpack.c.b16 %v2826, %v2822
    %v2963 = vpack.c.b16 %v2831, %v2827
    %v2964 = vpack.c.b16 %v2832, %v2828
    %v2965 = vpack.c.b16 %v2833, %v2829
    %v2966 = vpack.c.b16 %v2834, %v2830
    %v2967 = vpack.c.b16 %v2839, %v2835
    %v2968 = vpack.c.b16 %v2840, %v2836
    %v2969 = vpack.c.b16 %v2841, %v2837
    %v2970 = vpack.c.b16 %v2842, %v2838
    %3099 = vmatprep.subr.bf16.mxu0 %v2844
    %3100 = vmatpush1.bf16.msra.mxu0 %v2843
    %3101 = vmatprep.subr.bf16.mxu0 %v2848
    %3102 = vmatpush1.bf16.msra.mxu0 %v2847
    %3103 = vmatprep.subr.bf16.mxu0 %v2852
    %3104 = vmatpush1.bf16.msra.mxu0 %v2851
    %3105 = vmatprep.subr.bf16.mxu0 %v2856
    %3106 = vmatpush1.bf16.msra.mxu0 %v2855
    %3107 = vmatprep.subr.bf16.mxu0 %v2860
    %3108 = vmatpush1.bf16.msra.mxu0 %v2859
    %3109 = vmatprep.subr.bf16.mxu0 %v2864
    %3110 = vmatpush1.bf16.msra.mxu0 %v2863
    %3111 = vmatprep.subr.bf16.mxu0 %v2868
    %3112 = vmatpush1.bf16.msra.mxu0 %v2867
    %3113 = vmatprep.subr.bf16.mxu0 %v2872
    %3114 = vmatpush1.bf16.msra.mxu0 %v2871
    %3115 = vmatprep.subr.bf16.mxu0 %v2876
    %3116 = vmatpush1.bf16.msra.mxu0 %v2875
    %3117 = vmatprep.subr.bf16.mxu0 %v2880
    %3118 = vmatpush1.bf16.msra.mxu0 %v2879
    %3119 = vmatprep.subr.bf16.mxu0 %v2884
    %3120 = vmatpush1.bf16.msra.mxu0 %v2883
    %3121 = vmatprep.subr.bf16.mxu0 %v2888
    %3122 = vmatpush1.bf16.msra.mxu0 %v2887
    %3123 = vmatprep.subr.bf16.mxu0 %v2892
    %3124 = vmatpush1.bf16.msra.mxu0 %v2891
    %3125 = vmatprep.subr.bf16.mxu0 %v2896
    %3126 = vmatpush1.bf16.msra.mxu0 %v2895
    %3127 = vmatprep.subr.bf16.mxu0 %v2900
    %3128 = vmatpush1.bf16.msra.mxu0 %v2899
    %3129 = vmatprep.subr.bf16.mxu0 %v2904
    %3130 = vmatpush1.bf16.msra.mxu0 %v2903
    %3131 = vmatprep.mubr.bf16.mxu0 %v2306
    %3132 = vmatmul.mubr.bf16.gmra.mrb[0].mxu0 %v2305
    %v3133 = vpop.f32.mrb[0].mxu0
    %v3134 = vadd.f32 %v2442, %v3133
    %v3135 = vpop.f32.mrb[0].mxu0
    %v3136 = vadd.f32 %v2446, %v3135
    %v3137 = vpop.f32.mrb[0].mxu0
    %v3138 = vpop.f32.mrb[0].mxu0
    %3139 = vdwg.mxu0
    %3140 = vmatprep.subr.bf16.mxu0 %v2908
    %3141 = vmatpush1.bf16.msra.mxu0 %v2907
    %3142 = vmatprep.subr.bf16.mxu0 %v2912
    %3143 = vmatpush1.bf16.msra.mxu0 %v2911
    %3144 = vmatprep.subr.bf16.mxu0 %v2916
    %3145 = vmatpush1.bf16.msra.mxu0 %v2915
    %3146 = vmatprep.subr.bf16.mxu0 %v2920
    %3147 = vmatpush1.bf16.msra.mxu0 %v2919
    %3148 = vmatprep.subr.bf16.mxu0 %v2924
    %3149 = vmatpush1.bf16.msra.mxu0 %v2923
    %3150 = vmatprep.subr.bf16.mxu0 %v2928
    %3151 = vmatpush1.bf16.msra.mxu0 %v2927
    %3152 = vmatprep.subr.bf16.mxu0 %v2932
    %3153 = vmatpush1.bf16.msra.mxu0 %v2931
    %3154 = vmatprep.subr.bf16.mxu0 %v2936
    %3155 = vmatpush1.bf16.msra.mxu0 %v2935
    %3156 = vmatprep.subr.bf16.mxu0 %v2940
    %3157 = vmatpush1.bf16.msra.mxu0 %v2939
    %3158 = vmatprep.subr.bf16.mxu0 %v2944
    %3159 = vmatpush1.bf16.msra.mxu0 %v2943
    %3160 = vmatprep.subr.bf16.mxu0 %v2948
    %3161 = vmatpush1.bf16.msra.mxu0 %v2947
    %3162 = vmatprep.subr.bf16.mxu0 %v2952
    %3163 = vmatpush1.bf16.msra.mxu0 %v2951
    %3164 = vmatprep.subr.bf16.mxu0 %v2956
    %3165 = vmatpush1.bf16.msra.mxu0 %v2955
    %3166 = vmatprep.subr.bf16.mxu0 %v2960
    %3167 = vmatpush1.bf16.msra.mxu0 %v2959
    %3168 = vmatprep.subr.bf16.mxu0 %v2964
    %3169 = vmatpush1.bf16.msra.mxu0 %v2963
    %3170 = vmatprep.subr.bf16.mxu0 %v2968
    %3171 = vmatpush1.bf16.msra.mxu0 %v2967
    %3172 = vmatprep.mubr.bf16.mxu0 %v2308
    %3173 = vmatmul.mubr.bf16.gmra.mrb[0].mxu0 %v2307
    %v3174 = vpop.f32.mrb[0].mxu0
    %v3175 = vadd.f32 %v3134, %v3174
    %v3176 = vpop.f32.mrb[0].mxu0
    %v3177 = vadd.f32 %v3136, %v3176
    %v3178 = vpop.f32.mrb[0].mxu0
    %v3179 = vpop.f32.mrb[0].mxu0
    %3180 = vdwg.mxu0
    %3181 = vmatprep.subr.bf16.mxu0 %v2846
    %3182 = vmatpush1.bf16.msra.mxu0 %v2845
    %3183 = vmatprep.subr.bf16.mxu0 %v2850
    %3184 = vmatpush1.bf16.msra.mxu0 %v2849
    %3185 = vmatprep.subr.bf16.mxu0 %v2854
    %3186 = vmatpush1.bf16.msra.mxu0 %v2853
    %3187 = vmatprep.subr.bf16.mxu0 %v2858
    %3188 = vmatpush1.bf16.msra.mxu0 %v2857
    %3189 = vmatprep.subr.bf16.mxu0 %v2862
    %3190 = vmatpush1.bf16.msra.mxu0 %v2861
    %3191 = vmatprep.subr.bf16.mxu0 %v2866
    %3192 = vmatpush1.bf16.msra.mxu0 %v2865
    %3193 = vmatprep.subr.bf16.mxu0 %v2870
    %3194 = vmatpush1.bf16.msra.mxu0 %v2869
    %3195 = vmatprep.subr.bf16.mxu0 %v2874
    %3196 = vmatpush1.bf16.msra.mxu0 %v2873
    %3197 = vmatprep.subr.bf16.mxu0 %v2878
    %3198 = vmatpush1.bf16.msra.mxu0 %v2877
    %3199 = vmatprep.subr.bf16.mxu0 %v2882
    %3200 = vmatpush1.bf16.msra.mxu0 %v2881
    %3201 = vmatprep.subr.bf16.mxu0 %v2886
    %3202 = vmatpush1.bf16.msra.mxu0 %v2885
    %3203 = vmatprep.subr.bf16.mxu0 %v2890
    %3204 = vmatpush1.bf16.msra.mxu0 %v2889
    %3205 = vmatprep.subr.bf16.mxu0 %v2894
    %3206 = vmatpush1.bf16.msra.mxu0 %v2893
    %3207 = vmatprep.subr.bf16.mxu0 %v2898
    %3208 = vmatpush1.bf16.msra.mxu0 %v2897
    %3209 = vmatprep.subr.bf16.mxu0 %v2902
    %3210 = vmatpush1.bf16.msra.mxu0 %v2901
    %3211 = vmatprep.subr.bf16.mxu0 %v2906
    %3212 = vmatpush1.bf16.msra.mxu0 %v2905
    %3213 = vmatprep.mubr.bf16.mxu0 %v2306
    %3214 = vmatmul.mubr.bf16.gmra.mrb[0].mxu0 %v2305
    %v3215 = vpop.f32.mrb[0].mxu0
    %v3216 = vadd.f32 %v2450, %v3215
    %v3217 = vpop.f32.mrb[0].mxu0
    %v3218 = vadd.f32 %v2454, %v3217
    %v3219 = vpop.f32.mrb[0].mxu0
    %v3220 = vpop.f32.mrb[0].mxu0
    %3221 = vdwg.mxu0
    %3222 = vmatprep.subr.bf16.mxu0 %v2910
    %3223 = vmatpush1.bf16.msra.mxu0 %v2909
    %3224 = vmatprep.subr.bf16.mxu0 %v2914
    %3225 = vmatpush1.bf16.msra.mxu0 %v2913
    %3226 = vmatprep.subr.bf16.mxu0 %v2918
    %3227 = vmatpush1.bf16.msra.mxu0 %v2917
    %3228 = vmatprep.subr.bf16.mxu0 %v2922
    %3229 = vmatpush1.bf16.msra.mxu0 %v2921
    %3230 = vmatprep.subr.bf16.mxu0 %v2926
    %3231 = vmatpush1.bf16.msra.mxu0 %v2925
    %3232 = vmatprep.subr.bf16.mxu0 %v2930
    %3233 = vmatpush1.bf16.msra.mxu0 %v2929
    %3234 = vmatprep.subr.bf16.mxu0 %v2934
    %3235 = vmatpush1.bf16.msra.mxu0 %v2933
    %3236 = vmatprep.subr.bf16.mxu0 %v2938
    %3237 = vmatpush1.bf16.msra.mxu0 %v2937
    %3238 = vmatprep.subr.bf16.mxu0 %v2942
    %3239 = vmatpush1.bf16.msra.mxu0 %v2941
    %3240 = vmatprep.subr.bf16.mxu0 %v2946
    %3241 = vmatpush1.bf16.msra.mxu0 %v2945
    %3242 = vmatprep.subr.bf16.mxu0 %v2950
    %3243 = vmatpush1.bf16.msra.mxu0 %v2949
    %3244 = vmatprep.subr.bf16.mxu0 %v2954
    %3245 = vmatpush1.bf16.msra.mxu0 %v2953
    %3246 = vmatprep.subr.bf16.mxu0 %v2958
    %3247 = vmatpush1.bf16.msra.mxu0 %v2957
    %3248 = vmatprep.subr.bf16.mxu0 %v2962
    %3249 = vmatpush1.bf16.msra.mxu0 %v2961
    %3250 = vmatprep.subr.bf16.mxu0 %v2966
    %3251 = vmatpush1.bf16.msra.mxu0 %v2965
    %3252 = vmatprep.subr.bf16.mxu0 %v2970
    %3253 = vmatpush1.bf16.msra.mxu0 %v2969
    %3254 = vmatprep.mubr.bf16.mxu0 %v2308
    %3255 = vmatmul.mubr.bf16.gmra.mrb[0].mxu0 %v2307
    %v3256 = vpop.f32.mrb[0].mxu0
    %v3257 = vadd.f32 %v3216, %v3256
    %v3258 = vpop.f32.mrb[0].mxu0
    %v3259 = vadd.f32 %v3218, %v3258
    %v3260 = vpop.f32.mrb[0].mxu0
    %v3261 = vpop.f32.mrb[0].mxu0
    %3262 = vdwg.mxu0
    %v3263 = vmax.f32 %v3175, 0.0
    %v3264 = vmax.f32 %v3177, 0.0
    %v3265 = vmax.f32 %v3257, 0.0
    %v3266 = vmax.f32 %v3259, 0.0
    %v3267 = vpack.c.bf16 %v3263, %v3263
    %v3268 = vpack.c.bf16 %v3264, %v3264
    %v3269 = vpack.c.bf16 %v3265, %v3265
    %v3270 = vpack.c.bf16 %v3266, %v3266
    %v3271 = vld [vmem:[#allocation10] sm:$0xff]
    %v3272 = vld [vmem:[#allocation10 + $0x8] sm:$0xff]
    %v3273 = vld [vmem:[#allocation10 + $0x10] sm:$0xff]
    %v3274 = vld [vmem:[#allocation10 + $0x18] sm:$0xff]
    %v3275 = vld [vmem:[#allocation10 + $0x20] sm:$0xff]
    %v3276 = vld [vmem:[#allocation10 + $0x28] sm:$0xff]
    %v3277 = vld [vmem:[#allocation10 + $0x30] sm:$0xff]
    %v3278 = vld [vmem:[#allocation10 + $0x38] sm:$0xff]
    %v3279 = vld [vmem:[#allocation10 + $0x40] sm:$0xff]
    %v3280 = vld [vmem:[#allocation10 + $0x48] sm:$0xff]
    %v3281 = vld [vmem:[#allocation10 + $0x50] sm:$0xff]
    %v3282 = vld [vmem:[#allocation10 + $0x58] sm:$0xff]
    %v3283 = vld [vmem:[#allocation10 + $0x60] sm:$0xff]
    %v3284 = vld [vmem:[#allocation10 + $0x68] sm:$0xff]
    %v3285 = vld [vmem:[#allocation10 + $0x70] sm:$0xff]
    %v3286 = vld [vmem:[#allocation10 + $0x78] sm:$0xff]
    %v3287 = vld [vmem:[#allocation10 + $0x80] sm:$0xff]
    %v3288 = vld [vmem:[#allocation10 + $0x88] sm:$0xff]
    %v3289 = vld [vmem:[#allocation10 + $0x90] sm:$0xff]
    %v3290 = vld [vmem:[#allocation10 + $0x98] sm:$0xff]
    %v3291 = vld [vmem:[#allocation10 + $0xa0] sm:$0xff]
    %v3292 = vld [vmem:[#allocation10 + $0xa8] sm:$0xff]
    %v3293 = vld [vmem:[#allocation10 + $0xb0] sm:$0xff]
    %v3294 = vld [vmem:[#allocation10 + $0xb8] sm:$0xff]
    %v3295 = vld [vmem:[#allocation10 + $0xc0] sm:$0xff]
    %v3296 = vld [vmem:[#allocation10 + $0xc8] sm:$0xff]
    %v3297 = vld [vmem:[#allocation10 + $0xd0] sm:$0xff]
    %v3298 = vld [vmem:[#allocation10 + $0xd8] sm:$0xff]
    %v3299 = vld [vmem:[#allocation10 + $0xe0] sm:$0xff]
    %v3300 = vld [vmem:[#allocation10 + $0xe8] sm:$0xff]
    %v3301 = vld [vmem:[#allocation10 + $0xf0] sm:$0xff]
    %v3302 = vld [vmem:[#allocation10 + $0xf8] sm:$0xff]
    %v3303 = vld [vmem:[#allocation10 + $0x100] sm:$0xff]
    %v3304 = vld [vmem:[#allocation10 + $0x108] sm:$0xff]
    %v3305 = vld [vmem:[#allocation10 + $0x110] sm:$0xff]
    %v3306 = vld [vmem:[#allocation10 + $0x118] sm:$0xff]
    %v3307 = vld [vmem:[#allocation10 + $0x120] sm:$0xff]
    %v3308 = vld [vmem:[#allocation10 + $0x128] sm:$0xff]
    %v3309 = vld [vmem:[#allocation10 + $0x130] sm:$0xff]
    %v3310 = vld [vmem:[#allocation10 + $0x138] sm:$0xff]
    %v3311 = vld [vmem:[#allocation10 + $0x140] sm:$0xff]
    %v3312 = vld [vmem:[#allocation10 + $0x148] sm:$0xff]
    %v3313 = vld [vmem:[#allocation10 + $0x150] sm:$0xff]
    %v3314 = vld [vmem:[#allocation10 + $0x158] sm:$0xff]
    %v3315 = vld [vmem:[#allocation10 + $0x160] sm:$0xff]
    %v3316 = vld [vmem:[#allocation10 + $0x168] sm:$0xff]
    %v3317 = vld [vmem:[#allocation10 + $0x170] sm:$0xff]
    %v3318 = vld [vmem:[#allocation10 + $0x178] sm:$0xff]
    %v3319 = vld [vmem:[#allocation10 + $0x180] sm:$0xff]
    %v3320 = vld [vmem:[#allocation10 + $0x188] sm:$0xff]
    %v3321 = vld [vmem:[#allocation10 + $0x190] sm:$0xff]
    %v3322 = vld [vmem:[#allocation10 + $0x198] sm:$0xff]
    %v3323 = vld [vmem:[#allocation10 + $0x1a0] sm:$0xff]
    %v3324 = vld [vmem:[#allocation10 + $0x1a8] sm:$0xff]
    %v3325 = vld [vmem:[#allocation10 + $0x1b0] sm:$0xff]
    %v3326 = vld [vmem:[#allocation10 + $0x1b8] sm:$0xff]
    %v3327 = vld [vmem:[#allocation10 + $0x1c0] sm:$0xff]
    %v3328 = vld [vmem:[#allocation10 + $0x1c8] sm:$0xff]
    %v3329 = vld [vmem:[#allocation10 + $0x1d0] sm:$0xff]
    %v3330 = vld [vmem:[#allocation10 + $0x1d8] sm:$0xff]
    %v3331 = vld [vmem:[#allocation10 + $0x1e0] sm:$0xff]
    %v3332 = vld [vmem:[#allocation10 + $0x1e8] sm:$0xff]
    %v3333 = vld [vmem:[#allocation10 + $0x1f0] sm:$0xff]
    %v3334 = vld [vmem:[#allocation10 + $0x1f8] sm:$0xff]
    %v3335 = vld [vmem:[#allocation10 + $0x200] sm:$0xff]
    %v3336 = vld [vmem:[#allocation10 + $0x208] sm:$0xff]
    %v3337 = vld [vmem:[#allocation10 + $0x210] sm:$0xff]
    %v3338 = vld [vmem:[#allocation10 + $0x218] sm:$0xff]
    %v3339 = vld [vmem:[#allocation10 + $0x220] sm:$0xff]
    %v3340 = vld [vmem:[#allocation10 + $0x228] sm:$0xff]
    %v3341 = vld [vmem:[#allocation10 + $0x230] sm:$0xff]
    %v3342 = vld [vmem:[#allocation10 + $0x238] sm:$0xff]
    %v3343 = vld [vmem:[#allocation10 + $0x240] sm:$0xff]
    %v3344 = vld [vmem:[#allocation10 + $0x248] sm:$0xff]
    %v3345 = vld [vmem:[#allocation10 + $0x250] sm:$0xff]
    %v3346 = vld [vmem:[#allocation10 + $0x258] sm:$0xff]
    %v3347 = vld [vmem:[#allocation10 + $0x260] sm:$0xff]
    %v3348 = vld [vmem:[#allocation10 + $0x268] sm:$0xff]
    %v3349 = vld [vmem:[#allocation10 + $0x270] sm:$0xff]
    %v3350 = vld [vmem:[#allocation10 + $0x278] sm:$0xff]
    %v3351 = vld [vmem:[#allocation10 + $0x280] sm:$0xff]
    %v3352 = vld [vmem:[#allocation10 + $0x288] sm:$0xff]
    %v3353 = vld [vmem:[#allocation10 + $0x290] sm:$0xff]
    %v3354 = vld [vmem:[#allocation10 + $0x298] sm:$0xff]
    %v3355 = vld [vmem:[#allocation10 + $0x2a0] sm:$0xff]
    %v3356 = vld [vmem:[#allocation10 + $0x2a8] sm:$0xff]
    %v3357 = vld [vmem:[#allocation10 + $0x2b0] sm:$0xff]
    %v3358 = vld [vmem:[#allocation10 + $0x2b8] sm:$0xff]
    %v3359 = vld [vmem:[#allocation10 + $0x2c0] sm:$0xff]
    %v3360 = vld [vmem:[#allocation10 + $0x2c8] sm:$0xff]
    %v3361 = vld [vmem:[#allocation10 + $0x2d0] sm:$0xff]
    %v3362 = vld [vmem:[#allocation10 + $0x2d8] sm:$0xff]
    %v3363 = vld [vmem:[#allocation10 + $0x2e0] sm:$0xff]
    %v3364 = vld [vmem:[#allocation10 + $0x2e8] sm:$0xff]
    %v3365 = vld [vmem:[#allocation10 + $0x2f0] sm:$0xff]
    %v3366 = vld [vmem:[#allocation10 + $0x2f8] sm:$0xff]
    %v3367 = vld [vmem:[#allocation10 + $0x300] sm:$0xff]
    %v3368 = vld [vmem:[#allocation10 + $0x308] sm:$0xff]
    %v3369 = vld [vmem:[#allocation10 + $0x310] sm:$0xff]
    %v3370 = vld [vmem:[#allocation10 + $0x318] sm:$0xff]
    %v3371 = vld [vmem:[#allocation10 + $0x320] sm:$0xff]
    %v3372 = vld [vmem:[#allocation10 + $0x328] sm:$0xff]
    %v3373 = vld [vmem:[#allocation10 + $0x330] sm:$0xff]
    %v3374 = vld [vmem:[#allocation10 + $0x338] sm:$0xff]
    %v3375 = vld [vmem:[#allocation10 + $0x340] sm:$0xff]
    %v3376 = vld [vmem:[#allocation10 + $0x348] sm:$0xff]
    %v3377 = vld [vmem:[#allocation10 + $0x350] sm:$0xff]
    %v3378 = vld [vmem:[#allocation10 + $0x358] sm:$0xff]
    %v3379 = vld [vmem:[#allocation10 + $0x360] sm:$0xff]
    %v3380 = vld [vmem:[#allocation10 + $0x368] sm:$0xff]
    %v3381 = vld [vmem:[#allocation10 + $0x370] sm:$0xff]
    %v3382 = vld [vmem:[#allocation10 + $0x378] sm:$0xff]
    %v3383 = vld [vmem:[#allocation10 + $0x380] sm:$0xff]
    %v3384 = vld [vmem:[#allocation10 + $0x388] sm:$0xff]
    %v3385 = vld [vmem:[#allocation10 + $0x390] sm:$0xff]
    %v3386 = vld [vmem:[#allocation10 + $0x398] sm:$0xff]
    %v3387 = vld [vmem:[#allocation10 + $0x3a0] sm:$0xff]
    %v3388 = vld [vmem:[#allocation10 + $0x3a8] sm:$0xff]
    %v3389 = vld [vmem:[#allocation10 + $0x3b0] sm:$0xff]
    %v3390 = vld [vmem:[#allocation10 + $0x3b8] sm:$0xff]
    %v3391 = vld [vmem:[#allocation10 + $0x3c0] sm:$0xff]
    %v3392 = vld [vmem:[#allocation10 + $0x3c8] sm:$0xff]
    %v3393 = vld [vmem:[#allocation10 + $0x3d0] sm:$0xff]
    %v3394 = vld [vmem:[#allocation10 + $0x3d8] sm:$0xff]
    %v3395 = vld [vmem:[#allocation10 + $0x3e0] sm:$0xff]
    %v3396 = vld [vmem:[#allocation10 + $0x3e8] sm:$0xff]
    %v3397 = vld [vmem:[#allocation10 + $0x3f0] sm:$0xff]
    %v3398 = vld [vmem:[#allocation10 + $0x3f8] sm:$0xff]
    %v3399 = vld [vmem:[#allocation10 + $0x400] sm:$0xff]
    %v3400 = vld [vmem:[#allocation10 + $0x408] sm:$0xff]
    %v3401 = vld [vmem:[#allocation10 + $0x410] sm:$0xff]
    %v3402 = vld [vmem:[#allocation10 + $0x418] sm:$0xff]
    %v3403 = vld [vmem:[#allocation10 + $0x420] sm:$0xff]
    %v3404 = vld [vmem:[#allocation10 + $0x428] sm:$0xff]
    %v3405 = vld [vmem:[#allocation10 + $0x430] sm:$0xff]
    %v3406 = vld [vmem:[#allocation10 + $0x438] sm:$0xff]
    %v3407 = vld [vmem:[#allocation10 + $0x440] sm:$0xff]
    %v3408 = vld [vmem:[#allocation10 + $0x448] sm:$0xff]
    %v3409 = vld [vmem:[#allocation10 + $0x450] sm:$0xff]
    %v3410 = vld [vmem:[#allocation10 + $0x458] sm:$0xff]
    %v3411 = vld [vmem:[#allocation10 + $0x460] sm:$0xff]
    %v3412 = vld [vmem:[#allocation10 + $0x468] sm:$0xff]
    %v3413 = vld [vmem:[#allocation10 + $0x470] sm:$0xff]
    %v3414 = vld [vmem:[#allocation10 + $0x478] sm:$0xff]
    %v3415 = vld [vmem:[#allocation10 + $0x480] sm:$0xff]
    %v3416 = vld [vmem:[#allocation10 + $0x488] sm:$0xff]
    %v3417 = vld [vmem:[#allocation10 + $0x490] sm:$0xff]
    %v3418 = vld [vmem:[#allocation10 + $0x498] sm:$0xff]
    %v3419 = vld [vmem:[#allocation10 + $0x4a0] sm:$0xff]
    %v3420 = vld [vmem:[#allocation10 + $0x4a8] sm:$0xff]
    %v3421 = vld [vmem:[#allocation10 + $0x4b0] sm:$0xff]
    %v3422 = vld [vmem:[#allocation10 + $0x4b8] sm:$0xff]
    %v3423 = vld [vmem:[#allocation10 + $0x4c0] sm:$0xff]
    %v3424 = vld [vmem:[#allocation10 + $0x4c8] sm:$0xff]
    %v3425 = vld [vmem:[#allocation10 + $0x4d0] sm:$0xff]
    %v3426 = vld [vmem:[#allocation10 + $0x4d8] sm:$0xff]
    %v3427 = vld [vmem:[#allocation10 + $0x4e0] sm:$0xff]
    %v3428 = vld [vmem:[#allocation10 + $0x4e8] sm:$0xff]
    %v3429 = vld [vmem:[#allocation10 + $0x4f0] sm:$0xff]
    %v3430 = vld [vmem:[#allocation10 + $0x4f8] sm:$0xff]
    %v3431 = vld [vmem:[#allocation10 + $0x500] sm:$0xff]
    %v3432 = vld [vmem:[#allocation10 + $0x508] sm:$0xff]
    %v3433 = vld [vmem:[#allocation10 + $0x510] sm:$0xff]
    %v3434 = vld [vmem:[#allocation10 + $0x518] sm:$0xff]
    %v3435 = vld [vmem:[#allocation10 + $0x520] sm:$0xff]
    %v3436 = vld [vmem:[#allocation10 + $0x528] sm:$0xff]
    %v3437 = vld [vmem:[#allocation10 + $0x530] sm:$0xff]
    %v3438 = vld [vmem:[#allocation10 + $0x538] sm:$0xff]
    %v3439 = vld [vmem:[#allocation10 + $0x540] sm:$0xff]
    %v3440 = vld [vmem:[#allocation10 + $0x548] sm:$0xff]
    %v3441 = vld [vmem:[#allocation10 + $0x550] sm:$0xff]
    %v3442 = vld [vmem:[#allocation10 + $0x558] sm:$0xff]
    %v3443 = vld [vmem:[#allocation10 + $0x560] sm:$0xff]
    %v3444 = vld [vmem:[#allocation10 + $0x568] sm:$0xff]
    %v3445 = vld [vmem:[#allocation10 + $0x570] sm:$0xff]
    %v3446 = vld [vmem:[#allocation10 + $0x578] sm:$0xff]
    %v3447 = vld [vmem:[#allocation10 + $0x580] sm:$0xff]
    %v3448 = vld [vmem:[#allocation10 + $0x588] sm:$0xff]
    %v3449 = vld [vmem:[#allocation10 + $0x590] sm:$0xff]
    %v3450 = vld [vmem:[#allocation10 + $0x598] sm:$0xff]
    %v3451 = vld [vmem:[#allocation10 + $0x5a0] sm:$0xff]
    %v3452 = vld [vmem:[#allocation10 + $0x5a8] sm:$0xff]
    %v3453 = vld [vmem:[#allocation10 + $0x5b0] sm:$0xff]
    %v3454 = vld [vmem:[#allocation10 + $0x5b8] sm:$0xff]
    %v3455 = vld [vmem:[#allocation10 + $0x5c0] sm:$0xff]
    %v3456 = vld [vmem:[#allocation10 + $0x5c8] sm:$0xff]
    %v3457 = vld [vmem:[#allocation10 + $0x5d0] sm:$0xff]
    %v3458 = vld [vmem:[#allocation10 + $0x5d8] sm:$0xff]
    %v3459 = vld [vmem:[#allocation10 + $0x5e0] sm:$0xff]
    %v3460 = vld [vmem:[#allocation10 + $0x5e8] sm:$0xff]
    %v3461 = vld [vmem:[#allocation10 + $0x5f0] sm:$0xff]
    %v3462 = vld [vmem:[#allocation10 + $0x5f8] sm:$0xff]
    %v3463 = vld [vmem:[#allocation10 + $0x600] sm:$0xff]
    %v3464 = vld [vmem:[#allocation10 + $0x608] sm:$0xff]
    %v3465 = vld [vmem:[#allocation10 + $0x610] sm:$0xff]
    %v3466 = vld [vmem:[#allocation10 + $0x618] sm:$0xff]
    %v3467 = vld [vmem:[#allocation10 + $0x620] sm:$0xff]
    %v3468 = vld [vmem:[#allocation10 + $0x628] sm:$0xff]
    %v3469 = vld [vmem:[#allocation10 + $0x630] sm:$0xff]
    %v3470 = vld [vmem:[#allocation10 + $0x638] sm:$0xff]
    %v3471 = vld [vmem:[#allocation10 + $0x640] sm:$0xff]
    %v3472 = vld [vmem:[#allocation10 + $0x648] sm:$0xff]
    %v3473 = vld [vmem:[#allocation10 + $0x650] sm:$0xff]
    %v3474 = vld [vmem:[#allocation10 + $0x658] sm:$0xff]
    %v3475 = vld [vmem:[#allocation10 + $0x660] sm:$0xff]
    %v3476 = vld [vmem:[#allocation10 + $0x668] sm:$0xff]
    %v3477 = vld [vmem:[#allocation10 + $0x670] sm:$0xff]
    %v3478 = vld [vmem:[#allocation10 + $0x678] sm:$0xff]
    %v3479 = vld [vmem:[#allocation10 + $0x680] sm:$0xff]
    %v3480 = vld [vmem:[#allocation10 + $0x688] sm:$0xff]
    %v3481 = vld [vmem:[#allocation10 + $0x690] sm:$0xff]
    %v3482 = vld [vmem:[#allocation10 + $0x698] sm:$0xff]
    %v3483 = vld [vmem:[#allocation10 + $0x6a0] sm:$0xff]
    %v3484 = vld [vmem:[#allocation10 + $0x6a8] sm:$0xff]
    %v3485 = vld [vmem:[#allocation10 + $0x6b0] sm:$0xff]
    %v3486 = vld [vmem:[#allocation10 + $0x6b8] sm:$0xff]
    %v3487 = vld [vmem:[#allocation10 + $0x6c0] sm:$0xff]
    %v3488 = vld [vmem:[#allocation10 + $0x6c8] sm:$0xff]
    %v3489 = vld [vmem:[#allocation10 + $0x6d0] sm:$0xff]
    %v3490 = vld [vmem:[#allocation10 + $0x6d8] sm:$0xff]
    %v3491 = vld [vmem:[#allocation10 + $0x6e0] sm:$0xff]
    %v3492 = vld [vmem:[#allocation10 + $0x6e8] sm:$0xff]
    %v3493 = vld [vmem:[#allocation10 + $0x6f0] sm:$0xff]
    %v3494 = vld [vmem:[#allocation10 + $0x6f8] sm:$0xff]
    %v3495 = vld [vmem:[#allocation10 + $0x700] sm:$0xff]
    %v3496 = vld [vmem:[#allocation10 + $0x708] sm:$0xff]
    %v3497 = vld [vmem:[#allocation10 + $0x710] sm:$0xff]
    %v3498 = vld [vmem:[#allocation10 + $0x718] sm:$0xff]
    %v3499 = vld [vmem:[#allocation10 + $0x720] sm:$0xff]
    %v3500 = vld [vmem:[#allocation10 + $0x728] sm:$0xff]
    %v3501 = vld [vmem:[#allocation10 + $0x730] sm:$0xff]
    %v3502 = vld [vmem:[#allocation10 + $0x738] sm:$0xff]
    %v3503 = vld [vmem:[#allocation10 + $0x740] sm:$0xff]
    %v3504 = vld [vmem:[#allocation10 + $0x748] sm:$0xff]
    %v3505 = vld [vmem:[#allocation10 + $0x750] sm:$0xff]
    %v3506 = vld [vmem:[#allocation10 + $0x758] sm:$0xff]
    %v3507 = vld [vmem:[#allocation10 + $0x760] sm:$0xff]
    %v3508 = vld [vmem:[#allocation10 + $0x768] sm:$0xff]
    %v3509 = vld [vmem:[#allocation10 + $0x770] sm:$0xff]
    %v3510 = vld [vmem:[#allocation10 + $0x778] sm:$0xff]
    %v3511 = vld [vmem:[#allocation10 + $0x780] sm:$0xff]
    %v3512 = vld [vmem:[#allocation10 + $0x788] sm:$0xff]
    %v3513 = vld [vmem:[#allocation10 + $0x790] sm:$0xff]
    %v3514 = vld [vmem:[#allocation10 + $0x798] sm:$0xff]
    %v3515 = vld [vmem:[#allocation10 + $0x7a0] sm:$0xff]
    %v3516 = vld [vmem:[#allocation10 + $0x7a8] sm:$0xff]
    %v3517 = vld [vmem:[#allocation10 + $0x7b0] sm:$0xff]
    %v3518 = vld [vmem:[#allocation10 + $0x7b8] sm:$0xff]
    %v3519 = vld [vmem:[#allocation10 + $0x7c0] sm:$0xff]
    %v3520 = vld [vmem:[#allocation10 + $0x7c8] sm:$0xff]
    %v3521 = vld [vmem:[#allocation10 + $0x7d0] sm:$0xff]
    %v3522 = vld [vmem:[#allocation10 + $0x7d8] sm:$0xff]
    %v3523 = vld [vmem:[#allocation10 + $0x7e0] sm:$0xff]
    %v3524 = vld [vmem:[#allocation10 + $0x7e8] sm:$0xff]
    %v3525 = vld [vmem:[#allocation10 + $0x7f0] sm:$0xff]
    %v3526 = vld [vmem:[#allocation10 + $0x7f8] sm:$0xff]
    %v3527 = vld [vmem:[#allocation11] sm:$0xff]
    %v3529 = vlaneseq
    %v3530 = vshrl.u32 %v3529, 7
    %v3531 = vsub.s32 0, %v3530
    %v3532 = vrot.slane %v3527, %v3531
    %v3533 = vlaneseq
    %v3534 = vshrl.u32 %v3533, 7
    %v3535 = vsub.s32 1, %v3534
    %v3536 = vrot.slane %v3527, %v3535
    %v3537 = vlaneseq
    %v3538 = vshrl.u32 %v3537, 7
    %v3539 = vsub.s32 2, %v3538
    %v3540 = vrot.slane %v3527, %v3539
    %v3541 = vlaneseq
    %v3542 = vshrl.u32 %v3541, 7
    %v3543 = vsub.s32 3, %v3542
    %v3544 = vrot.slane %v3527, %v3543
    %v3545 = vlaneseq
    %v3546 = vshrl.u32 %v3545, 7
    %v3547 = vsub.s32 4, %v3546
    %v3548 = vrot.slane %v3527, %v3547
    %v3549 = vlaneseq
    %v3550 = vshrl.u32 %v3549, 7
    %v3551 = vsub.s32 5, %v3550
    %v3552 = vrot.slane %v3527, %v3551
    %v3553 = vlaneseq
    %v3554 = vshrl.u32 %v3553, 7
    %v3555 = vsub.s32 6, %v3554
    %v3556 = vrot.slane %v3527, %v3555
    %v3557 = vlaneseq
    %v3558 = vshrl.u32 %v3557, 7
    %v3559 = vsub.s32 7, %v3558
    %v3560 = vrot.slane %v3527, %v3559
    %v3825 = vunpack.c.l.b16 %v3271
    %v3826 = vunpack.c.h.b16 %v3271
    %v3827 = vunpack.c.l.b16 %v3272
    %v3828 = vunpack.c.h.b16 %v3272
    %v3829 = vunpack.c.l.b16 %v3273
    %v3830 = vunpack.c.h.b16 %v3273
    %v3831 = vunpack.c.l.b16 %v3274
    %v3832 = vunpack.c.h.b16 %v3274
    %v3833 = vunpack.c.l.b16 %v3275
    %v3834 = vunpack.c.h.b16 %v3275
    %v3835 = vunpack.c.l.b16 %v3276
    %v3836 = vunpack.c.h.b16 %v3276
    %v3837 = vunpack.c.l.b16 %v3277
    %v3838 = vunpack.c.h.b16 %v3277
    %v3839 = vunpack.c.l.b16 %v3278
    %v3840 = vunpack.c.h.b16 %v3278
    %v3841 = vunpack.c.l.b16 %v3279
    %v3842 = vunpack.c.h.b16 %v3279
    %v3843 = vunpack.c.l.b16 %v3280
    %v3844 = vunpack.c.h.b16 %v3280
    %v3845 = vunpack.c.l.b16 %v3281
    %v3846 = vunpack.c.h.b16 %v3281
    %v3847 = vunpack.c.l.b16 %v3282
    %v3848 = vunpack.c.h.b16 %v3282
    %v3849 = vunpack.c.l.b16 %v3283
    %v3850 = vunpack.c.h.b16 %v3283
    %v3851 = vunpack.c.l.b16 %v3284
    %v3852 = vunpack.c.h.b16 %v3284
    %v3853 = vunpack.c.l.b16 %v3285
    %v3854 = vunpack.c.h.b16 %v3285
    %v3855 = vunpack.c.l.b16 %v3286
    %v3856 = vunpack.c.h.b16 %v3286
    %v3857 = vunpack.c.l.b16 %v3287
    %v3858 = vunpack.c.h.b16 %v3287
    %v3859 = vunpack.c.l.b16 %v3288
    %v3860 = vunpack.c.h.b16 %v3288
    %v3861 = vunpack.c.l.b16 %v3289
    %v3862 = vunpack.c.h.b16 %v3289
    %v3863 = vunpack.c.l.b16 %v3290
    %v3864 = vunpack.c.h.b16 %v3290
    %v3865 = vunpack.c.l.b16 %v3291
    %v3866 = vunpack.c.h.b16 %v3291
    %v3867 = vunpack.c.l.b16 %v3292
    %v3868 = vunpack.c.h.b16 %v3292
    %v3869 = vunpack.c.l.b16 %v3293
    %v3870 = vunpack.c.h.b16 %v3293
    %v3871 = vunpack.c.l.b16 %v3294
    %v3872 = vunpack.c.h.b16 %v3294
    %v3873 = vunpack.c.l.b16 %v3295
    %v3874 = vunpack.c.h.b16 %v3295
    %v3875 = vunpack.c.l.b16 %v3296
    %v3876 = vunpack.c.h.b16 %v3296
    %v3877 = vunpack.c.l.b16 %v3297
    %v3878 = vunpack.c.h.b16 %v3297
    %v3879 = vunpack.c.l.b16 %v3298
    %v3880 = vunpack.c.h.b16 %v3298
    %v3881 = vunpack.c.l.b16 %v3299
    %v3882 = vunpack.c.h.b16 %v3299
    %v3883 = vunpack.c.l.b16 %v3300
    %v3884 = vunpack.c.h.b16 %v3300
    %v3885 = vunpack.c.l.b16 %v3301
    %v3886 = vunpack.c.h.b16 %v3301
    %v3887 = vunpack.c.l.b16 %v3302
    %v3888 = vunpack.c.h.b16 %v3302
    %v3889 = vunpack.c.l.b16 %v3303
    %v3890 = vunpack.c.h.b16 %v3303
    %v3891 = vunpack.c.l.b16 %v3304
    %v3892 = vunpack.c.h.b16 %v3304
    %v3893 = vunpack.c.l.b16 %v3305
    %v3894 = vunpack.c.h.b16 %v3305
    %v3895 = vunpack.c.l.b16 %v3306
    %v3896 = vunpack.c.h.b16 %v3306
    %v3897 = vunpack.c.l.b16 %v3307
    %v3898 = vunpack.c.h.b16 %v3307
    %v3899 = vunpack.c.l.b16 %v3308
    %v3900 = vunpack.c.h.b16 %v3308
    %v3901 = vunpack.c.l.b16 %v3309
    %v3902 = vunpack.c.h.b16 %v3309
    %v3903 = vunpack.c.l.b16 %v3310
    %v3904 = vunpack.c.h.b16 %v3310
    %v3905 = vunpack.c.l.b16 %v3311
    %v3906 = vunpack.c.h.b16 %v3311
    %v3907 = vunpack.c.l.b16 %v3312
    %v3908 = vunpack.c.h.b16 %v3312
    %v3909 = vunpack.c.l.b16 %v3313
    %v3910 = vunpack.c.h.b16 %v3313
    %v3911 = vunpack.c.l.b16 %v3314
    %v3912 = vunpack.c.h.b16 %v3314
    %v3913 = vunpack.c.l.b16 %v3315
    %v3914 = vunpack.c.h.b16 %v3315
    %v3915 = vunpack.c.l.b16 %v3316
    %v3916 = vunpack.c.h.b16 %v3316
    %v3917 = vunpack.c.l.b16 %v3317
    %v3918 = vunpack.c.h.b16 %v3317
    %v3919 = vunpack.c.l.b16 %v3318
    %v3920 = vunpack.c.h.b16 %v3318
    %v3921 = vunpack.c.l.b16 %v3319
    %v3922 = vunpack.c.h.b16 %v3319
    %v3923 = vunpack.c.l.b16 %v3320
    %v3924 = vunpack.c.h.b16 %v3320
    %v3925 = vunpack.c.l.b16 %v3321
    %v3926 = vunpack.c.h.b16 %v3321
    %v3927 = vunpack.c.l.b16 %v3322
    %v3928 = vunpack.c.h.b16 %v3322
    %v3929 = vunpack.c.l.b16 %v3323
    %v3930 = vunpack.c.h.b16 %v3323
    %v3931 = vunpack.c.l.b16 %v3324
    %v3932 = vunpack.c.h.b16 %v3324
    %v3933 = vunpack.c.l.b16 %v3325
    %v3934 = vunpack.c.h.b16 %v3325
    %v3935 = vunpack.c.l.b16 %v3326
    %v3936 = vunpack.c.h.b16 %v3326
    %v3937 = vunpack.c.l.b16 %v3327
    %v3938 = vunpack.c.h.b16 %v3327
    %v3939 = vunpack.c.l.b16 %v3328
    %v3940 = vunpack.c.h.b16 %v3328
    %v3941 = vunpack.c.l.b16 %v3329
    %v3942 = vunpack.c.h.b16 %v3329
    %v3943 = vunpack.c.l.b16 %v3330
    %v3944 = vunpack.c.h.b16 %v3330
    %v3945 = vunpack.c.l.b16 %v3331
    %v3946 = vunpack.c.h.b16 %v3331
    %v3947 = vunpack.c.l.b16 %v3332
    %v3948 = vunpack.c.h.b16 %v3332
    %v3949 = vunpack.c.l.b16 %v3333
    %v3950 = vunpack.c.h.b16 %v3333
    %v3951 = vunpack.c.l.b16 %v3334
    %v3952 = vunpack.c.h.b16 %v3334
    %v3953 = vunpack.c.l.b16 %v3335
    %v3954 = vunpack.c.h.b16 %v3335
    %v3955 = vunpack.c.l.b16 %v3336
    %v3956 = vunpack.c.h.b16 %v3336
    %v3957 = vunpack.c.l.b16 %v3337
    %v3958 = vunpack.c.h.b16 %v3337
    %v3959 = vunpack.c.l.b16 %v3338
    %v3960 = vunpack.c.h.b16 %v3338
    %v3961 = vunpack.c.l.b16 %v3339
    %v3962 = vunpack.c.h.b16 %v3339
    %v3963 = vunpack.c.l.b16 %v3340
    %v3964 = vunpack.c.h.b16 %v3340
    %v3965 = vunpack.c.l.b16 %v3341
    %v3966 = vunpack.c.h.b16 %v3341
    %v3967 = vunpack.c.l.b16 %v3342
    %v3968 = vunpack.c.h.b16 %v3342
    %v3969 = vunpack.c.l.b16 %v3343
    %v3970 = vunpack.c.h.b16 %v3343
    %v3971 = vunpack.c.l.b16 %v3344
    %v3972 = vunpack.c.h.b16 %v3344
    %v3973 = vunpack.c.l.b16 %v3345
    %v3974 = vunpack.c.h.b16 %v3345
    %v3975 = vunpack.c.l.b16 %v3346
    %v3976 = vunpack.c.h.b16 %v3346
    %v3977 = vunpack.c.l.b16 %v3347
    %v3978 = vunpack.c.h.b16 %v3347
    %v3979 = vunpack.c.l.b16 %v3348
    %v3980 = vunpack.c.h.b16 %v3348
    %v3981 = vunpack.c.l.b16 %v3349
    %v3982 = vunpack.c.h.b16 %v3349
    %v3983 = vunpack.c.l.b16 %v3350
    %v3984 = vunpack.c.h.b16 %v3350
    %v3985 = vunpack.c.l.b16 %v3351
    %v3986 = vunpack.c.h.b16 %v3351
    %v3987 = vunpack.c.l.b16 %v3352
    %v3988 = vunpack.c.h.b16 %v3352
    %v3989 = vunpack.c.l.b16 %v3353
    %v3990 = vunpack.c.h.b16 %v3353
    %v3991 = vunpack.c.l.b16 %v3354
    %v3992 = vunpack.c.h.b16 %v3354
    %v3993 = vunpack.c.l.b16 %v3355
    %v3994 = vunpack.c.h.b16 %v3355
    %v3995 = vunpack.c.l.b16 %v3356
    %v3996 = vunpack.c.h.b16 %v3356
    %v3997 = vunpack.c.l.b16 %v3357
    %v3998 = vunpack.c.h.b16 %v3357
    %v3999 = vunpack.c.l.b16 %v3358
    %v4000 = vunpack.c.h.b16 %v3358
    %v4001 = vunpack.c.l.b16 %v3359
    %v4002 = vunpack.c.h.b16 %v3359
    %v4003 = vunpack.c.l.b16 %v3360
    %v4004 = vunpack.c.h.b16 %v3360
    %v4005 = vunpack.c.l.b16 %v3361
    %v4006 = vunpack.c.h.b16 %v3361
    %v4007 = vunpack.c.l.b16 %v3362
    %v4008 = vunpack.c.h.b16 %v3362
    %v4009 = vunpack.c.l.b16 %v3363
    %v4010 = vunpack.c.h.b16 %v3363
    %v4011 = vunpack.c.l.b16 %v3364
    %v4012 = vunpack.c.h.b16 %v3364
    %v4013 = vunpack.c.l.b16 %v3365
    %v4014 = vunpack.c.h.b16 %v3365
    %v4015 = vunpack.c.l.b16 %v3366
    %v4016 = vunpack.c.h.b16 %v3366
    %v4017 = vunpack.c.l.b16 %v3367
    %v4018 = vunpack.c.h.b16 %v3367
    %v4019 = vunpack.c.l.b16 %v3368
    %v4020 = vunpack.c.h.b16 %v3368
    %v4021 = vunpack.c.l.b16 %v3369
    %v4022 = vunpack.c.h.b16 %v3369
    %v4023 = vunpack.c.l.b16 %v3370
    %v4024 = vunpack.c.h.b16 %v3370
    %v4025 = vunpack.c.l.b16 %v3371
    %v4026 = vunpack.c.h.b16 %v3371
    %v4027 = vunpack.c.l.b16 %v3372
    %v4028 = vunpack.c.h.b16 %v3372
    %v4029 = vunpack.c.l.b16 %v3373
    %v4030 = vunpack.c.h.b16 %v3373
    %v4031 = vunpack.c.l.b16 %v3374
    %v4032 = vunpack.c.h.b16 %v3374
    %v4033 = vunpack.c.l.b16 %v3375
    %v4034 = vunpack.c.h.b16 %v3375
    %v4035 = vunpack.c.l.b16 %v3376
    %v4036 = vunpack.c.h.b16 %v3376
    %v4037 = vunpack.c.l.b16 %v3377
    %v4038 = vunpack.c.h.b16 %v3377
    %v4039 = vunpack.c.l.b16 %v3378
    %v4040 = vunpack.c.h.b16 %v3378
    %v4041 = vunpack.c.l.b16 %v3379
    %v4042 = vunpack.c.h.b16 %v3379
    %v4043 = vunpack.c.l.b16 %v3380
    %v4044 = vunpack.c.h.b16 %v3380
    %v4045 = vunpack.c.l.b16 %v3381
    %v4046 = vunpack.c.h.b16 %v3381
    %v4047 = vunpack.c.l.b16 %v3382
    %v4048 = vunpack.c.h.b16 %v3382
    %v4049 = vunpack.c.l.b16 %v3383
    %v4050 = vunpack.c.h.b16 %v3383
    %v4051 = vunpack.c.l.b16 %v3384
    %v4052 = vunpack.c.h.b16 %v3384
    %v4053 = vunpack.c.l.b16 %v3385
    %v4054 = vunpack.c.h.b16 %v3385
    %v4055 = vunpack.c.l.b16 %v3386
    %v4056 = vunpack.c.h.b16 %v3386
    %v4057 = vunpack.c.l.b16 %v3387
    %v4058 = vunpack.c.h.b16 %v3387
    %v4059 = vunpack.c.l.b16 %v3388
    %v4060 = vunpack.c.h.b16 %v3388
    %v4061 = vunpack.c.l.b16 %v3389
    %v4062 = vunpack.c.h.b16 %v3389
    %v4063 = vunpack.c.l.b16 %v3390
    %v4064 = vunpack.c.h.b16 %v3390
    %v4065 = vunpack.c.l.b16 %v3391
    %v4066 = vunpack.c.h.b16 %v3391
    %v4067 = vunpack.c.l.b16 %v3392
    %v4068 = vunpack.c.h.b16 %v3392
    %v4069 = vunpack.c.l.b16 %v3393
    %v4070 = vunpack.c.h.b16 %v3393
    %v4071 = vunpack.c.l.b16 %v3394
    %v4072 = vunpack.c.h.b16 %v3394
    %v4073 = vunpack.c.l.b16 %v3395
    %v4074 = vunpack.c.h.b16 %v3395
    %v4075 = vunpack.c.l.b16 %v3396
    %v4076 = vunpack.c.h.b16 %v3396
    %v4077 = vunpack.c.l.b16 %v3397
    %v4078 = vunpack.c.h.b16 %v3397
    %v4079 = vunpack.c.l.b16 %v3398
    %v4080 = vunpack.c.h.b16 %v3398
    %v4081 = vunpack.c.l.b16 %v3399
    %v4082 = vunpack.c.h.b16 %v3399
    %v4083 = vunpack.c.l.b16 %v3400
    %v4084 = vunpack.c.h.b16 %v3400
    %v4085 = vunpack.c.l.b16 %v3401
    %v4086 = vunpack.c.h.b16 %v3401
    %v4087 = vunpack.c.l.b16 %v3402
    %v4088 = vunpack.c.h.b16 %v3402
    %v4089 = vunpack.c.l.b16 %v3403
    %v4090 = vunpack.c.h.b16 %v3403
    %v4091 = vunpack.c.l.b16 %v3404
    %v4092 = vunpack.c.h.b16 %v3404
    %v4093 = vunpack.c.l.b16 %v3405
    %v4094 = vunpack.c.h.b16 %v3405
    %v4095 = vunpack.c.l.b16 %v3406
    %v4096 = vunpack.c.h.b16 %v3406
    %v4097 = vunpack.c.l.b16 %v3407
    %v4098 = vunpack.c.h.b16 %v3407
    %v4099 = vunpack.c.l.b16 %v3408
    %v4100 = vunpack.c.h.b16 %v3408
    %v4101 = vunpack.c.l.b16 %v3409
    %v4102 = vunpack.c.h.b16 %v3409
    %v4103 = vunpack.c.l.b16 %v3410
    %v4104 = vunpack.c.h.b16 %v3410
    %v4105 = vunpack.c.l.b16 %v3411
    %v4106 = vunpack.c.h.b16 %v3411
    %v4107 = vunpack.c.l.b16 %v3412
    %v4108 = vunpack.c.h.b16 %v3412
    %v4109 = vunpack.c.l.b16 %v3413
    %v4110 = vunpack.c.h.b16 %v3413
    %v4111 = vunpack.c.l.b16 %v3414
    %v4112 = vunpack.c.h.b16 %v3414
    %v4113 = vunpack.c.l.b16 %v3415
    %v4114 = vunpack.c.h.b16 %v3415
    %v4115 = vunpack.c.l.b16 %v3416
    %v4116 = vunpack.c.h.b16 %v3416
    %v4117 = vunpack.c.l.b16 %v3417
    %v4118 = vunpack.c.h.b16 %v3417
    %v4119 = vunpack.c.l.b16 %v3418
    %v4120 = vunpack.c.h.b16 %v3418
    %v4121 = vunpack.c.l.b16 %v3419
    %v4122 = vunpack.c.h.b16 %v3419
    %v4123 = vunpack.c.l.b16 %v3420
    %v4124 = vunpack.c.h.b16 %v3420
    %v4125 = vunpack.c.l.b16 %v3421
    %v4126 = vunpack.c.h.b16 %v3421
    %v4127 = vunpack.c.l.b16 %v3422
    %v4128 = vunpack.c.h.b16 %v3422
    %v4129 = vunpack.c.l.b16 %v3423
    %v4130 = vunpack.c.h.b16 %v3423
    %v4131 = vunpack.c.l.b16 %v3424
    %v4132 = vunpack.c.h.b16 %v3424
    %v4133 = vunpack.c.l.b16 %v3425
    %v4134 = vunpack.c.h.b16 %v3425
    %v4135 = vunpack.c.l.b16 %v3426
    %v4136 = vunpack.c.h.b16 %v3426
    %v4137 = vunpack.c.l.b16 %v3427
    %v4138 = vunpack.c.h.b16 %v3427
    %v4139 = vunpack.c.l.b16 %v3428
    %v4140 = vunpack.c.h.b16 %v3428
    %v4141 = vunpack.c.l.b16 %v3429
    %v4142 = vunpack.c.h.b16 %v3429
    %v4143 = vunpack.c.l.b16 %v3430
    %v4144 = vunpack.c.h.b16 %v3430
    %v4145 = vunpack.c.l.b16 %v3431
    %v4146 = vunpack.c.h.b16 %v3431
    %v4147 = vunpack.c.l.b16 %v3432
    %v4148 = vunpack.c.h.b16 %v3432
    %v4149 = vunpack.c.l.b16 %v3433
    %v4150 = vunpack.c.h.b16 %v3433
    %v4151 = vunpack.c.l.b16 %v3434
    %v4152 = vunpack.c.h.b16 %v3434
    %v4153 = vunpack.c.l.b16 %v3435
    %v4154 = vunpack.c.h.b16 %v3435
    %v4155 = vunpack.c.l.b16 %v3436
    %v4156 = vunpack.c.h.b16 %v3436
    %v4157 = vunpack.c.l.b16 %v3437
    %v4158 = vunpack.c.h.b16 %v3437
    %v4159 = vunpack.c.l.b16 %v3438
    %v4160 = vunpack.c.h.b16 %v3438
    %v4161 = vunpack.c.l.b16 %v3439
    %v4162 = vunpack.c.h.b16 %v3439
    %v4163 = vunpack.c.l.b16 %v3440
    %v4164 = vunpack.c.h.b16 %v3440
    %v4165 = vunpack.c.l.b16 %v3441
    %v4166 = vunpack.c.h.b16 %v3441
    %v4167 = vunpack.c.l.b16 %v3442
    %v4168 = vunpack.c.h.b16 %v3442
    %v4169 = vunpack.c.l.b16 %v3443
    %v4170 = vunpack.c.h.b16 %v3443
    %v4171 = vunpack.c.l.b16 %v3444
    %v4172 = vunpack.c.h.b16 %v3444
    %v4173 = vunpack.c.l.b16 %v3445
    %v4174 = vunpack.c.h.b16 %v3445
    %v4175 = vunpack.c.l.b16 %v3446
    %v4176 = vunpack.c.h.b16 %v3446
    %v4177 = vunpack.c.l.b16 %v3447
    %v4178 = vunpack.c.h.b16 %v3447
    %v4179 = vunpack.c.l.b16 %v3448
    %v4180 = vunpack.c.h.b16 %v3448
    %v4181 = vunpack.c.l.b16 %v3449
    %v4182 = vunpack.c.h.b16 %v3449
    %v4183 = vunpack.c.l.b16 %v3450
    %v4184 = vunpack.c.h.b16 %v3450
    %v4185 = vunpack.c.l.b16 %v3451
    %v4186 = vunpack.c.h.b16 %v3451
    %v4187 = vunpack.c.l.b16 %v3452
    %v4188 = vunpack.c.h.b16 %v3452
    %v4189 = vunpack.c.l.b16 %v3453
    %v4190 = vunpack.c.h.b16 %v3453
    %v4191 = vunpack.c.l.b16 %v3454
    %v4192 = vunpack.c.h.b16 %v3454
    %v4193 = vunpack.c.l.b16 %v3455
    %v4194 = vunpack.c.h.b16 %v3455
    %v4195 = vunpack.c.l.b16 %v3456
    %v4196 = vunpack.c.h.b16 %v3456
    %v4197 = vunpack.c.l.b16 %v3457
    %v4198 = vunpack.c.h.b16 %v3457
    %v4199 = vunpack.c.l.b16 %v3458
    %v4200 = vunpack.c.h.b16 %v3458
    %v4201 = vunpack.c.l.b16 %v3459
    %v4202 = vunpack.c.h.b16 %v3459
    %v4203 = vunpack.c.l.b16 %v3460
    %v4204 = vunpack.c.h.b16 %v3460
    %v4205 = vunpack.c.l.b16 %v3461
    %v4206 = vunpack.c.h.b16 %v3461
    %v4207 = vunpack.c.l.b16 %v3462
    %v4208 = vunpack.c.h.b16 %v3462
    %v4209 = vunpack.c.l.b16 %v3463
    %v4210 = vunpack.c.h.b16 %v3463
    %v4211 = vunpack.c.l.b16 %v3464
    %v4212 = vunpack.c.h.b16 %v3464
    %v4213 = vunpack.c.l.b16 %v3465
    %v4214 = vunpack.c.h.b16 %v3465
    %v4215 = vunpack.c.l.b16 %v3466
    %v4216 = vunpack.c.h.b16 %v3466
    %v4217 = vunpack.c.l.b16 %v3467
    %v4218 = vunpack.c.h.b16 %v3467
    %v4219 = vunpack.c.l.b16 %v3468
    %v4220 = vunpack.c.h.b16 %v3468
    %v4221 = vunpack.c.l.b16 %v3469
    %v4222 = vunpack.c.h.b16 %v3469
    %v4223 = vunpack.c.l.b16 %v3470
    %v4224 = vunpack.c.h.b16 %v3470
    %v4225 = vunpack.c.l.b16 %v3471
    %v4226 = vunpack.c.h.b16 %v3471
    %v4227 = vunpack.c.l.b16 %v3472
    %v4228 = vunpack.c.h.b16 %v3472
    %v4229 = vunpack.c.l.b16 %v3473
    %v4230 = vunpack.c.h.b16 %v3473
    %v4231 = vunpack.c.l.b16 %v3474
    %v4232 = vunpack.c.h.b16 %v3474
    %v4233 = vunpack.c.l.b16 %v3475
    %v4234 = vunpack.c.h.b16 %v3475
    %v4235 = vunpack.c.l.b16 %v3476
    %v4236 = vunpack.c.h.b16 %v3476
    %v4237 = vunpack.c.l.b16 %v3477
    %v4238 = vunpack.c.h.b16 %v3477
    %v4239 = vunpack.c.l.b16 %v3478
    %v4240 = vunpack.c.h.b16 %v3478
    %v4241 = vunpack.c.l.b16 %v3479
    %v4242 = vunpack.c.h.b16 %v3479
    %v4243 = vunpack.c.l.b16 %v3480
    %v4244 = vunpack.c.h.b16 %v3480
    %v4245 = vunpack.c.l.b16 %v3481
    %v4246 = vunpack.c.h.b16 %v3481
    %v4247 = vunpack.c.l.b16 %v3482
    %v4248 = vunpack.c.h.b16 %v3482
    %v4249 = vunpack.c.l.b16 %v3483
    %v4250 = vunpack.c.h.b16 %v3483
    %v4251 = vunpack.c.l.b16 %v3484
    %v4252 = vunpack.c.h.b16 %v3484
    %v4253 = vunpack.c.l.b16 %v3485
    %v4254 = vunpack.c.h.b16 %v3485
    %v4255 = vunpack.c.l.b16 %v3486
    %v4256 = vunpack.c.h.b16 %v3486
    %v4257 = vunpack.c.l.b16 %v3487
    %v4258 = vunpack.c.h.b16 %v3487
    %v4259 = vunpack.c.l.b16 %v3488
    %v4260 = vunpack.c.h.b16 %v3488
    %v4261 = vunpack.c.l.b16 %v3489
    %v4262 = vunpack.c.h.b16 %v3489
    %v4263 = vunpack.c.l.b16 %v3490
    %v4264 = vunpack.c.h.b16 %v3490
    %v4265 = vunpack.c.l.b16 %v3491
    %v4266 = vunpack.c.h.b16 %v3491
    %v4267 = vunpack.c.l.b16 %v3492
    %v4268 = vunpack.c.h.b16 %v3492
    %v4269 = vunpack.c.l.b16 %v3493
    %v4270 = vunpack.c.h.b16 %v3493
    %v4271 = vunpack.c.l.b16 %v3494
    %v4272 = vunpack.c.h.b16 %v3494
    %v4273 = vunpack.c.l.b16 %v3495
    %v4274 = vunpack.c.h.b16 %v3495
    %v4275 = vunpack.c.l.b16 %v3496
    %v4276 = vunpack.c.h.b16 %v3496
    %v4277 = vunpack.c.l.b16 %v3497
    %v4278 = vunpack.c.h.b16 %v3497
    %v4279 = vunpack.c.l.b16 %v3498
    %v4280 = vunpack.c.h.b16 %v3498
    %v4281 = vunpack.c.l.b16 %v3499
    %v4282 = vunpack.c.h.b16 %v3499
    %v4283 = vunpack.c.l.b16 %v3500
    %v4284 = vunpack.c.h.b16 %v3500
    %v4285 = vunpack.c.l.b16 %v3501
    %v4286 = vunpack.c.h.b16 %v3501
    %v4287 = vunpack.c.l.b16 %v3502
    %v4288 = vunpack.c.h.b16 %v3502
    %v4289 = vunpack.c.l.b16 %v3503
    %v4290 = vunpack.c.h.b16 %v3503
    %v4291 = vunpack.c.l.b16 %v3504
    %v4292 = vunpack.c.h.b16 %v3504
    %v4293 = vunpack.c.l.b16 %v3505
    %v4294 = vunpack.c.h.b16 %v3505
    %v4295 = vunpack.c.l.b16 %v3506
    %v4296 = vunpack.c.h.b16 %v3506
    %v4297 = vunpack.c.l.b16 %v3507
    %v4298 = vunpack.c.h.b16 %v3507
    %v4299 = vunpack.c.l.b16 %v3508
    %v4300 = vunpack.c.h.b16 %v3508
    %v4301 = vunpack.c.l.b16 %v3509
    %v4302 = vunpack.c.h.b16 %v3509
    %v4303 = vunpack.c.l.b16 %v3510
    %v4304 = vunpack.c.h.b16 %v3510
    %v4305 = vunpack.c.l.b16 %v3511
    %v4306 = vunpack.c.h.b16 %v3511
    %v4307 = vunpack.c.l.b16 %v3512
    %v4308 = vunpack.c.h.b16 %v3512
    %v4309 = vunpack.c.l.b16 %v3513
    %v4310 = vunpack.c.h.b16 %v3513
    %v4311 = vunpack.c.l.b16 %v3514
    %v4312 = vunpack.c.h.b16 %v3514
    %v4313 = vunpack.c.l.b16 %v3515
    %v4314 = vunpack.c.h.b16 %v3515
    %v4315 = vunpack.c.l.b16 %v3516
    %v4316 = vunpack.c.h.b16 %v3516
    %v4317 = vunpack.c.l.b16 %v3517
    %v4318 = vunpack.c.h.b16 %v3517
    %v4319 = vunpack.c.l.b16 %v3518
    %v4320 = vunpack.c.h.b16 %v3518
    %v4321 = vunpack.c.l.b16 %v3519
    %v4322 = vunpack.c.h.b16 %v3519
    %v4323 = vunpack.c.l.b16 %v3520
    %v4324 = vunpack.c.h.b16 %v3520
    %v4325 = vunpack.c.l.b16 %v3521
    %v4326 = vunpack.c.h.b16 %v3521
    %v4327 = vunpack.c.l.b16 %v3522
    %v4328 = vunpack.c.h.b16 %v3522
    %v4329 = vunpack.c.l.b16 %v3523
    %v4330 = vunpack.c.h.b16 %v3523
    %v4331 = vunpack.c.l.b16 %v3524
    %v4332 = vunpack.c.h.b16 %v3524
    %v4333 = vunpack.c.l.b16 %v3525
    %v4334 = vunpack.c.h.b16 %v3525
    %v4335 = vunpack.c.l.b16 %v3526
    %v4336 = vunpack.c.h.b16 %v3526
    %v4337 = vpack.c.b16 %v3833, %v3825
    %v4338 = vpack.c.b16 %v3834, %v3826
    %v4339 = vpack.c.b16 %v3835, %v3827
    %v4340 = vpack.c.b16 %v3836, %v3828
    %v4341 = vpack.c.b16 %v3837, %v3829
    %v4342 = vpack.c.b16 %v3838, %v3830
    %v4343 = vpack.c.b16 %v3839, %v3831
    %v4344 = vpack.c.b16 %v3840, %v3832
    %v4345 = vpack.c.b16 %v3849, %v3841
    %v4346 = vpack.c.b16 %v3850, %v3842
    %v4347 = vpack.c.b16 %v3851, %v3843
    %v4348 = vpack.c.b16 %v3852, %v3844
    %v4349 = vpack.c.b16 %v3853, %v3845
    %v4350 = vpack.c.b16 %v3854, %v3846
    %v4351 = vpack.c.b16 %v3855, %v3847
    %v4352 = vpack.c.b16 %v3856, %v3848
    %v4353 = vpack.c.b16 %v3865, %v3857
    %v4354 = vpack.c.b16 %v3866, %v3858
    %v4355 = vpack.c.b16 %v3867, %v3859
    %v4356 = vpack.c.b16 %v3868, %v3860
    %v4357 = vpack.c.b16 %v3869, %v3861
    %v4358 = vpack.c.b16 %v3870, %v3862
    %v4359 = vpack.c.b16 %v3871, %v3863
    %v4360 = vpack.c.b16 %v3872, %v3864
    %v4361 = vpack.c.b16 %v3881, %v3873
    %v4362 = vpack.c.b16 %v3882, %v3874
    %v4363 = vpack.c.b16 %v3883, %v3875
    %v4364 = vpack.c.b16 %v3884, %v3876
    %v4365 = vpack.c.b16 %v3885, %v3877
    %v4366 = vpack.c.b16 %v3886, %v3878
    %v4367 = vpack.c.b16 %v3887, %v3879
    %v4368 = vpack.c.b16 %v3888, %v3880
    %v4369 = vpack.c.b16 %v3897, %v3889
    %v4370 = vpack.c.b16 %v3898, %v3890
    %v4371 = vpack.c.b16 %v3899, %v3891
    %v4372 = vpack.c.b16 %v3900, %v3892
    %v4373 = vpack.c.b16 %v3901, %v3893
    %v4374 = vpack.c.b16 %v3902, %v3894
    %v4375 = vpack.c.b16 %v3903, %v3895
    %v4376 = vpack.c.b16 %v3904, %v3896
    %v4377 = vpack.c.b16 %v3913, %v3905
    %v4378 = vpack.c.b16 %v3914, %v3906
    %v4379 = vpack.c.b16 %v3915, %v3907
    %v4380 = vpack.c.b16 %v3916, %v3908
    %v4381 = vpack.c.b16 %v3917, %v3909
    %v4382 = vpack.c.b16 %v3918, %v3910
    %v4383 = vpack.c.b16 %v3919, %v3911
    %v4384 = vpack.c.b16 %v3920, %v3912
    %v4385 = vpack.c.b16 %v3929, %v3921
    %v4386 = vpack.c.b16 %v3930, %v3922
    %v4387 = vpack.c.b16 %v3931, %v3923
    %v4388 = vpack.c.b16 %v3932, %v3924
    %v4389 = vpack.c.b16 %v3933, %v3925
    %v4390 = vpack.c.b16 %v3934, %v3926
    %v4391 = vpack.c.b16 %v3935, %v3927
    %v4392 = vpack.c.b16 %v3936, %v3928
    %v4393 = vpack.c.b16 %v3945, %v3937
    %v4394 = vpack.c.b16 %v3946, %v3938
    %v4395 = vpack.c.b16 %v3947, %v3939
    %v4396 = vpack.c.b16 %v3948, %v3940
    %v4397 = vpack.c.b16 %v3949, %v3941
    %v4398 = vpack.c.b16 %v3950, %v3942
    %v4399 = vpack.c.b16 %v3951, %v3943
    %v4400 = vpack.c.b16 %v3952, %v3944
    %v4401 = vpack.c.b16 %v3961, %v3953
    %v4402 = vpack.c.b16 %v3962, %v3954
    %v4403 = vpack.c.b16 %v3963, %v3955
    %v4404 = vpack.c.b16 %v3964, %v3956
    %v4405 = vpack.c.b16 %v3965, %v3957
    %v4406 = vpack.c.b16 %v3966, %v3958
    %v4407 = vpack.c.b16 %v3967, %v3959
    %v4408 = vpack.c.b16 %v3968, %v3960
    %v4409 = vpack.c.b16 %v3977, %v3969
    %v4410 = vpack.c.b16 %v3978, %v3970
    %v4411 = vpack.c.b16 %v3979, %v3971
    %v4412 = vpack.c.b16 %v3980, %v3972
    %v4413 = vpack.c.b16 %v3981, %v3973
    %v4414 = vpack.c.b16 %v3982, %v3974
    %v4415 = vpack.c.b16 %v3983, %v3975
    %v4416 = vpack.c.b16 %v3984, %v3976
    %v4417 = vpack.c.b16 %v3993, %v3985
    %v4418 = vpack.c.b16 %v3994, %v3986
    %v4419 = vpack.c.b16 %v3995, %v3987
    %v4420 = vpack.c.b16 %v3996, %v3988
    %v4421 = vpack.c.b16 %v3997, %v3989
    %v4422 = vpack.c.b16 %v3998, %v3990
    %v4423 = vpack.c.b16 %v3999, %v3991
    %v4424 = vpack.c.b16 %v4000, %v3992
    %v4425 = vpack.c.b16 %v4009, %v4001
    %v4426 = vpack.c.b16 %v4010, %v4002
    %v4427 = vpack.c.b16 %v4011, %v4003
    %v4428 = vpack.c.b16 %v4012, %v4004
    %v4429 = vpack.c.b16 %v4013, %v4005
    %v4430 = vpack.c.b16 %v4014, %v4006
    %v4431 = vpack.c.b16 %v4015, %v4007
    %v4432 = vpack.c.b16 %v4016, %v4008
    %v4433 = vpack.c.b16 %v4025, %v4017
    %v4434 = vpack.c.b16 %v4026, %v4018
    %v4435 = vpack.c.b16 %v4027, %v4019
    %v4436 = vpack.c.b16 %v4028, %v4020
    %v4437 = vpack.c.b16 %v4029, %v4021
    %v4438 = vpack.c.b16 %v4030, %v4022
    %v4439 = vpack.c.b16 %v4031, %v4023
    %v4440 = vpack.c.b16 %v4032, %v4024
    %v4441 = vpack.c.b16 %v4041, %v4033
    %v4442 = vpack.c.b16 %v4042, %v4034
    %v4443 = vpack.c.b16 %v4043, %v4035
    %v4444 = vpack.c.b16 %v4044, %v4036
    %v4445 = vpack.c.b16 %v4045, %v4037
    %v4446 = vpack.c.b16 %v4046, %v4038
    %v4447 = vpack.c.b16 %v4047, %v4039
    %v4448 = vpack.c.b16 %v4048, %v4040
    %v4449 = vpack.c.b16 %v4057, %v4049
    %v4450 = vpack.c.b16 %v4058, %v4050
    %v4451 = vpack.c.b16 %v4059, %v4051
    %v4452 = vpack.c.b16 %v4060, %v4052
    %v4453 = vpack.c.b16 %v4061, %v4053
    %v4454 = vpack.c.b16 %v4062, %v4054
    %v4455 = vpack.c.b16 %v4063, %v4055
    %v4456 = vpack.c.b16 %v4064, %v4056
    %v4457 = vpack.c.b16 %v4073, %v4065
    %v4458 = vpack.c.b16 %v4074, %v4066
    %v4459 = vpack.c.b16 %v4075, %v4067
    %v4460 = vpack.c.b16 %v4076, %v4068
    %v4461 = vpack.c.b16 %v4077, %v4069
    %v4462 = vpack.c.b16 %v4078, %v4070
    %v4463 = vpack.c.b16 %v4079, %v4071
    %v4464 = vpack.c.b16 %v4080, %v4072
    %v4465 = vpack.c.b16 %v4089, %v4081
    %v4466 = vpack.c.b16 %v4090, %v4082
    %v4467 = vpack.c.b16 %v4091, %v4083
    %v4468 = vpack.c.b16 %v4092, %v4084
    %v4469 = vpack.c.b16 %v4093, %v4085
    %v4470 = vpack.c.b16 %v4094, %v4086
    %v4471 = vpack.c.b16 %v4095, %v4087
    %v4472 = vpack.c.b16 %v4096, %v4088
    %v4473 = vpack.c.b16 %v4105, %v4097
    %v4474 = vpack.c.b16 %v4106, %v4098
    %v4475 = vpack.c.b16 %v4107, %v4099
    %v4476 = vpack.c.b16 %v4108, %v4100
    %v4477 = vpack.c.b16 %v4109, %v4101
    %v4478 = vpack.c.b16 %v4110, %v4102
    %v4479 = vpack.c.b16 %v4111, %v4103
    %v4480 = vpack.c.b16 %v4112, %v4104
    %v4481 = vpack.c.b16 %v4121, %v4113
    %v4482 = vpack.c.b16 %v4122, %v4114
    %v4483 = vpack.c.b16 %v4123, %v4115
    %v4484 = vpack.c.b16 %v4124, %v4116
    %v4485 = vpack.c.b16 %v4125, %v4117
    %v4486 = vpack.c.b16 %v4126, %v4118
    %v4487 = vpack.c.b16 %v4127, %v4119
    %v4488 = vpack.c.b16 %v4128, %v4120
    %v4489 = vpack.c.b16 %v4137, %v4129
    %v4490 = vpack.c.b16 %v4138, %v4130
    %v4491 = vpack.c.b16 %v4139, %v4131
    %v4492 = vpack.c.b16 %v4140, %v4132
    %v4493 = vpack.c.b16 %v4141, %v4133
    %v4494 = vpack.c.b16 %v4142, %v4134
    %v4495 = vpack.c.b16 %v4143, %v4135
    %v4496 = vpack.c.b16 %v4144, %v4136
    %v4497 = vpack.c.b16 %v4153, %v4145
    %v4498 = vpack.c.b16 %v4154, %v4146
    %v4499 = vpack.c.b16 %v4155, %v4147
    %v4500 = vpack.c.b16 %v4156, %v4148
    %v4501 = vpack.c.b16 %v4157, %v4149
    %v4502 = vpack.c.b16 %v4158, %v4150
    %v4503 = vpack.c.b16 %v4159, %v4151
    %v4504 = vpack.c.b16 %v4160, %v4152
    %v4505 = vpack.c.b16 %v4169, %v4161
    %v4506 = vpack.c.b16 %v4170, %v4162
    %v4507 = vpack.c.b16 %v4171, %v4163
    %v4508 = vpack.c.b16 %v4172, %v4164
    %v4509 = vpack.c.b16 %v4173, %v4165
    %v4510 = vpack.c.b16 %v4174, %v4166
    %v4511 = vpack.c.b16 %v4175, %v4167
    %v4512 = vpack.c.b16 %v4176, %v4168
    %v4513 = vpack.c.b16 %v4185, %v4177
    %v4514 = vpack.c.b16 %v4186, %v4178
    %v4515 = vpack.c.b16 %v4187, %v4179
    %v4516 = vpack.c.b16 %v4188, %v4180
    %v4517 = vpack.c.b16 %v4189, %v4181
    %v4518 = vpack.c.b16 %v4190, %v4182
    %v4519 = vpack.c.b16 %v4191, %v4183
    %v4520 = vpack.c.b16 %v4192, %v4184
    %v4521 = vpack.c.b16 %v4201, %v4193
    %v4522 = vpack.c.b16 %v4202, %v4194
    %v4523 = vpack.c.b16 %v4203, %v4195
    %v4524 = vpack.c.b16 %v4204, %v4196
    %v4525 = vpack.c.b16 %v4205, %v4197
    %v4526 = vpack.c.b16 %v4206, %v4198
    %v4527 = vpack.c.b16 %v4207, %v4199
    %v4528 = vpack.c.b16 %v4208, %v4200
    %v4529 = vpack.c.b16 %v4217, %v4209
    %v4530 = vpack.c.b16 %v4218, %v4210
    %v4531 = vpack.c.b16 %v4219, %v4211
    %v4532 = vpack.c.b16 %v4220, %v4212
    %v4533 = vpack.c.b16 %v4221, %v4213
    %v4534 = vpack.c.b16 %v4222, %v4214
    %v4535 = vpack.c.b16 %v4223, %v4215
    %v4536 = vpack.c.b16 %v4224, %v4216
    %v4537 = vpack.c.b16 %v4233, %v4225
    %v4538 = vpack.c.b16 %v4234, %v4226
    %v4539 = vpack.c.b16 %v4235, %v4227
    %v4540 = vpack.c.b16 %v4236, %v4228
    %v4541 = vpack.c.b16 %v4237, %v4229
    %v4542 = vpack.c.b16 %v4238, %v4230
    %v4543 = vpack.c.b16 %v4239, %v4231
    %v4544 = vpack.c.b16 %v4240, %v4232
    %v4545 = vpack.c.b16 %v4249, %v4241
    %v4546 = vpack.c.b16 %v4250, %v4242
    %v4547 = vpack.c.b16 %v4251, %v4243
    %v4548 = vpack.c.b16 %v4252, %v4244
    %v4549 = vpack.c.b16 %v4253, %v4245
    %v4550 = vpack.c.b16 %v4254, %v4246
    %v4551 = vpack.c.b16 %v4255, %v4247
    %v4552 = vpack.c.b16 %v4256, %v4248
    %v4553 = vpack.c.b16 %v4265, %v4257
    %v4554 = vpack.c.b16 %v4266, %v4258
    %v4555 = vpack.c.b16 %v4267, %v4259
    %v4556 = vpack.c.b16 %v4268, %v4260
    %v4557 = vpack.c.b16 %v4269, %v4261
    %v4558 = vpack.c.b16 %v4270, %v4262
    %v4559 = vpack.c.b16 %v4271, %v4263
    %v4560 = vpack.c.b16 %v4272, %v4264
    %v4561 = vpack.c.b16 %v4281, %v4273
    %v4562 = vpack.c.b16 %v4282, %v4274
    %v4563 = vpack.c.b16 %v4283, %v4275
    %v4564 = vpack.c.b16 %v4284, %v4276
    %v4565 = vpack.c.b16 %v4285, %v4277
    %v4566 = vpack.c.b16 %v4286, %v4278
    %v4567 = vpack.c.b16 %v4287, %v4279
    %v4568 = vpack.c.b16 %v4288, %v4280
    %v4569 = vpack.c.b16 %v4297, %v4289
    %v4570 = vpack.c.b16 %v4298, %v4290
    %v4571 = vpack.c.b16 %v4299, %v4291
    %v4572 = vpack.c.b16 %v4300, %v4292
    %v4573 = vpack.c.b16 %v4301, %v4293
    %v4574 = vpack.c.b16 %v4302, %v4294
    %v4575 = vpack.c.b16 %v4303, %v4295
    %v4576 = vpack.c.b16 %v4304, %v4296
    %v4577 = vpack.c.b16 %v4313, %v4305
    %v4578 = vpack.c.b16 %v4314, %v4306
    %v4579 = vpack.c.b16 %v4315, %v4307
    %v4580 = vpack.c.b16 %v4316, %v4308
    %v4581 = vpack.c.b16 %v4317, %v4309
    %v4582 = vpack.c.b16 %v4318, %v4310
    %v4583 = vpack.c.b16 %v4319, %v4311
    %v4584 = vpack.c.b16 %v4320, %v4312
    %v4585 = vpack.c.b16 %v4329, %v4321
    %v4586 = vpack.c.b16 %v4330, %v4322
    %v4587 = vpack.c.b16 %v4331, %v4323
    %v4588 = vpack.c.b16 %v4332, %v4324
    %v4589 = vpack.c.b16 %v4333, %v4325
    %v4590 = vpack.c.b16 %v4334, %v4326
    %v4591 = vpack.c.b16 %v4335, %v4327
    %v4592 = vpack.c.b16 %v4336, %v4328
    %4849 = vmatprep.subr.bf16.mxu0 %v4338
    %4850 = vmatpush1.bf16.msra.mxu0 %v4337
    %4851 = vmatprep.subr.bf16.mxu0 %v4346
    %4852 = vmatpush1.bf16.msra.mxu0 %v4345
    %4853 = vmatprep.subr.bf16.mxu0 %v4354
    %4854 = vmatpush1.bf16.msra.mxu0 %v4353
    %4855 = vmatprep.subr.bf16.mxu0 %v4362
    %4856 = vmatpush1.bf16.msra.mxu0 %v4361
    %4857 = vmatprep.subr.bf16.mxu0 %v4370
    %4858 = vmatpush1.bf16.msra.mxu0 %v4369
    %4859 = vmatprep.subr.bf16.mxu0 %v4378
    %4860 = vmatpush1.bf16.msra.mxu0 %v4377
    %4861 = vmatprep.subr.bf16.mxu0 %v4386
    %4862 = vmatpush1.bf16.msra.mxu0 %v4385
    %4863 = vmatprep.subr.bf16.mxu0 %v4394
    %4864 = vmatpush1.bf16.msra.mxu0 %v4393
    %4865 = vmatprep.subr.bf16.mxu0 %v4402
    %4866 = vmatpush1.bf16.msra.mxu0 %v4401
    %4867 = vmatprep.subr.bf16.mxu0 %v4410
    %4868 = vmatpush1.bf16.msra.mxu0 %v4409
    %4869 = vmatprep.subr.bf16.mxu0 %v4418
    %4870 = vmatpush1.bf16.msra.mxu0 %v4417
    %4871 = vmatprep.subr.bf16.mxu0 %v4426
    %4872 = vmatpush1.bf16.msra.mxu0 %v4425
    %4873 = vmatprep.subr.bf16.mxu0 %v4434
    %4874 = vmatpush1.bf16.msra.mxu0 %v4433
    %4875 = vmatprep.subr.bf16.mxu0 %v4442
    %4876 = vmatpush1.bf16.msra.mxu0 %v4441
    %4877 = vmatprep.subr.bf16.mxu0 %v4450
    %4878 = vmatpush1.bf16.msra.mxu0 %v4449
    %4879 = vmatprep.subr.bf16.mxu0 %v4458
    %4880 = vmatpush1.bf16.msra.mxu0 %v4457
    %4881 = vmatprep.mubr.bf16.mxu0 %v3268
    %4882 = vmatmul.mubr.bf16.gmra.mrb[0].mxu0 %v3267
    %v4883 = vpop.f32.mrb[0].mxu0
    %v4884 = vadd.f32 %v3532, %v4883
    %v4885 = vpop.f32.mrb[0].mxu0
    %v4886 = vadd.f32 %v3536, %v4885
    %v4887 = vpop.f32.mrb[0].mxu0
    %v4888 = vpop.f32.mrb[0].mxu0
    %4889 = vdwg.mxu0
    %4890 = vmatprep.subr.bf16.mxu0 %v4466
    %4891 = vmatpush1.bf16.msra.mxu0 %v4465
    %4892 = vmatprep.subr.bf16.mxu0 %v4474
    %4893 = vmatpush1.bf16.msra.mxu0 %v4473
    %4894 = vmatprep.subr.bf16.mxu0 %v4482
    %4895 = vmatpush1.bf16.msra.mxu0 %v4481
    %4896 = vmatprep.subr.bf16.mxu0 %v4490
    %4897 = vmatpush1.bf16.msra.mxu0 %v4489
    %4898 = vmatprep.subr.bf16.mxu0 %v4498
    %4899 = vmatpush1.bf16.msra.mxu0 %v4497
    %4900 = vmatprep.subr.bf16.mxu0 %v4506
    %4901 = vmatpush1.bf16.msra.mxu0 %v4505
    %4902 = vmatprep.subr.bf16.mxu0 %v4514
    %4903 = vmatpush1.bf16.msra.mxu0 %v4513
    %4904 = vmatprep.subr.bf16.mxu0 %v4522
    %4905 = vmatpush1.bf16.msra.mxu0 %v4521
    %4906 = vmatprep.subr.bf16.mxu0 %v4530
    %4907 = vmatpush1.bf16.msra.mxu0 %v4529
    %4908 = vmatprep.subr.bf16.mxu0 %v4538
    %4909 = vmatpush1.bf16.msra.mxu0 %v4537
    %4910 = vmatprep.subr.bf16.mxu0 %v4546
    %4911 = vmatpush1.bf16.msra.mxu0 %v4545
    %4912 = vmatprep.subr.bf16.mxu0 %v4554
    %4913 = vmatpush1.bf16.msra.mxu0 %v4553
    %4914 = vmatprep.subr.bf16.mxu0 %v4562
    %4915 = vmatpush1.bf16.msra.mxu0 %v4561
    %4916 = vmatprep.subr.bf16.mxu0 %v4570
    %4917 = vmatpush1.bf16.msra.mxu0 %v4569
    %4918 = vmatprep.subr.bf16.mxu0 %v4578
    %4919 = vmatpush1.bf16.msra.mxu0 %v4577
    %4920 = vmatprep.subr.bf16.mxu0 %v4586
    %4921 = vmatpush1.bf16.msra.mxu0 %v4585
    %4922 = vmatprep.mubr.bf16.mxu0 %v3270
    %4923 = vmatmul.mubr.bf16.gmra.mrb[0].mxu0 %v3269
    %v4924 = vpop.f32.mrb[0].mxu0
    %v4925 = vadd.f32 %v4884, %v4924
    %v4926 = vpop.f32.mrb[0].mxu0
    %v4927 = vadd.f32 %v4886, %v4926
    %v4928 = vpop.f32.mrb[0].mxu0
    %v4929 = vpop.f32.mrb[0].mxu0
    %4930 = vdwg.mxu0
    %4931 = vmatprep.subr.bf16.mxu0 %v4340
    %4932 = vmatpush1.bf16.msra.mxu0 %v4339
    %4933 = vmatprep.subr.bf16.mxu0 %v4348
    %4934 = vmatpush1.bf16.msra.mxu0 %v4347
    %4935 = vmatprep.subr.bf16.mxu0 %v4356
    %4936 = vmatpush1.bf16.msra.mxu0 %v4355
    %4937 = vmatprep.subr.bf16.mxu0 %v4364
    %4938 = vmatpush1.bf16.msra.mxu0 %v4363
    %4939 = vmatprep.subr.bf16.mxu0 %v4372
    %4940 = vmatpush1.bf16.msra.mxu0 %v4371
    %4941 = vmatprep.subr.bf16.mxu0 %v4380
    %4942 = vmatpush1.bf16.msra.mxu0 %v4379
    %4943 = vmatprep.subr.bf16.mxu0 %v4388
    %4944 = vmatpush1.bf16.msra.mxu0 %v4387
    %4945 = vmatprep.subr.bf16.mxu0 %v4396
    %4946 = vmatpush1.bf16.msra.mxu0 %v4395
    %4947 = vmatprep.subr.bf16.mxu0 %v4404
    %4948 = vmatpush1.bf16.msra.mxu0 %v4403
    %4949 = vmatprep.subr.bf16.mxu0 %v4412
    %4950 = vmatpush1.bf16.msra.mxu0 %v4411
    %4951 = vmatprep.subr.bf16.mxu0 %v4420
    %4952 = vmatpush1.bf16.msra.mxu0 %v4419
    %4953 = vmatprep.subr.bf16.mxu0 %v4428
    %4954 = vmatpush1.bf16.msra.mxu0 %v4427
    %4955 = vmatprep.subr.bf16.mxu0 %v4436
    %4956 = vmatpush1.bf16.msra.mxu0 %v4435
    %4957 = vmatprep.subr.bf16.mxu0 %v4444
    %4958 = vmatpush1.bf16.msra.mxu0 %v4443
    %4959 = vmatprep.subr.bf16.mxu0 %v4452
    %4960 = vmatpush1.bf16.msra.mxu0 %v4451
    %4961 = vmatprep.subr.bf16.mxu0 %v4460
    %4962 = vmatpush1.bf16.msra.mxu0 %v4459
    %4963 = vmatprep.mubr.bf16.mxu0 %v3268
    %4964 = vmatmul.mubr.bf16.gmra.mrb[0].mxu0 %v3267
    %v4965 = vpop.f32.mrb[0].mxu0
    %v4966 = vadd.f32 %v3540, %v4965
    %v4967 = vpop.f32.mrb[0].mxu0
    %v4968 = vadd.f32 %v3544, %v4967
    %v4969 = vpop.f32.mrb[0].mxu0
    %v4970 = vpop.f32.mrb[0].mxu0
    %4971 = vdwg.mxu0
    %4972 = vmatprep.subr.bf16.mxu0 %v4468
    %4973 = vmatpush1.bf16.msra.mxu0 %v4467
    %4974 = vmatprep.subr.bf16.mxu0 %v4476
    %4975 = vmatpush1.bf16.msra.mxu0 %v4475
    %4976 = vmatprep.subr.bf16.mxu0 %v4484
    %4977 = vmatpush1.bf16.msra.mxu0 %v4483
    %4978 = vmatprep.subr.bf16.mxu0 %v4492
    %4979 = vmatpush1.bf16.msra.mxu0 %v4491
    %4980 = vmatprep.subr.bf16.mxu0 %v4500
    %4981 = vmatpush1.bf16.msra.mxu0 %v4499
    %4982 = vmatprep.subr.bf16.mxu0 %v4508
    %4983 = vmatpush1.bf16.msra.mxu0 %v4507
    %4984 = vmatprep.subr.bf16.mxu0 %v4516
    %4985 = vmatpush1.bf16.msra.mxu0 %v4515
    %4986 = vmatprep.subr.bf16.mxu0 %v4524
    %4987 = vmatpush1.bf16.msra.mxu0 %v4523
    %4988 = vmatprep.subr.bf16.mxu0 %v4532
    %4989 = vmatpush1.bf16.msra.mxu0 %v4531
    %4990 = vmatprep.subr.bf16.mxu0 %v4540
    %4991 = vmatpush1.bf16.msra.mxu0 %v4539
    %4992 = vmatprep.subr.bf16.mxu0 %v4548
    %4993 = vmatpush1.bf16.msra.mxu0 %v4547
    %4994 = vmatprep.subr.bf16.mxu0 %v4556
    %4995 = vmatpush1.bf16.msra.mxu0 %v4555
    %4996 = vmatprep.subr.bf16.mxu0 %v4564
    %4997 = vmatpush1.bf16.msra.mxu0 %v4563
    %4998 = vmatprep.subr.bf16.mxu0 %v4572
    %4999 = vmatpush1.bf16.msra.mxu0 %v4571
    %5000 = vmatprep.subr.bf16.mxu0 %v4580
    %5001 = vmatpush1.bf16.msra.mxu0 %v4579
    %5002 = vmatprep.subr.bf16.mxu0 %v4588
    %5003 = vmatpush1.bf16.msra.mxu0 %v4587
    %5004 = vmatprep.mubr.bf16.mxu0 %v3270
    %5005 = vmatmul.mubr.bf16.gmra.mrb[0].mxu0 %v3269
    %v5006 = vpop.f32.mrb[0].mxu0
    %v5007 = vadd.f32 %v4966, %v5006
    %v5008 = vpop.f32.mrb[0].mxu0
    %v5009 = vadd.f32 %v4968, %v5008
    %v5010 = vpop.f32.mrb[0].mxu0
    %v5011 = vpop.f32.mrb[0].mxu0
    %5012 = vdwg.mxu0
    %5013 = vmatprep.subr.bf16.mxu0 %v4342
    %5014 = vmatpush1.bf16.msra.mxu0 %v4341
    %5015 = vmatprep.subr.bf16.mxu0 %v4350
    %5016 = vmatpush1.bf16.msra.mxu0 %v4349
    %5017 = vmatprep.subr.bf16.mxu0 %v4358
    %5018 = vmatpush1.bf16.msra.mxu0 %v4357
    %5019 = vmatprep.subr.bf16.mxu0 %v4366
    %5020 = vmatpush1.bf16.msra.mxu0 %v4365
    %5021 = vmatprep.subr.bf16.mxu0 %v4374
    %5022 = vmatpush1.bf16.msra.mxu0 %v4373
    %5023 = vmatprep.subr.bf16.mxu0 %v4382
    %5024 = vmatpush1.bf16.msra.mxu0 %v4381
    %5025 = vmatprep.subr.bf16.mxu0 %v4390
    %5026 = vmatpush1.bf16.msra.mxu0 %v4389
    %5027 = vmatprep.subr.bf16.mxu0 %v4398
    %5028 = vmatpush1.bf16.msra.mxu0 %v4397
    %5029 = vmatprep.subr.bf16.mxu0 %v4406
    %5030 = vmatpush1.bf16.msra.mxu0 %v4405
    %5031 = vmatprep.subr.bf16.mxu0 %v4414
    %5032 = vmatpush1.bf16.msra.mxu0 %v4413
    %5033 = vmatprep.subr.bf16.mxu0 %v4422
    %5034 = vmatpush1.bf16.msra.mxu0 %v4421
    %5035 = vmatprep.subr.bf16.mxu0 %v4430
    %5036 = vmatpush1.bf16.msra.mxu0 %v4429
    %5037 = vmatprep.subr.bf16.mxu0 %v4438
    %5038 = vmatpush1.bf16.msra.mxu0 %v4437
    %5039 = vmatprep.subr.bf16.mxu0 %v4446
    %5040 = vmatpush1.bf16.msra.mxu0 %v4445
    %5041 = vmatprep.subr.bf16.mxu0 %v4454
    %5042 = vmatpush1.bf16.msra.mxu0 %v4453
    %5043 = vmatprep.subr.bf16.mxu0 %v4462
    %5044 = vmatpush1.bf16.msra.mxu0 %v4461
    %5045 = vmatprep.mubr.bf16.mxu0 %v3268
    %5046 = vmatmul.mubr.bf16.gmra.mrb[0].mxu0 %v3267
    %v5047 = vpop.f32.mrb[0].mxu0
    %v5048 = vadd.f32 %v3548, %v5047
    %v5049 = vpop.f32.mrb[0].mxu0
    %v5050 = vadd.f32 %v3552, %v5049
    %v5051 = vpop.f32.mrb[0].mxu0
    %v5052 = vpop.f32.mrb[0].mxu0
    %5053 = vdwg.mxu0
    %5054 = vmatprep.subr.bf16.mxu0 %v4470
    %5055 = vmatpush1.bf16.msra.mxu0 %v4469
    %5056 = vmatprep.subr.bf16.mxu0 %v4478
    %5057 = vmatpush1.bf16.msra.mxu0 %v4477
    %5058 = vmatprep.subr.bf16.mxu0 %v4486
    %5059 = vmatpush1.bf16.msra.mxu0 %v4485
    %5060 = vmatprep.subr.bf16.mxu0 %v4494
    %5061 = vmatpush1.bf16.msra.mxu0 %v4493
    %5062 = vmatprep.subr.bf16.mxu0 %v4502
    %5063 = vmatpush1.bf16.msra.mxu0 %v4501
    %5064 = vmatprep.subr.bf16.mxu0 %v4510
    %5065 = vmatpush1.bf16.msra.mxu0 %v4509
    %5066 = vmatprep.subr.bf16.mxu0 %v4518
    %5067 = vmatpush1.bf16.msra.mxu0 %v4517
    %5068 = vmatprep.subr.bf16.mxu0 %v4526
    %5069 = vmatpush1.bf16.msra.mxu0 %v4525
    %5070 = vmatprep.subr.bf16.mxu0 %v4534
    %5071 = vmatpush1.bf16.msra.mxu0 %v4533
    %5072 = vmatprep.subr.bf16.mxu0 %v4542
    %5073 = vmatpush1.bf16.msra.mxu0 %v4541
    %5074 = vmatprep.subr.bf16.mxu0 %v4550
    %5075 = vmatpush1.bf16.msra.mxu0 %v4549
    %5076 = vmatprep.subr.bf16.mxu0 %v4558
    %5077 = vmatpush1.bf16.msra.mxu0 %v4557
    %5078 = vmatprep.subr.bf16.mxu0 %v4566
    %5079 = vmatpush1.bf16.msra.mxu0 %v4565
    %5080 = vmatprep.subr.bf16.mxu0 %v4574
    %5081 = vmatpush1.bf16.msra.mxu0 %v4573
    %5082 = vmatprep.subr.bf16.mxu0 %v4582
    %5083 = vmatpush1.bf16.msra.mxu0 %v4581
    %5084 = vmatprep.subr.bf16.mxu0 %v4590
    %5085 = vmatpush1.bf16.msra.mxu0 %v4589
    %5086 = vmatprep.mubr.bf16.mxu0 %v3270
    %5087 = vmatmul.mubr.bf16.gmra.mrb[0].mxu0 %v3269
    %v5088 = vpop.f32.mrb[0].mxu0
    %v5089 = vadd.f32 %v5048, %v5088
    %v5090 = vpop.f32.mrb[0].mxu0
    %v5091 = vadd.f32 %v5050, %v5090
    %v5092 = vpop.f32.mrb[0].mxu0
    %v5093 = vpop.f32.mrb[0].mxu0
    %5094 = vdwg.mxu0
    %5095 = vmatprep.subr.bf16.mxu0 %v4344
    %5096 = vmatpush1.bf16.msra.mxu0 %v4343
    %5097 = vmatprep.subr.bf16.mxu0 %v4352
    %5098 = vmatpush1.bf16.msra.mxu0 %v4351
    %5099 = vmatprep.subr.bf16.mxu0 %v4360
    %5100 = vmatpush1.bf16.msra.mxu0 %v4359
    %5101 = vmatprep.subr.bf16.mxu0 %v4368
    %5102 = vmatpush1.bf16.msra.mxu0 %v4367
    %5103 = vmatprep.subr.bf16.mxu0 %v4376
    %5104 = vmatpush1.bf16.msra.mxu0 %v4375
    %5105 = vmatprep.subr.bf16.mxu0 %v4384
    %5106 = vmatpush1.bf16.msra.mxu0 %v4383
    %5107 = vmatprep.subr.bf16.mxu0 %v4392
    %5108 = vmatpush1.bf16.msra.mxu0 %v4391
    %5109 = vmatprep.subr.bf16.mxu0 %v4400
    %5110 = vmatpush1.bf16.msra.mxu0 %v4399
    %5111 = vmatprep.subr.bf16.mxu0 %v4408
    %5112 = vmatpush1.bf16.msra.mxu0 %v4407
    %5113 = vmatprep.subr.bf16.mxu0 %v4416
    %5114 = vmatpush1.bf16.msra.mxu0 %v4415
    %5115 = vmatprep.subr.bf16.mxu0 %v4424
    %5116 = vmatpush1.bf16.msra.mxu0 %v4423
    %5117 = vmatprep.subr.bf16.mxu0 %v4432
    %5118 = vmatpush1.bf16.msra.mxu0 %v4431
    %5119 = vmatprep.subr.bf16.mxu0 %v4440
    %5120 = vmatpush1.bf16.msra.mxu0 %v4439
    %5121 = vmatprep.subr.bf16.mxu0 %v4448
    %5122 = vmatpush1.bf16.msra.mxu0 %v4447
    %5123 = vmatprep.subr.bf16.mxu0 %v4456
    %5124 = vmatpush1.bf16.msra.mxu0 %v4455
    %5125 = vmatprep.subr.bf16.mxu0 %v4464
    %5126 = vmatpush1.bf16.msra.mxu0 %v4463
    %5127 = vmatprep.mubr.bf16.mxu0 %v3268
    %5128 = vmatmul.mubr.bf16.gmra.mrb[0].mxu0 %v3267
    %v5129 = vpop.f32.mrb[0].mxu0
    %v5130 = vadd.f32 %v3556, %v5129
    %v5131 = vpop.f32.mrb[0].mxu0
    %v5132 = vadd.f32 %v3560, %v5131
    %v5133 = vpop.f32.mrb[0].mxu0
    %v5134 = vpop.f32.mrb[0].mxu0
    %5135 = vdwg.mxu0
    %5136 = vmatprep.subr.bf16.mxu0 %v4472
    %5137 = vmatpush1.bf16.msra.mxu0 %v4471
    %5138 = vmatprep.subr.bf16.mxu0 %v4480
    %5139 = vmatpush1.bf16.msra.mxu0 %v4479
    %5140 = vmatprep.subr.bf16.mxu0 %v4488
    %5141 = vmatpush1.bf16.msra.mxu0 %v4487
    %5142 = vmatprep.subr.bf16.mxu0 %v4496
    %5143 = vmatpush1.bf16.msra.mxu0 %v4495
    %5144 = vmatprep.subr.bf16.mxu0 %v4504
    %5145 = vmatpush1.bf16.msra.mxu0 %v4503
    %5146 = vmatprep.subr.bf16.mxu0 %v4512
    %5147 = vmatpush1.bf16.msra.mxu0 %v4511
    %5148 = vmatprep.subr.bf16.mxu0 %v4520
    %5149 = vmatpush1.bf16.msra.mxu0 %v4519
    %5150 = vmatprep.subr.bf16.mxu0 %v4528
    %5151 = vmatpush1.bf16.msra.mxu0 %v4527
    %5152 = vmatprep.subr.bf16.mxu0 %v4536
    %5153 = vmatpush1.bf16.msra.mxu0 %v4535
    %5154 = vmatprep.subr.bf16.mxu0 %v4544
    %5155 = vmatpush1.bf16.msra.mxu0 %v4543
    %5156 = vmatprep.subr.bf16.mxu0 %v4552
    %5157 = vmatpush1.bf16.msra.mxu0 %v4551
    %5158 = vmatprep.subr.bf16.mxu0 %v4560
    %5159 = vmatpush1.bf16.msra.mxu0 %v4559
    %5160 = vmatprep.subr.bf16.mxu0 %v4568
    %5161 = vmatpush1.bf16.msra.mxu0 %v4567
    %5162 = vmatprep.subr.bf16.mxu0 %v4576
    %5163 = vmatpush1.bf16.msra.mxu0 %v4575
    %5164 = vmatprep.subr.bf16.mxu0 %v4584
    %5165 = vmatpush1.bf16.msra.mxu0 %v4583
    %5166 = vmatprep.subr.bf16.mxu0 %v4592
    %5167 = vmatpush1.bf16.msra.mxu0 %v4591
    %5168 = vmatprep.mubr.bf16.mxu0 %v3270
    %5169 = vmatmul.mubr.bf16.gmra.mrb[0].mxu0 %v3269
    %v5170 = vpop.f32.mrb[0].mxu0
    %v5171 = vadd.f32 %v5130, %v5170
    %v5172 = vpop.f32.mrb[0].mxu0
    %v5173 = vadd.f32 %v5132, %v5172
    %v5174 = vpop.f32.mrb[0].mxu0
    %v5175 = vpop.f32.mrb[0].mxu0
    %5176 = vdwg.mxu0
    %v5177 = vxor.u32 %v4925, 2147483648
    %v5178 = vxor.u32 %v4927, 2147483648
    %v5179 = vxor.u32 %v5007, 2147483648
    %v5180 = vxor.u32 %v5009, 2147483648
    %v5181 = vxor.u32 %v5089, 2147483648
    %v5182 = vxor.u32 %v5091, 2147483648
    %v5183 = vxor.u32 %v5171, 2147483648
    %v5184 = vxor.u32 %v5173, 2147483648
    %v5185 = vmul.f32 %v5177, 1.442695
    %v5186 = vpow.pop %v5185
    %v5187 = vmul.f32 %v5178, 1.442695
    %v5188 = vpow.pop %v5187
    %v5189 = vmul.f32 %v5179, 1.442695
    %v5190 = vpow.pop %v5189
    %v5191 = vmul.f32 %v5180, 1.442695
    %v5192 = vpow.pop %v5191
    %v5193 = vmul.f32 %v5181, 1.442695
    %v5194 = vpow.pop %v5193
    %v5195 = vmul.f32 %v5182, 1.442695
    %v5196 = vpow.pop %v5195
    %v5197 = vmul.f32 %v5183, 1.442695
    %v5198 = vpow.pop %v5197
    %v5199 = vmul.f32 %v5184, 1.442695
    %v5200 = vpow.pop %v5199
    %v5201 = vadd.f32 %v5186, 1.0
    %v5202 = vadd.f32 %v5188, 1.0
    %v5203 = vadd.f32 %v5190, 1.0
    %v5204 = vadd.f32 %v5192, 1.0
    %v5205 = vadd.f32 %v5194, 1.0
    %v5206 = vadd.f32 %v5196, 1.0
    %v5207 = vadd.f32 %v5198, 1.0
    %v5208 = vadd.f32 %v5200, 1.0
    %v5209 = vrcp.pop %v5201
    %v5210 = vmul.f32 1.0, %v5209
    %v5211 = vrcp.pop %v5202
    %v5212 = vmul.f32 1.0, %v5211
    %v5213 = vrcp.pop %v5203
    %v5214 = vmul.f32 1.0, %v5213
    %v5215 = vrcp.pop %v5204
    %v5216 = vmul.f32 1.0, %v5215
    %v5217 = vrcp.pop %v5205
    %v5218 = vmul.f32 1.0, %v5217
    %v5219 = vrcp.pop %v5206
    %v5220 = vmul.f32 1.0, %v5219
    %v5221 = vrcp.pop %v5207
    %v5222 = vmul.f32 1.0, %v5221
    %v5223 = vrcp.pop %v5208
    %v5224 = vmul.f32 1.0, %v5223
    %5225 = vst [vmem:[#allocation13] sm:$0xff] %v5210
    %5226 = vst [vmem:[#allocation13 + $0x8] sm:$0xff] %v5212
    %5227 = vst [vmem:[#allocation13 + $0x10] sm:$0xff] %v5214
    %5228 = vst [vmem:[#allocation13 + $0x18] sm:$0xff] %v5216
    %5229 = vst [vmem:[#allocation13 + $0x20] sm:$0xff] %v5218
    %5230 = vst [vmem:[#allocation13 + $0x28] sm:$0xff] %v5220
    %5231 = vst [vmem:[#allocation13 + $0x30] sm:$0xff] %v5222
    %5232 = vst [vmem:[#allocation13 + $0x38] sm:$0xff] %v5224
    // Predicated region
    $region54: #{_tag_decoder_call.1} parent=1 // pred_check
      _
    $region55: #{_tag_decoder_call.1} parent=1 // pred_check_branch
      %5234 = sbr.rel (0) target = $region57
    $region56: #{_tag_decoder_call.1} parent=1 // pred_region
      %s5236 = ssub.s32 1024, 1024
      %5237 = vsyncadd [#allocation4], %s5236
      %s5239 = sshll.u32 [#allocation13], 4
      %s5240 = int_to_ptr.vmem [resolvable:$true] %s5239
      %5242 = dma.vmem_to_hbm [thread:$0]  %s5240, 1024, %s7, [#allocation4]
    $region57: #{_tag_decoder_call.1} parent=1 // pred_fallthru
      _
    // Predicated region
    $region58: #{_tag_decoder_call.1} parent=1 // pred_check
      _
    $region59: #{_tag_decoder_call.1} parent=1 // pred_check_branch
      %5244 = sbr.rel (0) target = $region61
    $region60: #{_tag_decoder_call.1} parent=1 // pred_region
      %5245 = dma.done [#allocation4], 1024
    $region61: #{_tag_decoder_call.1} parent=1 // pred_fallthru
      _
    %5246 = vsyncpa [#allocation3], 1
    %5247 = vsyncpa [#allocation6], 1
    %5248 = vsyncpa [#allocation9], 1
    %5249 = vsyncpa [#allocation12], 1
    %5250 = vsyncpa [#allocation4], 1

</llo_original>
